<compile_context>
chip_gen: v7x
topology: tpu7x:2x2x1
jax: 0.10.0
libtpu: 0.0.40
codegen_flags: <defaults>
</compile_context>

<pallas_src>
import numpy as np
import jax
import jax.numpy as jnp
from jax.experimental import pallas as pl
from jax.experimental.pallas import tpu as pltpu

# ---------------- static config (mirrors cfg.TRAIN.*) ----------------
LOSS_MODE = "finetune"          # != 'pretrain'  ->  (|.|_1 + eps)^q robust loss
LOSS_WEIGHTS = (0.005, 0.01)    # one weight per output scale
LOSS_Q = 0.4
LOSS_EPSILON = 0.01
LOSS_KERNEL_SIZE = 3
LOSS_SIGMA = 1.0


# ---------------- deterministic host-side operator construction ----------------
def gaussian_kernel_2d(kernel_size, sigma):
    """Same as get_kernel() in the PyTorch reference (returns (k, k) float32)."""
    s3 = 3.0 * sigma
    X = np.linspace(-s3, s3, kernel_size)
    x, y = np.meshgrid(X, X)
    g = 1.0 / (2.0 * np.pi * sigma ** 2) * np.exp(-(x ** 2 + y ** 2) / (2.0 * sigma ** 2))
    return (g / g.sum()).astype(np.float32)


def gaussian_factor(kernel_size, sigma):
    """Rank-1 factor r of the normalized separable Gaussian: kernel == outer(r, r)."""
    gk = gaussian_kernel_2d(kernel_size, sigma)
    r = np.sqrt(np.diag(gk)).astype(np.float32)
    assert np.allclose(np.outer(r, r), gk, atol=1e-6)
    return r


def area_matrix(n_out, n_in):
    """1-D operator for F.interpolate(mode='area') (== adaptive average pool)."""
    M = np.zeros((n_out, n_in), np.float32)
    for i in range(n_out):
        s = (i * n_in) // n_out
        e = -((-(i + 1) * n_in) // n_out)   # ceil
        M[i, s:e] = 1.0 / (e - s)
    return M


def bilinear_matrix(n_out, n_in):
    """1-D operator for F.interpolate(mode='bilinear', align_corners=False)."""
    M = np.zeros((n_out, n_in), np.float32)
    scale = n_in / n_out
    for i in range(n_out):
        src = (i + 0.5) * scale - 0.5
        src = max(src, 0.0)
        x0 = min(int(np.floor(src)), n_in - 1)
        x1 = min(x0 + 1, n_in - 1)
        lam = src - x0
        M[i, x0] += 1.0 - lam
        M[i, x1] += lam
    return M


def conv_band_matrix(n, r):
    """Banded matrix so that zero-padded 1-D cross-correlation with taps r == M @ x."""
    k = r.shape[0]
    p = k // 2
    M = np.zeros((n, n), np.float32)
    for i in range(n):
        for a in range(n):
            d = a - i + p
            if 0 <= d < k:
                M[i, a] = r[d]
    return M


# ---------------- in-kernel helpers ----------------
def _mm(a, b):
    """Explicit bf16 MXU matmul with f32 accumulation (single-pass, no implicit 3x)."""
    return jnp.dot(a.astype(jnp.bfloat16), b.astype(jnp.bfloat16),
                   preferred_element_type=jnp.float32)


def _epe_map(du, dv):
    if LOSS_MODE == "pretrain":
        return jnp.sqrt(du * du + dv * dv)
    # (|du| + |dv| + eps) ** q   (argument strictly positive)
    return jnp.exp(LOSS_Q * jnp.log(jnp.abs(du) + jnp.abs(dv) + LOSS_EPSILON))


# ---------------- fused Pallas kernel ----------------
def make_cpcl_kernel(n, scale_shapes):
    """Ref layout (per grid point (core c, in-core batch b)):
         inputs : tgt_u(H,W) tgt_v(H,W) msk(H,W) | out_u_i,out_v_i (h_i,w_i) x n
                  | per scale: Ah, AwT, Bh, BwT, Cr, CcT (bf16) | Uh, UwT (bf16)
         outputs: conv_part_i (h_i,w_i) x n | epe_part_i (h_i,w_i) x n | real_part (1,1)
         scratch: real_sc SMEM (1,1) f32
       Outputs are indexed by the core axis only -> resident accumulators across b.
    """
    def kernel(*refs):
        p = 0
        tgtu_ref = refs[p]; p += 1
        tgtv_ref = refs[p]; p += 1
        msk_ref = refs[p]; p += 1
        flow_refs = refs[p:p + 2 * n]; p += 2 * n
        op_refs = refs[p:p + 6 * n]; p += 6 * n
        uh_ref = refs[p]; p += 1
        uwT_ref = refs[p]; p += 1
        conv_refs = refs[p:p + n]; p += n
        epe_refs = refs[p:p + n]; p += n
        real_ref = refs[p]; p += 1
        real_sc = refs[p]                      # SMEM (1,1) f32

        b = pl.program_id(1)
        nb = pl.num_programs(1)

        @pl.when(b == 0)
        def _init():
            for i in range(n):
                conv_refs[i][...] = jnp.zeros_like(conv_refs[i])
                epe_refs[i][...] = jnp.zeros_like(epe_refs[i])
            real_sc[0, 0] = jnp.float32(0.0)

        tgt_u = tgtu_ref[...]                  # (H, W) f32
        tgt_v = tgtv_ref[...]                  # (H, W) f32
        tgt_u_b = tgt_u.astype(jnp.bfloat16)   # cast once, reuse across scales
        tgt_v_b = tgt_v.astype(jnp.bfloat16)
        msk_b = msk_ref[...].astype(jnp.bfloat16)

        # ---------------- multiscale terms (this batch element) ----------------
        for i, (h, w) in enumerate(scale_shapes):
            Ah = op_refs[6 * i + 0][...]       # (h, H)  area rows       bf16
            AwT = op_refs[6 * i + 1][...]      # (W, w)  area cols^T     bf16
            Bh = op_refs[6 * i + 2][...]       # (h, H)  bilinear rows   bf16
            BwT = op_refs[6 * i + 3][...]      # (W, w)  bilinear cols^T bf16

            # area-downsampled target flow (separable operator matmuls, no slicing)
            tu = _mm(_mm(Ah, tgt_u_b), AwT)    # (h, w) f32
            tv = _mm(_mm(Ah, tgt_v_b), AwT)    # (h, w) f32

            du = tu - flow_refs[2 * i][...]
            dv = tv - flow_refs[2 * i + 1][...]
            epe_refs[i][...] = epe_refs[i][...] + _epe_map(du, dv)

            # bilinear-downsampled mask -> threshold; gaussian conv hoisted to finalize
            mi = _mm(_mm(Bh, msk_b), BwT)      # (h, w) f32, >= 0
            conv_refs[i][...] = conv_refs[i][...] + (mi > 0).astype(jnp.float32)

        # ---------------- realEPE: bilinear upsample of scale-0 output ----------------
        Uh = uh_ref[...]                       # (H, h0) bf16
        UwT = uwT_ref[...]                     # (w0, W) bf16
        uu = _mm(_mm(Uh, flow_refs[0][...].astype(jnp.bfloat16)), UwT)   # (H, W)
        uv = _mm(_mm(Uh, flow_refs[1][...].astype(jnp.bfloat16)), UwT)   # (H, W)
        rmap = _epe_map(tgt_u - uu, tgt_v - uv)
        real_sc[0, 0] = real_sc[0, 0] + jnp.sum(rmap)

        # ---------------- finalize this core's partials ----------------
        @pl.when(b == nb - 1)
        def _final():
            for i in range(n):
                Cr = op_refs[6 * i + 4][...]   # (h, h) gaussian band rows   bf16
                CcT = op_refs[6 * i + 5][...]  # (w, w) gaussian band cols^T bf16
                m = conv_refs[i][...]          # integer counts (exact in bf16)
                # conv(sum_b mbin_b) == sum_b conv(mbin_b): applied ONCE per core.
                conv_refs[i][...] = _mm(_mm(Cr, m), CcT)
            real_ref[...] = jnp.full((1, 1), real_sc[0, 0], jnp.float32)

    return kernel


# ---------------- wrapper ----------------
def cpcl_forward(outputs, target, mask):
    """Equivalent of CPCL.forward(output, target, mask, sparse=False)."""
    assert len(LOSS_WEIGHTS) == len(outputs)
    B, _, H, W = target.shape
    n = len(outputs)
    scale_shapes = [tuple(int(s) for s in o.shape[2:]) for o in outputs]
    h0, w0 = scale_shapes[0]

    # Split the batch across cores (v7x has 2 TCs; harmless serial split elsewhere).
    NC = 2 if (B % 2 == 0 and B >= 2) else 1
    BPC = B // NC

    r = gaussian_factor(LOSS_KERNEL_SIZE, LOSS_SIGMA)

    # host-built separable interpolation / gaussian-conv operators, stored bf16 (#2)
    OPD = jnp.bfloat16
    ops = []
    for (h, w) in scale_shapes:
        ops += [jnp.asarray(area_matrix(h, H), OPD),
                jnp.asarray(area_matrix(w, W).T, OPD),
                jnp.asarray(bilinear_matrix(h, H), OPD),
                jnp.asarray(bilinear_matrix(w, W).T, OPD),
                jnp.asarray(conv_band_matrix(h, r), OPD),
                jnp.asarray(conv_band_matrix(w, r).T, OPD)]
    Uh = jnp.asarray(bilinear_matrix(H, h0), OPD)
    UwT = jnp.asarray(bilinear_matrix(W, w0).T, OPD)

    # (#5) split u/v flow channels into separate arrays: zero lane slices in-kernel
    tgt_u = target[:, 0]
    tgt_v = target[:, 1]
    msk = mask[:, 0] if mask.ndim == 4 else mask.reshape(B, H, W)
    outs_split = []
    for o in outputs:
        outs_split += [o[:, 0], o[:, 1]]

    batch_idx = lambda c, b: (c * BPC + b, 0, 0)
    const_idx = lambda c, b: (0, 0)
    core_idx = lambda c, b: (c, 0, 0)

    in_specs = [pl.BlockSpec((None, H, W), batch_idx)] * 3
    for (h, w) in scale_shapes:
        in_specs += [pl.BlockSpec((None, h, w), batch_idx)] * 2
    for A in ops + [Uh, UwT]:
        in_specs.append(pl.BlockSpec(A.shape, const_idx))

    out_specs, out_shapes = [], []
    for (h, w) in scale_shapes:                           # per-core conv partials
        out_specs.append(pl.BlockSpec((None, h, w), core_idx))
        out_shapes.append(jax.ShapeDtypeStruct((NC, h, w), jnp.float32))
    for (h, w) in scale_shapes:                           # per-core epe partials
        out_specs.append(pl.BlockSpec((None, h, w), core_idx))
        out_shapes.append(jax.ShapeDtypeStruct((NC, h, w), jnp.float32))
    out_specs.append(pl.BlockSpec((None, 1, 1), core_idx))   # per-core realEPE sum
    out_shapes.append(jax.ShapeDtypeStruct((NC, 1, 1), jnp.float32))

    # (#4) right-size the VMEM budget: 2x (streamed blocks + operators + resident
    # outputs) for double-buffering, 1.5x headroom, small fixed margin.
    stream = 3 * H * W * 4 + sum(2 * h * w * 4 for (h, w) in scale_shapes)
    opsb = sum((2 * h * H + 2 * W * w + h * h + w * w) * 2 for (h, w) in scale_shapes)
    opsb += (H * h0 + w0 * W) * 2
    outb = sum(2 * h * w * 4 for (h, w) in scale_shapes) + 4
    vmem_limit = min(max(int(2 * (stream + opsb + outb) * 1.5) + (4 << 20), 16 << 20),
                     100 << 20)

    results = pl.pallas_call(
        make_cpcl_kernel(n, scale_shapes),
        out_shape=tuple(out_shapes),
        grid_spec=pltpu.PrefetchScalarGridSpec(
            num_scalar_prefetch=0,
            grid=(NC, BPC),
            in_specs=in_specs,
            out_specs=tuple(out_specs),
            scratch_shapes=[pltpu.SMEM((1, 1), jnp.float32)]),
        # leading (core) axis parallel -> shardable across TensorCores on v7x;
        # inner batch axis accumulates into resident output blocks -> arbitrary.
        compiler_params=pltpu.CompilerParams(
            dimension_semantics=("parallel", "arbitrary"),
            vmem_limit_bytes=vmem_limit),
    )(tgt_u, tgt_v, msk, *outs_split, *ops, Uh, UwT)

    # ---- trivial JAX epilogue: combine per-core partial maps (#3) ----
    conv_parts = results[0:n]
    epe_parts = results[n:2 * n]
    real_part = results[2 * n]

    loss = jnp.float32(0.0)
    for i, (h, w) in enumerate(scale_shapes):
        C = jnp.sum(conv_parts[i], axis=0)        # = conv( sum_b thresholded mask_b )
        E = jnp.sum(epe_parts[i], axis=0)         # = sum_b EPE_map_b
        num = jnp.sum(C * E)                      # == sum of the (B,B,h,w) broadcast
        den = jnp.sum(C)                          # == batch-global conv(mask).sum()
        loss = loss + jnp.float32(LOSS_WEIGHTS[i]) * (num / den) * jnp.float32(h * w)
    epe = jnp.sum(real_part) / jnp.float32(B * H * W)

    result = {"epe": epe, "loss": jax.lax.stop_gradient(loss)}
    return loss, result


# ---------------- pure-JAX reference (literal transcription of the torch code) ----------------
def _reference_cpcl(outputs, target, mask):
    B, _, H, W = target.shape
    gk = jnp.asarray(gaussian_kernel_2d(LOSS_KERNEL_SIZE, LOSS_SIGMA))
    pad = LOSS_KERNEL_SIZE // 2

    def robust(d):   # d: (B,2,h,w) -> (B,h,w)
        if LOSS_MODE == "pretrain":
            return jnp.sqrt(jnp.sum(d * d, axis=1))
        return (jnp.sum(jnp.abs(d), axis=1) + LOSS_EPSILON) ** LOSS_Q

    loss = 0.0
    for o, wgt in zip(outputs, LOSS_WEIGHTS):
        h, w = o.shape[2:]
        Ah, Aw = jnp.asarray(area_matrix(h, H)), jnp.asarray(area_matrix(w, W))
        Bh, Bw = jnp.asarray(bilinear_matrix(h, H)), jnp.asarray(bilinear_matrix(w, W))
        tgt_s = jnp.einsum('hH,bcHW,wW->bchw', Ah, target, Aw)
        msk_s = jnp.einsum('hH,bcHW,wW->bchw', Bh, mask, Bw)
        epe_map = robust(tgt_s - o)                          # (B,h,w)
        m = (msk_s > 0).astype(jnp.float32)                  # (B,1,h,w)
        mp = jnp.pad(m, ((0, 0), (0, 0), (pad, pad), (pad, pad)))
        conv = jax.lax.conv_general_dilated(
            mp, gk[None, None], (1, 1), 'VALID',
            dimension_numbers=('NCHW', 'OIHW', 'NCHW'))      # (B,1,h,w)
        prod = epe_map * conv                                # broadcast -> (B,B,h,w)
        loss = loss + wgt * prod.sum() / conv.sum() * (h * w)

    h0, w0 = outputs[0].shape[2:]
    Uh, Uw = jnp.asarray(bilinear_matrix(H, h0)), jnp.asarray(bilinear_matrix(W, w0))
    up = jnp.einsum('Hh,bchw,Ww->bcHW', Uh, outputs[0], Uw)
    epe = robust(target - up).mean()
    return loss, epe


# ---------------- demo ----------------
if __name__ == "__main__":
    key = jax.random.PRNGKey(0)
    k1, k2, k3, k4 = jax.random.split(key, 4)

    B, H, W = 2, 16, 16
    target = jax.random.normal(k1, (B, 2, H, W), jnp.float32)
    mask = (jax.random.uniform(k2, (B, 1, H, W)) > 0.3).astype(jnp.float32)
    outputs = [
        jax.random.normal(k3, (B, 2, 8, 8), jnp.float32),   # scale 0 (H/2)
        jax.random.normal(k4, (B, 2, 4, 4), jnp.float32),   # scale 1 (H/4)
    ]

    loss, result = cpcl_forward(outputs, target, mask)
    jax.block_until_ready((loss, result))
    assert bool(jnp.isfinite(loss)) and bool(jnp.isfinite(result["epe"]))

    # loose-tolerance check against a literal pure-JAX transcription of the torch code
    # (kernel uses explicit bf16 MXU operands -> ~1% expected deviation).
    loss_ref, epe_ref = _reference_cpcl(outputs, target, mask)
    jax.block_until_ready((loss_ref, epe_ref))
    assert abs(float(loss) - float(loss_ref)) <= 0.05 * abs(float(loss_ref)) + 1e-3
    assert abs(float(result["epe"]) - float(epe_ref)) <= 0.05 * abs(float(epe_ref)) + 1e-3

    print("KERNEL_OK")
</pallas_src>

<mosaic_0001>
module attributes {stable_mosaic.version = 11 : i64} {
  func.func @kernel(%arg0: i32, %arg1: i32, %arg2: memref<1x16x16xf32, #tpu.memory_space<vmem>>, %arg3: memref<1x16x16xf32, #tpu.memory_space<vmem>>, %arg4: memref<1x16x16xf32, #tpu.memory_space<vmem>>, %arg5: memref<1x8x8xf32, #tpu.memory_space<vmem>>, %arg6: memref<1x8x8xf32, #tpu.memory_space<vmem>>, %arg7: memref<1x4x4xf32, #tpu.memory_space<vmem>>, %arg8: memref<1x4x4xf32, #tpu.memory_space<vmem>>, %arg9: memref<8x16xbf16, #tpu.memory_space<vmem>>, %arg10: memref<16x8xbf16, #tpu.memory_space<vmem>>, %arg11: memref<8x16xbf16, #tpu.memory_space<vmem>>, %arg12: memref<16x8xbf16, #tpu.memory_space<vmem>>, %arg13: memref<8x8xbf16, #tpu.memory_space<vmem>>, %arg14: memref<8x8xbf16, #tpu.memory_space<vmem>>, %arg15: memref<4x16xbf16, #tpu.memory_space<vmem>>, %arg16: memref<16x4xbf16, #tpu.memory_space<vmem>>, %arg17: memref<4x16xbf16, #tpu.memory_space<vmem>>, %arg18: memref<16x4xbf16, #tpu.memory_space<vmem>>, %arg19: memref<4x4xbf16, #tpu.memory_space<vmem>>, %arg20: memref<4x4xbf16, #tpu.memory_space<vmem>>, %arg21: memref<16x8xbf16, #tpu.memory_space<vmem>>, %arg22: memref<8x16xbf16, #tpu.memory_space<vmem>>, %arg23: memref<1x8x8xf32, #tpu.memory_space<vmem>>, %arg24: memref<1x4x4xf32, #tpu.memory_space<vmem>>, %arg25: memref<1x8x8xf32, #tpu.memory_space<vmem>>, %arg26: memref<1x4x4xf32, #tpu.memory_space<vmem>>, %arg27: memref<1x1x1xf32, #tpu.memory_space<vmem>>, %arg28: memref<1x1xf32, #tpu.memory_space<smem>>) attributes {dimension_semantics = [#tpu.dimension_semantics<parallel>, #tpu.dimension_semantics<arbitrary>], iteration_bounds = array<i64: 2, 1>, scalar_prefetch = 0 : i64, scratch_operands = 1 : i64, tpu.core_type = #tpu.core_type<tc>, window_params = [{transform_indices = @transform_0, window_bounds = array<i64: 1, 16, 16>}, {transform_indices = @transform_1, window_bounds = array<i64: 1, 16, 16>}, {transform_indices = @transform_2, window_bounds = array<i64: 1, 16, 16>}, {transform_indices = @transform_3, window_bounds = array<i64: 1, 8, 8>}, {transform_indices = @transform_4, window_bounds = array<i64: 1, 8, 8>}, {transform_indices = @transform_5, window_bounds = array<i64: 1, 4, 4>}, {transform_indices = @transform_6, window_bounds = array<i64: 1, 4, 4>}, {pipeline_mode = #tpu.pipeline_mode<synchronous>, transform_indices = @transform_7, window_bounds = array<i64: 8, 16>}, {pipeline_mode = #tpu.pipeline_mode<synchronous>, transform_indices = @transform_8, window_bounds = array<i64: 16, 8>}, {pipeline_mode = #tpu.pipeline_mode<synchronous>, transform_indices = @transform_9, window_bounds = array<i64: 8, 16>}, {pipeline_mode = #tpu.pipeline_mode<synchronous>, transform_indices = @transform_10, window_bounds = array<i64: 16, 8>}, {pipeline_mode = #tpu.pipeline_mode<synchronous>, transform_indices = @transform_11, window_bounds = array<i64: 8, 8>}, {pipeline_mode = #tpu.pipeline_mode<synchronous>, transform_indices = @transform_12, window_bounds = array<i64: 8, 8>}, {pipeline_mode = #tpu.pipeline_mode<synchronous>, transform_indices = @transform_13, window_bounds = array<i64: 4, 16>}, {pipeline_mode = #tpu.pipeline_mode<synchronous>, transform_indices = @transform_14, window_bounds = array<i64: 16, 4>}, {pipeline_mode = #tpu.pipeline_mode<synchronous>, transform_indices = @transform_15, window_bounds = array<i64: 4, 16>}, {pipeline_mode = #tpu.pipeline_mode<synchronous>, transform_indices = @transform_16, window_bounds = array<i64: 16, 4>}, {pipeline_mode = #tpu.pipeline_mode<synchronous>, transform_indices = @transform_17, window_bounds = array<i64: 4, 4>}, {pipeline_mode = #tpu.pipeline_mode<synchronous>, transform_indices = @transform_18, window_bounds = array<i64: 4, 4>}, {pipeline_mode = #tpu.pipeline_mode<synchronous>, transform_indices = @transform_19, window_bounds = array<i64: 16, 8>}, {pipeline_mode = #tpu.pipeline_mode<synchronous>, transform_indices = @transform_20, window_bounds = array<i64: 8, 16>}, {transform_indices = @transform_21, window_bounds = array<i64: 1, 8, 8>}, {transform_indices = @transform_22, window_bounds = array<i64: 1, 4, 4>}, {transform_indices = @transform_23, window_bounds = array<i64: 1, 8, 8>}, {transform_indices = @transform_24, window_bounds = array<i64: 1, 4, 4>}, {transform_indices = @transform_25, window_bounds = array<i64: 1, 1, 1>}]} {
    %c0_i32 = arith.constant 0 : i32
    %0 = arith.cmpi eq, %arg1, %c0_i32 : i32
    %1 = arith.extui %0 : i1 to i32
    %c0_i32_0 = arith.constant 0 : i32
    %2 = arith.cmpi ne, %1, %c0_i32_0 : i32
    scf.if %2 {
      %cst_101 = arith.constant 0.000000e+00 : f32
      %135 = vector.broadcast %cst_101 : f32 to vector<8x8xf32>
      %c0_102 = arith.constant 0 : index
      %c0_103 = arith.constant 0 : index
      %c0_104 = arith.constant 0 : index
      %136 = vector.load %arg23[%c0_102, %c0_103, %c0_104] : memref<1x8x8xf32, #tpu.memory_space<vmem>>, vector<1x8x8xf32>
      %137 = vector.shape_cast %136 : vector<1x8x8xf32> to vector<8x8xf32>
      %138 = vector.shape_cast %135 : vector<8x8xf32> to vector<1x8x8xf32>
      tpu.vector_store %arg23[%c0_102, %c0_103, %c0_104], %138 {strides = array<i32>} : memref<1x8x8xf32, #tpu.memory_space<vmem>>, vector<1x8x8xf32>,
      %cst_105 = arith.constant 0.000000e+00 : f32
      %139 = vector.broadcast %cst_105 : f32 to vector<8x8xf32>
      %c0_106 = arith.constant 0 : index
      %c0_107 = arith.constant 0 : index
      %c0_108 = arith.constant 0 : index
      %140 = vector.load %arg25[%c0_106, %c0_107, %c0_108] : memref<1x8x8xf32, #tpu.memory_space<vmem>>, vector<1x8x8xf32>
      %141 = vector.shape_cast %140 : vector<1x8x8xf32> to vector<8x8xf32>
      %142 = vector.shape_cast %139 : vector<8x8xf32> to vector<1x8x8xf32>
      tpu.vector_store %arg25[%c0_106, %c0_107, %c0_108], %142 {strides = array<i32>} : memref<1x8x8xf32, #tpu.memory_space<vmem>>, vector<1x8x8xf32>,
      %cst_109 = arith.constant 0.000000e+00 : f32
      %143 = vector.broadcast %cst_109 : f32 to vector<4x4xf32>
      %c0_110 = arith.constant 0 : index
      %c0_111 = arith.constant 0 : index
      %c0_112 = arith.constant 0 : index
      %144 = vector.load %arg24[%c0_110, %c0_111, %c0_112] : memref<1x4x4xf32, #tpu.memory_space<vmem>>, vector<1x4x4xf32>
      %145 = vector.shape_cast %144 : vector<1x4x4xf32> to vector<4x4xf32>
      %146 = vector.shape_cast %143 : vector<4x4xf32> to vector<1x4x4xf32>
      tpu.vector_store %arg24[%c0_110, %c0_111, %c0_112], %146 {strides = array<i32>} : memref<1x4x4xf32, #tpu.memory_space<vmem>>, vector<1x4x4xf32>,
      %cst_113 = arith.constant 0.000000e+00 : f32
      %147 = vector.broadcast %cst_113 : f32 to vector<4x4xf32>
      %c0_114 = arith.constant 0 : index
      %c0_115 = arith.constant 0 : index
      %c0_116 = arith.constant 0 : index
      %148 = vector.load %arg26[%c0_114, %c0_115, %c0_116] : memref<1x4x4xf32, #tpu.memory_space<vmem>>, vector<1x4x4xf32>
      %149 = vector.shape_cast %148 : vector<1x4x4xf32> to vector<4x4xf32>
      %150 = vector.shape_cast %147 : vector<4x4xf32> to vector<1x4x4xf32>
      tpu.vector_store %arg26[%c0_114, %c0_115, %c0_116], %150 {strides = array<i32>} : memref<1x4x4xf32, #tpu.memory_space<vmem>>, vector<1x4x4xf32>,
      %cst_117 = arith.constant 0.000000e+00 : f32
      %c0_118 = arith.constant 0 : index
      %c0_119 = arith.constant 0 : index
      %151 = memref.load %arg28[%c0_118, %c0_119] : memref<1x1xf32, #tpu.memory_space<smem>>
      memref.store %cst_117, %arg28[%c0_118, %c0_119] : memref<1x1xf32, #tpu.memory_space<smem>>
    } else {
    }
    %c0 = arith.constant 0 : index
    %c0_1 = arith.constant 0 : index
    %c0_2 = arith.constant 0 : index
    %3 = vector.load %arg2[%c0, %c0_1, %c0_2] : memref<1x16x16xf32, #tpu.memory_space<vmem>>, vector<1x16x16xf32>
    %4 = vector.shape_cast %3 : vector<1x16x16xf32> to vector<16x16xf32>
    %c0_3 = arith.constant 0 : index
    %c0_4 = arith.constant 0 : index
    %c0_5 = arith.constant 0 : index
    %5 = vector.load %arg3[%c0_3, %c0_4, %c0_5] : memref<1x16x16xf32, #tpu.memory_space<vmem>>, vector<1x16x16xf32>
    %6 = vector.shape_cast %5 : vector<1x16x16xf32> to vector<16x16xf32>
    %7 = arith.truncf %4 : vector<16x16xf32> to vector<16x16xbf16>
    %8 = arith.truncf %6 : vector<16x16xf32> to vector<16x16xbf16>
    %c0_6 = arith.constant 0 : index
    %c0_7 = arith.constant 0 : index
    %c0_8 = arith.constant 0 : index
    %9 = vector.load %arg4[%c0_6, %c0_7, %c0_8] : memref<1x16x16xf32, #tpu.memory_space<vmem>>, vector<1x16x16xf32>
    %10 = vector.shape_cast %9 : vector<1x16x16xf32> to vector<16x16xf32>
    %11 = arith.truncf %10 : vector<16x16xf32> to vector<16x16xbf16>
    %c0_9 = arith.constant 0 : index
    %c0_10 = arith.constant 0 : index
    %12 = vector.load %arg9[%c0_9, %c0_10] : memref<8x16xbf16, #tpu.memory_space<vmem>>, vector<8x16xbf16>
    %c0_11 = arith.constant 0 : index
    %c0_12 = arith.constant 0 : index
    %13 = vector.load %arg10[%c0_11, %c0_12] : memref<16x8xbf16, #tpu.memory_space<vmem>>, vector<16x8xbf16>
    %c0_13 = arith.constant 0 : index
    %c0_14 = arith.constant 0 : index
    %14 = vector.load %arg11[%c0_13, %c0_14] : memref<8x16xbf16, #tpu.memory_space<vmem>>, vector<8x16xbf16>
    %c0_15 = arith.constant 0 : index
    %c0_16 = arith.constant 0 : index
    %15 = vector.load %arg12[%c0_15, %c0_16] : memref<16x8xbf16, #tpu.memory_space<vmem>>, vector<16x8xbf16>
    %cst = arith.constant dense<0.000000e+00> : vector<8x16xf32>
    %16 = tpu.matmul %12, %7, %cst {dimension_numbers = #tpu.dot_dimension_numbers<[1], [0], [0], [1], [0, 0, 1, 1], [], []>} : vector<8x16xbf16>, vector<16x16xbf16>, vector<8x16xf32> -> vector<8x16xf32>
    %17 = arith.truncf %16 : vector<8x16xf32> to vector<8x16xbf16>
    %cst_17 = arith.constant dense<0.000000e+00> : vector<8x8xf32>
    %18 = tpu.matmul %17, %13, %cst_17 {dimension_numbers = #tpu.dot_dimension_numbers<[1], [0], [0], [1], [0, 0, 1, 1], [], []>} : vector<8x16xbf16>, vector<16x8xbf16>, vector<8x8xf32> -> vector<8x8xf32>
    %cst_18 = arith.constant dense<0.000000e+00> : vector<8x16xf32>
    %19 = tpu.matmul %12, %8, %cst_18 {dimension_numbers = #tpu.dot_dimension_numbers<[1], [0], [0], [1], [0, 0, 1, 1], [], []>} : vector<8x16xbf16>, vector<16x16xbf16>, vector<8x16xf32> -> vector<8x16xf32>
    %20 = arith.truncf %19 : vector<8x16xf32> to vector<8x16xbf16>
    %cst_19 = arith.constant dense<0.000000e+00> : vector<8x8xf32>
    %21 = tpu.matmul %20, %13, %cst_19 {dimension_numbers = #tpu.dot_dimension_numbers<[1], [0], [0], [1], [0, 0, 1, 1], [], []>} : vector<8x16xbf16>, vector<16x8xbf16>, vector<8x8xf32> -> vector<8x8xf32>
    %c0_20 = arith.constant 0 : index
    %c0_21 = arith.constant 0 : index
    %c0_22 = arith.constant 0 : index
    %22 = vector.load %arg5[%c0_20, %c0_21, %c0_22] : memref<1x8x8xf32, #tpu.memory_space<vmem>>, vector<1x8x8xf32>
    %23 = vector.shape_cast %22 : vector<1x8x8xf32> to vector<8x8xf32>
    %24 = arith.subf %18, %23 : vector<8x8xf32>
    %c0_23 = arith.constant 0 : index
    %c0_24 = arith.constant 0 : index
    %c0_25 = arith.constant 0 : index
    %25 = vector.load %arg6[%c0_23, %c0_24, %c0_25] : memref<1x8x8xf32, #tpu.memory_space<vmem>>, vector<1x8x8xf32>
    %26 = vector.shape_cast %25 : vector<1x8x8xf32> to vector<8x8xf32>
    %27 = arith.subf %21, %26 : vector<8x8xf32>
    %c0_26 = arith.constant 0 : index
    %c0_27 = arith.constant 0 : index
    %c0_28 = arith.constant 0 : index
    %28 = vector.load %arg25[%c0_26, %c0_27, %c0_28] : memref<1x8x8xf32, #tpu.memory_space<vmem>>, vector<1x8x8xf32>
    %29 = vector.shape_cast %28 : vector<1x8x8xf32> to vector<8x8xf32>
    %30 = math.absf %24 : vector<8x8xf32>
    %31 = math.absf %27 : vector<8x8xf32>
    %32 = arith.addf %30, %31 : vector<8x8xf32>
    %cst_29 = arith.constant 0.00999999977 : f32
    %33 = vector.broadcast %cst_29 : f32 to vector<8x8xf32>
    %34 = arith.addf %32, %33 : vector<8x8xf32>
    %35 = math.log %34 : vector<8x8xf32>
    %cst_30 = arith.constant 4.000000e-01 : f32
    %36 = vector.broadcast %cst_30 : f32 to vector<8x8xf32>
    %37 = arith.mulf %36, %35 : vector<8x8xf32>
    %38 = math.exp %37 : vector<8x8xf32>
    %39 = arith.addf %29, %38 : vector<8x8xf32>
    %c0_31 = arith.constant 0 : index
    %c0_32 = arith.constant 0 : index
    %c0_33 = arith.constant 0 : index
    %40 = vector.load %arg25[%c0_31, %c0_32, %c0_33] : memref<1x8x8xf32, #tpu.memory_space<vmem>>, vector<1x8x8xf32>
    %41 = vector.shape_cast %40 : vector<1x8x8xf32> to vector<8x8xf32>
    %42 = vector.shape_cast %39 : vector<8x8xf32> to vector<1x8x8xf32>
    tpu.vector_store %arg25[%c0_31, %c0_32, %c0_33], %42 {strides = array<i32>} : memref<1x8x8xf32, #tpu.memory_space<vmem>>, vector<1x8x8xf32>,
    %cst_34 = arith.constant dense<0.000000e+00> : vector<8x16xf32>
    %43 = tpu.matmul %14, %11, %cst_34 {dimension_numbers = #tpu.dot_dimension_numbers<[1], [0], [0], [1], [0, 0, 1, 1], [], []>} : vector<8x16xbf16>, vector<16x16xbf16>, vector<8x16xf32> -> vector<8x16xf32>
    %44 = arith.truncf %43 : vector<8x16xf32> to vector<8x16xbf16>
    %cst_35 = arith.constant dense<0.000000e+00> : vector<8x8xf32>
    %45 = tpu.matmul %44, %15, %cst_35 {dimension_numbers = #tpu.dot_dimension_numbers<[1], [0], [0], [1], [0, 0, 1, 1], [], []>} : vector<8x16xbf16>, vector<16x8xbf16>, vector<8x8xf32> -> vector<8x8xf32>
    %c0_36 = arith.constant 0 : index
    %c0_37 = arith.constant 0 : index
    %c0_38 = arith.constant 0 : index
    %46 = vector.load %arg23[%c0_36, %c0_37, %c0_38] : memref<1x8x8xf32, #tpu.memory_space<vmem>>, vector<1x8x8xf32>
    %47 = vector.shape_cast %46 : vector<1x8x8xf32> to vector<8x8xf32>
    %cst_39 = arith.constant 0.000000e+00 : f32
    %48 = vector.broadcast %cst_39 : f32 to vector<8x8xf32>
    %49 = arith.cmpf ogt, %45, %48 : vector<8x8xf32>
    %50 = arith.extui %49 : vector<8x8xi1> to vector<8x8xi32>
    %51 = arith.sitofp %50 : vector<8x8xi32> to vector<8x8xf32>
    %52 = arith.addf %47, %51 : vector<8x8xf32>
    %c0_40 = arith.constant 0 : index
    %c0_41 = arith.constant 0 : index
    %c0_42 = arith.constant 0 : index
    %53 = vector.load %arg23[%c0_40, %c0_41, %c0_42] : memref<1x8x8xf32, #tpu.memory_space<vmem>>, vector<1x8x8xf32>
    %54 = vector.shape_cast %53 : vector<1x8x8xf32> to vector<8x8xf32>
    %55 = vector.shape_cast %52 : vector<8x8xf32> to vector<1x8x8xf32>
    tpu.vector_store %arg23[%c0_40, %c0_41, %c0_42], %55 {strides = array<i32>} : memref<1x8x8xf32, #tpu.memory_space<vmem>>, vector<1x8x8xf32>,
    %c0_43 = arith.constant 0 : index
    %c0_44 = arith.constant 0 : index
    %56 = vector.load %arg15[%c0_43, %c0_44] : memref<4x16xbf16, #tpu.memory_space<vmem>>, vector<4x16xbf16>
    %c0_45 = arith.constant 0 : index
    %c0_46 = arith.constant 0 : index
    %57 = vector.load %arg16[%c0_45, %c0_46] : memref<16x4xbf16, #tpu.memory_space<vmem>>, vector<16x4xbf16>
    %c0_47 = arith.constant 0 : index
    %c0_48 = arith.constant 0 : index
    %58 = vector.load %arg17[%c0_47, %c0_48] : memref<4x16xbf16, #tpu.memory_space<vmem>>, vector<4x16xbf16>
    %c0_49 = arith.constant 0 : index
    %c0_50 = arith.constant 0 : index
    %59 = vector.load %arg18[%c0_49, %c0_50] : memref<16x4xbf16, #tpu.memory_space<vmem>>, vector<16x4xbf16>
    %cst_51 = arith.constant dense<0.000000e+00> : vector<4x16xf32>
    %60 = tpu.matmul %56, %7, %cst_51 {dimension_numbers = #tpu.dot_dimension_numbers<[1], [0], [0], [1], [0, 0, 1, 1], [], []>} : vector<4x16xbf16>, vector<16x16xbf16>, vector<4x16xf32> -> vector<4x16xf32>
    %61 = arith.truncf %60 : vector<4x16xf32> to vector<4x16xbf16>
    %cst_52 = arith.constant dense<0.000000e+00> : vector<4x4xf32>
    %62 = tpu.matmul %61, %57, %cst_52 {dimension_numbers = #tpu.dot_dimension_numbers<[1], [0], [0], [1], [0, 0, 1, 1], [], []>} : vector<4x16xbf16>, vector<16x4xbf16>, vector<4x4xf32> -> vector<4x4xf32>
    %cst_53 = arith.constant dense<0.000000e+00> : vector<4x16xf32>
    %63 = tpu.matmul %56, %8, %cst_53 {dimension_numbers = #tpu.dot_dimension_numbers<[1], [0], [0], [1], [0, 0, 1, 1], [], []>} : vector<4x16xbf16>, vector<16x16xbf16>, vector<4x16xf32> -> vector<4x16xf32>
    %64 = arith.truncf %63 : vector<4x16xf32> to vector<4x16xbf16>
    %cst_54 = arith.constant dense<0.000000e+00> : vector<4x4xf32>
    %65 = tpu.matmul %64, %57, %cst_54 {dimension_numbers = #tpu.dot_dimension_numbers<[1], [0], [0], [1], [0, 0, 1, 1], [], []>} : vector<4x16xbf16>, vector<16x4xbf16>, vector<4x4xf32> -> vector<4x4xf32>
    %c0_55 = arith.constant 0 : index
    %c0_56 = arith.constant 0 : index
    %c0_57 = arith.constant 0 : index
    %66 = vector.load %arg7[%c0_55, %c0_56, %c0_57] : memref<1x4x4xf32, #tpu.memory_space<vmem>>, vector<1x4x4xf32>
    %67 = vector.shape_cast %66 : vector<1x4x4xf32> to vector<4x4xf32>
    %68 = arith.subf %62, %67 : vector<4x4xf32>
    %c0_58 = arith.constant 0 : index
    %c0_59 = arith.constant 0 : index
    %c0_60 = arith.constant 0 : index
    %69 = vector.load %arg8[%c0_58, %c0_59, %c0_60] : memref<1x4x4xf32, #tpu.memory_space<vmem>>, vector<1x4x4xf32>
    %70 = vector.shape_cast %69 : vector<1x4x4xf32> to vector<4x4xf32>
    %71 = arith.subf %65, %70 : vector<4x4xf32>
    %c0_61 = arith.constant 0 : index
    %c0_62 = arith.constant 0 : index
    %c0_63 = arith.constant 0 : index
    %72 = vector.load %arg26[%c0_61, %c0_62, %c0_63] : memref<1x4x4xf32, #tpu.memory_space<vmem>>, vector<1x4x4xf32>
    %73 = vector.shape_cast %72 : vector<1x4x4xf32> to vector<4x4xf32>
    %74 = math.absf %68 : vector<4x4xf32>
    %75 = math.absf %71 : vector<4x4xf32>
    %76 = arith.addf %74, %75 : vector<4x4xf32>
    %cst_64 = arith.constant 0.00999999977 : f32
    %77 = vector.broadcast %cst_64 : f32 to vector<4x4xf32>
    %78 = arith.addf %76, %77 : vector<4x4xf32>
    %79 = math.log %78 : vector<4x4xf32>
    %cst_65 = arith.constant 4.000000e-01 : f32
    %80 = vector.broadcast %cst_65 : f32 to vector<4x4xf32>
    %81 = arith.mulf %80, %79 : vector<4x4xf32>
    %82 = math.exp %81 : vector<4x4xf32>
    %83 = arith.addf %73, %82 : vector<4x4xf32>
    %c0_66 = arith.constant 0 : index
    %c0_67 = arith.constant 0 : index
    %c0_68 = arith.constant 0 : index
    %84 = vector.load %arg26[%c0_66, %c0_67, %c0_68] : memref<1x4x4xf32, #tpu.memory_space<vmem>>, vector<1x4x4xf32>
    %85 = vector.shape_cast %84 : vector<1x4x4xf32> to vector<4x4xf32>
    %86 = vector.shape_cast %83 : vector<4x4xf32> to vector<1x4x4xf32>
    tpu.vector_store %arg26[%c0_66, %c0_67, %c0_68], %86 {strides = array<i32>} : memref<1x4x4xf32, #tpu.memory_space<vmem>>, vector<1x4x4xf32>,
    %cst_69 = arith.constant dense<0.000000e+00> : vector<4x16xf32>
    %87 = tpu.matmul %58, %11, %cst_69 {dimension_numbers = #tpu.dot_dimension_numbers<[1], [0], [0], [1], [0, 0, 1, 1], [], []>} : vector<4x16xbf16>, vector<16x16xbf16>, vector<4x16xf32> -> vector<4x16xf32>
    %88 = arith.truncf %87 : vector<4x16xf32> to vector<4x16xbf16>
    %cst_70 = arith.constant dense<0.000000e+00> : vector<4x4xf32>
    %89 = tpu.matmul %88, %59, %cst_70 {dimension_numbers = #tpu.dot_dimension_numbers<[1], [0], [0], [1], [0, 0, 1, 1], [], []>} : vector<4x16xbf16>, vector<16x4xbf16>, vector<4x4xf32> -> vector<4x4xf32>
    %c0_71 = arith.constant 0 : index
    %c0_72 = arith.constant 0 : index
    %c0_73 = arith.constant 0 : index
    %90 = vector.load %arg24[%c0_71, %c0_72, %c0_73] : memref<1x4x4xf32, #tpu.memory_space<vmem>>, vector<1x4x4xf32>
    %91 = vector.shape_cast %90 : vector<1x4x4xf32> to vector<4x4xf32>
    %cst_74 = arith.constant 0.000000e+00 : f32
    %92 = vector.broadcast %cst_74 : f32 to vector<4x4xf32>
    %93 = arith.cmpf ogt, %89, %92 : vector<4x4xf32>
    %94 = arith.extui %93 : vector<4x4xi1> to vector<4x4xi32>
    %95 = arith.sitofp %94 : vector<4x4xi32> to vector<4x4xf32>
    %96 = arith.addf %91, %95 : vector<4x4xf32>
    %c0_75 = arith.constant 0 : index
    %c0_76 = arith.constant 0 : index
    %c0_77 = arith.constant 0 : index
    %97 = vector.load %arg24[%c0_75, %c0_76, %c0_77] : memref<1x4x4xf32, #tpu.memory_space<vmem>>, vector<1x4x4xf32>
    %98 = vector.shape_cast %97 : vector<1x4x4xf32> to vector<4x4xf32>
    %99 = vector.shape_cast %96 : vector<4x4xf32> to vector<1x4x4xf32>
    tpu.vector_store %arg24[%c0_75, %c0_76, %c0_77], %99 {strides = array<i32>} : memref<1x4x4xf32, #tpu.memory_space<vmem>>, vector<1x4x4xf32>,
    %c0_78 = arith.constant 0 : index
    %c0_79 = arith.constant 0 : index
    %100 = vector.load %arg21[%c0_78, %c0_79] : memref<16x8xbf16, #tpu.memory_space<vmem>>, vector<16x8xbf16>
    %c0_80 = arith.constant 0 : index
    %c0_81 = arith.constant 0 : index
    %101 = vector.load %arg22[%c0_80, %c0_81] : memref<8x16xbf16, #tpu.memory_space<vmem>>, vector<8x16xbf16>
    %c0_82 = arith.constant 0 : index
    %c0_83 = arith.constant 0 : index
    %c0_84 = arith.constant 0 : index
    %102 = vector.load %arg5[%c0_82, %c0_83, %c0_84] : memref<1x8x8xf32, #tpu.memory_space<vmem>>, vector<1x8x8xf32>
    %103 = vector.shape_cast %102 : vector<1x8x8xf32> to vector<8x8xf32>
    %104 = arith.truncf %103 : vector<8x8xf32> to vector<8x8xbf16>
    %cst_85 = arith.constant dense<0.000000e+00> : vector<16x8xf32>
    %105 = tpu.matmul %100, %104, %cst_85 {dimension_numbers = #tpu.dot_dimension_numbers<[1], [0], [0], [1], [0, 0, 1, 1], [], []>} : vector<16x8xbf16>, vector<8x8xbf16>, vector<16x8xf32> -> vector<16x8xf32>
    %106 = arith.truncf %105 : vector<16x8xf32> to vector<16x8xbf16>
    %cst_86 = arith.constant dense<0.000000e+00> : vector<16x16xf32>
    %107 = tpu.matmul %106, %101, %cst_86 {dimension_numbers = #tpu.dot_dimension_numbers<[1], [0], [0], [1], [0, 0, 1, 1], [], []>} : vector<16x8xbf16>, vector<8x16xbf16>, vector<16x16xf32> -> vector<16x16xf32>
    %c0_87 = arith.constant 0 : index
    %c0_88 = arith.constant 0 : index
    %c0_89 = arith.constant 0 : index
    %108 = vector.load %arg6[%c0_87, %c0_88, %c0_89] : memref<1x8x8xf32, #tpu.memory_space<vmem>>, vector<1x8x8xf32>
    %109 = vector.shape_cast %108 : vector<1x8x8xf32> to vector<8x8xf32>
    %110 = arith.truncf %109 : vector<8x8xf32> to vector<8x8xbf16>
    %cst_90 = arith.constant dense<0.000000e+00> : vector<16x8xf32>
    %111 = tpu.matmul %100, %110, %cst_90 {dimension_numbers = #tpu.dot_dimension_numbers<[1], [0], [0], [1], [0, 0, 1, 1], [], []>} : vector<16x8xbf16>, vector<8x8xbf16>, vector<16x8xf32> -> vector<16x8xf32>
    %112 = arith.truncf %111 : vector<16x8xf32> to vector<16x8xbf16>
    %cst_91 = arith.constant dense<0.000000e+00> : vector<16x16xf32>
    %113 = tpu.matmul %112, %101, %cst_91 {dimension_numbers = #tpu.dot_dimension_numbers<[1], [0], [0], [1], [0, 0, 1, 1], [], []>} : vector<16x8xbf16>, vector<8x16xbf16>, vector<16x16xf32> -> vector<16x16xf32>
    %114 = arith.subf %4, %107 : vector<16x16xf32>
    %115 = arith.subf %6, %113 : vector<16x16xf32>
    %116 = math.absf %114 : vector<16x16xf32>
    %117 = math.absf %115 : vector<16x16xf32>
    %118 = arith.addf %116, %117 : vector<16x16xf32>
    %cst_92 = arith.constant 0.00999999977 : f32
    %119 = vector.broadcast %cst_92 : f32 to vector<16x16xf32>
    %120 = arith.addf %118, %119 : vector<16x16xf32>
    %121 = math.log %120 : vector<16x16xf32>
    %cst_93 = arith.constant 4.000000e-01 : f32
    %122 = vector.broadcast %cst_93 : f32 to vector<16x16xf32>
    %123 = arith.mulf %122, %121 : vector<16x16xf32>
    %124 = math.exp %123 : vector<16x16xf32>
    %c0_94 = arith.constant 0 : index
    %c0_95 = arith.constant 0 : index
    %125 = memref.load %arg28[%c0_94, %c0_95] : memref<1x1xf32, #tpu.memory_space<smem>>
    %126 = vector.shape_cast %124 : vector<16x16xf32> to vector<1x16x16xf32>
    %cst_96 = arith.constant dense<0.000000e+00> : vector<1xf32>
    %127 = vector.multi_reduction <add>, %126, %cst_96 [1, 2] : vector<1x16x16xf32> to vector<1xf32>
    %128 = vector.shape_cast %127 : vector<1xf32> to vector<1x1x1xf32>
    %129 = vector.extract %128[0, 0, 0] : f32 from vector<1x1x1xf32>
    %130 = arith.addf %125, %129 : f32
    %c0_97 = arith.constant 0 : index
    %c0_98 = arith.constant 0 : index
    %131 = memref.load %arg28[%c0_97, %c0_98] : memref<1x1xf32, #tpu.memory_space<smem>>
    memref.store %130, %arg28[%c0_97, %c0_98] : memref<1x1xf32, #tpu.memory_space<smem>>
    %c0_i32_99 = arith.constant 0 : i32
    %132 = arith.cmpi eq, %arg1, %c0_i32_99 : i32
    %133 = arith.extui %132 : i1 to i32
    %c0_i32_100 = arith.constant 0 : i32
    %134 = arith.cmpi ne, %133, %c0_i32_100 : i32
    scf.if %134 {
      %c0_101 = arith.constant 0 : index
      %c0_102 = arith.constant 0 : index
      %135 = vector.load %arg13[%c0_101, %c0_102] : memref<8x8xbf16, #tpu.memory_space<vmem>>, vector<8x8xbf16>
      %c0_103 = arith.constant 0 : index
      %c0_104 = arith.constant 0 : index
      %136 = vector.load %arg14[%c0_103, %c0_104] : memref<8x8xbf16, #tpu.memory_space<vmem>>, vector<8x8xbf16>
      %c0_105 = arith.constant 0 : index
      %c0_106 = arith.constant 0 : index
      %c0_107 = arith.constant 0 : index
      %137 = vector.load %arg23[%c0_105, %c0_106, %c0_107] : memref<1x8x8xf32, #tpu.memory_space<vmem>>, vector<1x8x8xf32>
      %138 = vector.shape_cast %137 : vector<1x8x8xf32> to vector<8x8xf32>
      %139 = arith.truncf %138 : vector<8x8xf32> to vector<8x8xbf16>
      %cst_108 = arith.constant dense<0.000000e+00> : vector<8x8xf32>
      %140 = tpu.matmul %135, %139, %cst_108 {dimension_numbers = #tpu.dot_dimension_numbers<[1], [0], [0], [1], [0, 0, 1, 1], [], []>} : vector<8x8xbf16>, vector<8x8xbf16>, vector<8x8xf32> -> vector<8x8xf32>
      %141 = arith.truncf %140 : vector<8x8xf32> to vector<8x8xbf16>
      %cst_109 = arith.constant dense<0.000000e+00> : vector<8x8xf32>
      %142 = tpu.matmul %141, %136, %cst_109 {dimension_numbers = #tpu.dot_dimension_numbers<[1], [0], [0], [1], [0, 0, 1, 1], [], []>} : vector<8x8xbf16>, vector<8x8xbf16>, vector<8x8xf32> -> vector<8x8xf32>
      %c0_110 = arith.constant 0 : index
      %c0_111 = arith.constant 0 : index
      %c0_112 = arith.constant 0 : index
      %143 = vector.load %arg23[%c0_110, %c0_111, %c0_112] : memref<1x8x8xf32, #tpu.memory_space<vmem>>, vector<1x8x8xf32>
      %144 = vector.shape_cast %143 : vector<1x8x8xf32> to vector<8x8xf32>
      %145 = vector.shape_cast %142 : vector<8x8xf32> to vector<1x8x8xf32>
      tpu.vector_store %arg23[%c0_110, %c0_111, %c0_112], %145 {strides = array<i32>} : memref<1x8x8xf32, #tpu.memory_space<vmem>>, vector<1x8x8xf32>,
      %c0_113 = arith.constant 0 : index
      %c0_114 = arith.constant 0 : index
      %146 = vector.load %arg19[%c0_113, %c0_114] : memref<4x4xbf16, #tpu.memory_space<vmem>>, vector<4x4xbf16>
      %c0_115 = arith.constant 0 : index
      %c0_116 = arith.constant 0 : index
      %147 = vector.load %arg20[%c0_115, %c0_116] : memref<4x4xbf16, #tpu.memory_space<vmem>>, vector<4x4xbf16>
      %c0_117 = arith.constant 0 : index
      %c0_118 = arith.constant 0 : index
      %c0_119 = arith.constant 0 : index
      %148 = vector.load %arg24[%c0_117, %c0_118, %c0_119] : memref<1x4x4xf32, #tpu.memory_space<vmem>>, vector<1x4x4xf32>
      %149 = vector.shape_cast %148 : vector<1x4x4xf32> to vector<4x4xf32>
      %150 = arith.truncf %149 : vector<4x4xf32> to vector<4x4xbf16>
      %cst_120 = arith.constant dense<0.000000e+00> : vector<4x4xf32>
      %151 = tpu.matmul %146, %150, %cst_120 {dimension_numbers = #tpu.dot_dimension_numbers<[1], [0], [0], [1], [0, 0, 1, 1], [], []>} : vector<4x4xbf16>, vector<4x4xbf16>, vector<4x4xf32> -> vector<4x4xf32>
      %152 = arith.truncf %151 : vector<4x4xf32> to vector<4x4xbf16>
      %cst_121 = arith.constant dense<0.000000e+00> : vector<4x4xf32>
      %153 = tpu.matmul %152, %147, %cst_121 {dimension_numbers = #tpu.dot_dimension_numbers<[1], [0], [0], [1], [0, 0, 1, 1], [], []>} : vector<4x4xbf16>, vector<4x4xbf16>, vector<4x4xf32> -> vector<4x4xf32>
      %c0_122 = arith.constant 0 : index
      %c0_123 = arith.constant 0 : index
      %c0_124 = arith.constant 0 : index
      %154 = vector.load %arg24[%c0_122, %c0_123, %c0_124] : memref<1x4x4xf32, #tpu.memory_space<vmem>>, vector<1x4x4xf32>
      %155 = vector.shape_cast %154 : vector<1x4x4xf32> to vector<4x4xf32>
      %156 = vector.shape_cast %153 : vector<4x4xf32> to vector<1x4x4xf32>
      tpu.vector_store %arg24[%c0_122, %c0_123, %c0_124], %156 {strides = array<i32>} : memref<1x4x4xf32, #tpu.memory_space<vmem>>, vector<1x4x4xf32>,
      %c0_125 = arith.constant 0 : index
      %c0_126 = arith.constant 0 : index
      %157 = memref.load %arg28[%c0_125, %c0_126] : memref<1x1xf32, #tpu.memory_space<smem>>
      %158 = vector.broadcast %157 : f32 to vector<1x1xf32>
      %c0_127 = arith.constant 0 : index
      %c0_128 = arith.constant 0 : index
      %c0_129 = arith.constant 0 : index
      %159 = vector.load %arg27[%c0_127, %c0_128, %c0_129] : memref<1x1x1xf32, #tpu.memory_space<vmem>>, vector<1x1x1xf32>
      %160 = vector.shape_cast %159 : vector<1x1x1xf32> to vector<1x1xf32>
      %161 = vector.shape_cast %158 : vector<1x1xf32> to vector<1x1x1xf32>
      tpu.vector_store %arg27[%c0_127, %c0_128, %c0_129], %161 {strides = array<i32>} : memref<1x1x1xf32, #tpu.memory_space<vmem>>, vector<1x1x1xf32>,
    } else {
    }
    return
  }
  func.func @transform_0(%arg0: i32, %arg1: i32) -> (i32, i32, i32) {
    %c1_i32 = arith.constant 1 : i32
    %0 = arith.muli %arg0, %c1_i32 : i32
    %1 = arith.addi %0, %arg1 : i32
    %c0_i32 = arith.constant 0 : i32
    %c0_i32_0 = arith.constant 0 : i32
    %c0_i32_1 = arith.constant 0 : i32
    return %1, %c0_i32, %c0_i32_0 : i32, i32, i32
  }
  func.func @transform_1(%arg0: i32, %arg1: i32) -> (i32, i32, i32) {
    %c1_i32 = arith.constant 1 : i32
    %0 = arith.muli %arg0, %c1_i32 : i32
    %1 = arith.addi %0, %arg1 : i32
    %c0_i32 = arith.constant 0 : i32
    %c0_i32_0 = arith.constant 0 : i32
    %c0_i32_1 = arith.constant 0 : i32
    return %1, %c0_i32, %c0_i32_0 : i32, i32, i32
  }
  func.func @transform_2(%arg0: i32, %arg1: i32) -> (i32, i32, i32) {
    %c1_i32 = arith.constant 1 : i32
    %0 = arith.muli %arg0, %c1_i32 : i32
    %1 = arith.addi %0, %arg1 : i32
    %c0_i32 = arith.constant 0 : i32
    %c0_i32_0 = arith.constant 0 : i32
    %c0_i32_1 = arith.constant 0 : i32
    return %1, %c0_i32, %c0_i32_0 : i32, i32, i32
  }
  func.func @transform_3(%arg0: i32, %arg1: i32) -> (i32, i32, i32) {
    %c1_i32 = arith.constant 1 : i32
    %0 = arith.muli %arg0, %c1_i32 : i32
    %1 = arith.addi %0, %arg1 : i32
    %c0_i32 = arith.constant 0 : i32
    %c0_i32_0 = arith.constant 0 : i32
    %c0_i32_1 = arith.constant 0 : i32
    return %1, %c0_i32, %c0_i32_0 : i32, i32, i32
  }
  func.func @transform_4(%arg0: i32, %arg1: i32) -> (i32, i32, i32) {
    %c1_i32 = arith.constant 1 : i32
    %0 = arith.muli %arg0, %c1_i32 : i32
    %1 = arith.addi %0, %arg1 : i32
    %c0_i32 = arith.constant 0 : i32
    %c0_i32_0 = arith.constant 0 : i32
    %c0_i32_1 = arith.constant 0 : i32
    return %1, %c0_i32, %c0_i32_0 : i32, i32, i32
  }
  func.func @transform_5(%arg0: i32, %arg1: i32) -> (i32, i32, i32) {
    %c1_i32 = arith.constant 1 : i32
    %0 = arith.muli %arg0, %c1_i32 : i32
    %1 = arith.addi %0, %arg1 : i32
    %c0_i32 = arith.constant 0 : i32
    %c0_i32_0 = arith.constant 0 : i32
    %c0_i32_1 = arith.constant 0 : i32
    return %1, %c0_i32, %c0_i32_0 : i32, i32, i32
  }
  func.func @transform_6(%arg0: i32, %arg1: i32) -> (i32, i32, i32) {
    %c1_i32 = arith.constant 1 : i32
    %0 = arith.muli %arg0, %c1_i32 : i32
    %1 = arith.addi %0, %arg1 : i32
    %c0_i32 = arith.constant 0 : i32
    %c0_i32_0 = arith.constant 0 : i32
    %c0_i32_1 = arith.constant 0 : i32
    return %1, %c0_i32, %c0_i32_0 : i32, i32, i32
  }
  func.func @transform_7(%arg0: i32, %arg1: i32) -> (i32, i32) {
    %c0_i32 = arith.constant 0 : i32
    %c0_i32_0 = arith.constant 0 : i32
    %c0_i32_1 = arith.constant 0 : i32
    return %c0_i32, %c0_i32_0 : i32, i32
  }
  func.func @transform_8(%arg0: i32, %arg1: i32) -> (i32, i32) {
    %c0_i32 = arith.constant 0 : i32
    %c0_i32_0 = arith.constant 0 : i32
    %c0_i32_1 = arith.constant 0 : i32
    return %c0_i32, %c0_i32_0 : i32, i32
  }
  func.func @transform_9(%arg0: i32, %arg1: i32) -> (i32, i32) {
    %c0_i32 = arith.constant 0 : i32
    %c0_i32_0 = arith.constant 0 : i32
    %c0_i32_1 = arith.constant 0 : i32
    return %c0_i32, %c0_i32_0 : i32, i32
  }
  func.func @transform_10(%arg0: i32, %arg1: i32) -> (i32, i32) {
    %c0_i32 = arith.constant 0 : i32
    %c0_i32_0 = arith.constant 0 : i32
    %c0_i32_1 = arith.constant 0 : i32
    return %c0_i32, %c0_i32_0 : i32, i32
  }
  func.func @transform_11(%arg0: i32, %arg1: i32) -> (i32, i32) {
    %c0_i32 = arith.constant 0 : i32
    %c0_i32_0 = arith.constant 0 : i32
    %c0_i32_1 = arith.constant 0 : i32
    return %c0_i32, %c0_i32_0 : i32, i32
  }
  func.func @transform_12(%arg0: i32, %arg1: i32) -> (i32, i32) {
    %c0_i32 = arith.constant 0 : i32
    %c0_i32_0 = arith.constant 0 : i32
    %c0_i32_1 = arith.constant 0 : i32
    return %c0_i32, %c0_i32_0 : i32, i32
  }
  func.func @transform_13(%arg0: i32, %arg1: i32) -> (i32, i32) {
    %c0_i32 = arith.constant 0 : i32
    %c0_i32_0 = arith.constant 0 : i32
    %c0_i32_1 = arith.constant 0 : i32
    return %c0_i32, %c0_i32_0 : i32, i32
  }
  func.func @transform_14(%arg0: i32, %arg1: i32) -> (i32, i32) {
    %c0_i32 = arith.constant 0 : i32
    %c0_i32_0 = arith.constant 0 : i32
    %c0_i32_1 = arith.constant 0 : i32
    return %c0_i32, %c0_i32_0 : i32, i32
  }
  func.func @transform_15(%arg0: i32, %arg1: i32) -> (i32, i32) {
    %c0_i32 = arith.constant 0 : i32
    %c0_i32_0 = arith.constant 0 : i32
    %c0_i32_1 = arith.constant 0 : i32
    return %c0_i32, %c0_i32_0 : i32, i32
  }
  func.func @transform_16(%arg0: i32, %arg1: i32) -> (i32, i32) {
    %c0_i32 = arith.constant 0 : i32
    %c0_i32_0 = arith.constant 0 : i32
    %c0_i32_1 = arith.constant 0 : i32
    return %c0_i32, %c0_i32_0 : i32, i32
  }
  func.func @transform_17(%arg0: i32, %arg1: i32) -> (i32, i32) {
    %c0_i32 = arith.constant 0 : i32
    %c0_i32_0 = arith.constant 0 : i32
    %c0_i32_1 = arith.constant 0 : i32
    return %c0_i32, %c0_i32_0 : i32, i32
  }
  func.func @transform_18(%arg0: i32, %arg1: i32) -> (i32, i32) {
    %c0_i32 = arith.constant 0 : i32
    %c0_i32_0 = arith.constant 0 : i32
    %c0_i32_1 = arith.constant 0 : i32
    return %c0_i32, %c0_i32_0 : i32, i32
  }
  func.func @transform_19(%arg0: i32, %arg1: i32) -> (i32, i32) {
    %c0_i32 = arith.constant 0 : i32
    %c0_i32_0 = arith.constant 0 : i32
    %c0_i32_1 = arith.constant 0 : i32
    return %c0_i32, %c0_i32_0 : i32, i32
  }
  func.func @transform_20(%arg0: i32, %arg1: i32) -> (i32, i32) {
    %c0_i32 = arith.constant 0 : i32
    %c0_i32_0 = arith.constant 0 : i32
    %c0_i32_1 = arith.constant 0 : i32
    return %c0_i32, %c0_i32_0 : i32, i32
  }
  func.func @transform_21(%arg0: i32, %arg1: i32) -> (i32, i32, i32) {
    %c0_i32 = arith.constant 0 : i32
    %c0_i32_0 = arith.constant 0 : i32
    %c0_i32_1 = arith.constant 0 : i32
    return %arg0, %c0_i32, %c0_i32_0 : i32, i32, i32
  }
  func.func @transform_22(%arg0: i32, %arg1: i32) -> (i32, i32, i32) {
    %c0_i32 = arith.constant 0 : i32
    %c0_i32_0 = arith.constant 0 : i32
    %c0_i32_1 = arith.constant 0 : i32
    return %arg0, %c0_i32, %c0_i32_0 : i32, i32, i32
  }
  func.func @transform_23(%arg0: i32, %arg1: i32) -> (i32, i32, i32) {
    %c0_i32 = arith.constant 0 : i32
    %c0_i32_0 = arith.constant 0 : i32
    %c0_i32_1 = arith.constant 0 : i32
    return %arg0, %c0_i32, %c0_i32_0 : i32, i32, i32
  }
  func.func @transform_24(%arg0: i32, %arg1: i32) -> (i32, i32, i32) {
    %c0_i32 = arith.constant 0 : i32
    %c0_i32_0 = arith.constant 0 : i32
    %c0_i32_1 = arith.constant 0 : i32
    return %arg0, %c0_i32, %c0_i32_0 : i32, i32, i32
  }
  func.func @transform_25(%arg0: i32, %arg1: i32) -> (i32, i32, i32) {
    %c0_i32 = arith.constant 0 : i32
    %c0_i32_0 = arith.constant 0 : i32
    %c0_i32_1 = arith.constant 0 : i32
    return %arg0, %c0_i32, %c0_i32_0 : i32, i32, i32
  }
}

</mosaic_0001>

<llo_original>
// kernel: tpu_custom_call.1
$region0: #{tpu_custom_call.1}
  #allocation0 [shape = 'u32[]', space=smem, size = 0x4, offset = 0x4, fixed_abs, tag = 'smem constant byte address 0x4 - core index']
  #allocation1 [shape = 'u32[144,128]{1,0:T(1,128)}', space=vmem, size = 0x12000, scoped, tag = 'internal scratch']
  #allocation2 [shape = 'f32[1,1]{1,0:T(1,128)}', space=smem, size = 0x200, scoped, tag = 'scratch operand']
  %s0 = inlined_call_operand.vmem [shape: f32[2,16,16], index: 0, kind: input, shape index: {}]
  %s1 = inlined_call_operand.hbm [shape: f32[2,16,16], index: 1, kind: input, shape index: {}]
  %s2 = inlined_call_operand.hbm [shape: f32[2,16,16], index: 2, kind: input, shape index: {}]
  %s3 = inlined_call_operand.vmem [shape: f32[2,8,8], index: 3, kind: input, shape index: {}]
  %s4 = inlined_call_operand.vmem [shape: f32[2,8,8], index: 4, kind: input, shape index: {}]
  %s5 = inlined_call_operand.vmem [shape: f32[2,4,4], index: 5, kind: input, shape index: {}]
  %s6 = inlined_call_operand.hbm [shape: f32[2,4,4], index: 6, kind: input, shape index: {}]
  %s7 = inlined_call_operand.hbm [shape: bf16[8,16], index: 7, kind: input, shape index: {}]
  %s8 = inlined_call_operand.vmem [shape: bf16[16,8], index: 8, kind: input, shape index: {}]
  %s9 = inlined_call_operand.vmem [shape: bf16[8,16], index: 9, kind: input, shape index: {}]
  %s10 = inlined_call_operand.vmem [shape: bf16[16,8], index: 10, kind: input, shape index: {}]
  %s11 = inlined_call_operand.vmem [shape: bf16[8,8], index: 11, kind: input, shape index: {}]
  %s12 = inlined_call_operand.vmem [shape: bf16[8,8], index: 12, kind: input, shape index: {}]
  %s13 = inlined_call_operand.vmem [shape: bf16[4,16], index: 13, kind: input, shape index: {}]
  %s14 = inlined_call_operand.vmem [shape: bf16[16,4], index: 14, kind: input, shape index: {}]
  %s15 = inlined_call_operand.vmem [shape: bf16[4,16], index: 15, kind: input, shape index: {}]
  %s16 = inlined_call_operand.vmem [shape: bf16[16,4], index: 16, kind: input, shape index: {}]
  %s17 = inlined_call_operand.vmem [shape: bf16[4,4], index: 17, kind: input, shape index: {}]
  %s18 = inlined_call_operand.vmem [shape: bf16[4,4], index: 18, kind: input, shape index: {}]
  %s19 = inlined_call_operand.vmem [shape: bf16[16,8], index: 19, kind: input, shape index: {}]
  %s20 = inlined_call_operand.vmem [shape: bf16[8,16], index: 20, kind: input, shape index: {}]
  %s21 = inlined_call_operand.hbm [shape: f32[2,8,8], index: 21, kind: output, shape index: {0}]
  %s22 = inlined_call_operand.hbm [shape: f32[2,4,4], index: 22, kind: output, shape index: {1}]
  %s23 = inlined_call_operand.hbm [shape: f32[2,8,8], index: 23, kind: output, shape index: {2}]
  %s24 = inlined_call_operand.hbm [shape: f32[2,4,4], index: 24, kind: output, shape index: {3}]
  %s25 = inlined_call_operand.vmem [shape: f32[2,1,1], index: 25, kind: output, shape index: {4}]
  %26 = xla_tuple %s21, %s22, %s23, %s24, %s25
  %s27 = sld [smem:[#allocation0]]
  $region173: #{tpu_custom_call.1} parent=0
    _
  %s29 = ssub.s32 1, %s27
  %s30 = scalar_select 0, %s29, %s27
  $region1: #{tpu_custom_call.1} parent=0
    #allocation3 [shape = 'u8[16384]{0}', space=vmem, size = 0x4000, scoped, tag = 'input window, operand 1']
    #allocation4 [shape = 's32[2]{0}', space=sflag, size = 0x8, scoped, tag = 'scoped memory for tpu_custom_call.1']
    #allocation5 [shape = 's32[2]{0}', space=sflag, size = 0x8, scoped, tag = 'scoped memory for tpu_custom_call.1']
    #allocation6 [shape = 'u8[16384]{0}', space=vmem, size = 0x4000, scoped, tag = 'input window, operand 2']
    #allocation7 [shape = 's32[2]{0}', space=sflag, size = 0x8, scoped, tag = 'scoped memory for tpu_custom_call.1']
    #allocation8 [shape = 'u8[4096]{0}', space=vmem, size = 0x1000, scoped, tag = 'input window, operand 6']
    #allocation9 [shape = 'u8[2048]{0}', space=vmem, size = 0x800, scoped, tag = 'input window, operand 7, single buffered']
    #allocation10 [shape = 's32[1]{0}', space=sflag, size = 0x4, scoped, tag = 'scoped memory for tpu_custom_call.1']
    #allocation11 [shape = 'u8[8192]{0}', space=vmem, size = 0x2000, scoped, tag = 'output window, operand 0']
    #allocation12 [shape = 'u8[4096]{0}', space=vmem, size = 0x1000, scoped, tag = 'output window, operand 1']
    #allocation13 [shape = 's32[2]{0}', space=sflag, size = 0x8, scoped, tag = 'scoped memory for tpu_custom_call.1']
    #allocation14 [shape = 'u8[8192]{0}', space=vmem, size = 0x2000, scoped, tag = 'output window, operand 2']
    #allocation15 [shape = 'u8[4096]{0}', space=vmem, size = 0x1000, scoped, tag = 'output window, operand 3']
    #allocation16 [shape = 's32[2]{0}', space=sflag, size = 0x8, scoped, tag = 'scoped memory for tpu_custom_call.1']
    %31 = vsyncpa [#allocation4], 0
    %s32 = scalar_lea.sflag [#allocation4], 1
    %33 = vsyncpa %s32, 0
    %34 = vsyncpa [#allocation7], 0
    %s35 = scalar_lea.sflag [#allocation7], 1
    %36 = vsyncpa %s35, 0
    %37 = vsyncpa [#allocation10], 0
    %38 = vsyncpa [#allocation5], 0
    %s39 = scalar_lea.sflag [#allocation5], 1
    %40 = vsyncpa %s39, 0
    %41 = vsyncpa [#allocation13], 0
    %s42 = scalar_lea.sflag [#allocation13], 1
    %43 = vsyncpa %s42, 0
    %44 = vsyncpa [#allocation16], 0
    %s45 = scalar_lea.sflag [#allocation16], 1
    %46 = vsyncpa %s45, 0
    loop: start=0, step=1, limit=4
    $region2: #{tpu_custom_call.1} parent=1 // loop_pre_header
      _
    $region3: #{tpu_custom_call.1} parent=1 // loop_header
      %s48 = sphi 0, %s52
      %p49 = scmp.ge.s32.totalorder %s48, 4
      %s55 = sphi 0, %s67
      %s56 = sphi 0, %s63
      %s57 = sphi 0, %s55
      %s58 = sphi 0, %s56
      %s59 = sphi 0, %s57
      %s60 = sphi 0, %s58
      %s72 = sphi 0, %s74
      %s75 = sphi 0, %s72
      %s76 = sphi 0, %s75
      %s92 = sphi 0, %s76
      %s100 = sphi 0, %s102
      %s103 = sphi 0, %s100
      %s104 = sphi 0, %s103
      %s120 = sphi 0, %s104
      %s128 = sphi 0, %s130
      %s131 = sphi 0, %s128
      %s132 = sphi 0, %s131
      %s148 = sphi 0, %s132
      %s156 = sphi 0, %s158
      %s159 = sphi 0, %s156
      %s160 = sphi 0, %s159
      %s176 = sphi 0, %s160
      %s184 = sphi 0, %s186
      %s187 = sphi 0, %s184
      %s188 = sphi 0, %s187
      %s204 = sphi 0, %s188
      %s212 = sphi 0, %s214
      %s215 = sphi 0, %s212
      %s216 = sphi 0, %s215
      %s232 = sphi 0, %s216
      %s240 = sphi 0, %s242
      %s243 = sphi 0, %s240
      %s244 = sphi 0, %s243
      %s260 = sphi 0, %s244
      %s264 = sphi 0, %s264
      %s266 = sphi 0, %s264
      %s267 = sphi 0, %s266
      %s281 = sphi 0, %s267
      %s285 = sphi 0, %s285
      %s287 = sphi 0, %s285
      %s288 = sphi 0, %s287
      %s302 = sphi 0, %s288
      %s306 = sphi 0, %s306
      %s308 = sphi 0, %s306
      %s309 = sphi 0, %s308
      %s323 = sphi 0, %s309
      %s327 = sphi 0, %s327
      %s329 = sphi 0, %s327
      %s330 = sphi 0, %s329
      %s344 = sphi 0, %s330
      %s348 = sphi 0, %s348
      %s350 = sphi 0, %s348
      %s351 = sphi 0, %s350
      %s365 = sphi 0, %s351
      %s369 = sphi 0, %s369
      %s371 = sphi 0, %s369
      %s372 = sphi 0, %s371
      %s386 = sphi 0, %s372
      %s390 = sphi 0, %s390
      %s392 = sphi 0, %s390
      %s393 = sphi 0, %s392
      %s407 = sphi 0, %s393
      %s411 = sphi 0, %s411
      %s413 = sphi 0, %s411
      %s414 = sphi 0, %s413
      %s428 = sphi 0, %s414
      %s432 = sphi 0, %s432
      %s434 = sphi 0, %s432
      %s435 = sphi 0, %s434
      %s449 = sphi 0, %s435
      %s453 = sphi 0, %s453
      %s455 = sphi 0, %s453
      %s456 = sphi 0, %s455
      %s470 = sphi 0, %s456
      %s474 = sphi 0, %s474
      %s476 = sphi 0, %s474
      %s477 = sphi 0, %s476
      %s491 = sphi 0, %s477
      %s495 = sphi 0, %s495
      %s497 = sphi 0, %s495
      %s498 = sphi 0, %s497
      %s512 = sphi 0, %s498
      %s516 = sphi 0, %s516
      %s518 = sphi 0, %s516
      %s519 = sphi 0, %s518
      %s533 = sphi 0, %s519
      %s537 = sphi 0, %s537
      %s539 = sphi 0, %s537
      %s540 = sphi 0, %s539
      %s554 = sphi 0, %s540
      %s560 = sphi 0, %s562
      %s563 = sphi 0, %s560
      %s564 = sphi 0, %s563
      %s580 = sphi 0, %s564
      %s586 = sphi 0, %s588
      %s589 = sphi 0, %s586
      %s590 = sphi 0, %s589
      %s606 = sphi 0, %s590
      %s612 = sphi 0, %s614
      %s615 = sphi 0, %s612
      %s616 = sphi 0, %s615
      %s632 = sphi 0, %s616
      %s638 = sphi 0, %s640
      %s641 = sphi 0, %s638
      %s642 = sphi 0, %s641
      %s658 = sphi 0, %s642
      %s664 = sphi 0, %s666
      %s667 = sphi 0, %s664
      %s668 = sphi 0, %s667
      %s684 = sphi 0, %s668
    $region4: #{tpu_custom_call.1} parent=1 // loop_header_branch
      %51 = sbr.rel (%p49) target = $region8
    $region5: #{tpu_custom_call.1} parent=1 // loop_body
      %s53 = ssub.s32 %s48, 1
      %s54 = ssub.s32 %s48, 2
      %s61 = sadd.s32 1, %s56
      %p62 = scmp.ge.s32.totalorder %s61, 1
      %s63 = scalar_select %p62, 0, %s61
      %s64 = sadd.s32 1, %s55
      %s65 = scalar_select %p62, %s64, %s55
      %p66 = scmp.ge.s32.totalorder %s65, 2
      %s67 = scalar_select %p66, 0, %s65
      %s68 = sadd.s32 %s55, %s56
      %s69 = sadd.s32 %s67, %s63
      %s70 = ssub.s32 %s68, %s69
      %p71 = scmp.eq.s32.totalorder %s70, 0
      %s73 = sadd.s32 %s72, 1
      %s74 = scalar_select %p71, %s72, %s73
      %p77 = pneg %p71
      %p78 = scmp.eq.s32.totalorder %s48, 1
      %p79 = por %p77, %p78
      %p80 = scmp.ne.s32.totalorder %s72, %s75
      %p81 = scmp.eq.s32.totalorder %s48, 0
      %p82 = por %p80, %p81
      %p83 = scmp.ne.s32.totalorder %s72, %s75
      %p84 = scmp.eq.s32.totalorder %s53, 1
      %p85 = por %p83, %p84
      %p86 = scmp.ne.s32.totalorder %s75, %s76
      %p87 = scmp.eq.s32.totalorder %s53, 0
      %p88 = por %p86, %p87
      %p89 = scmp.ne.s32.totalorder %s75, %s76
      %p90 = scmp.eq.s32.totalorder %s54, 1
      %p91 = por %p89, %p90
      %p93 = scmp.ne.s32.totalorder %s76, %s92
      %p94 = scmp.eq.s32.totalorder %s54, 0
      %p95 = por %p93, %p94
      %s96 = sadd.s32 %s55, %s56
      %s97 = sadd.s32 %s67, %s63
      %s98 = ssub.s32 %s96, %s97
      %p99 = scmp.eq.s32.totalorder %s98, 0
      %s101 = sadd.s32 %s100, 1
      %s102 = scalar_select %p99, %s100, %s101
      %p105 = pneg %p99
      %p106 = scmp.eq.s32.totalorder %s48, 1
      %p107 = por %p105, %p106
      %p108 = scmp.ne.s32.totalorder %s100, %s103
      %p109 = scmp.eq.s32.totalorder %s48, 0
      %p110 = por %p108, %p109
      %p111 = scmp.ne.s32.totalorder %s100, %s103
      %p112 = scmp.eq.s32.totalorder %s53, 1
      %p113 = por %p111, %p112
      %p114 = scmp.ne.s32.totalorder %s103, %s104
      %p115 = scmp.eq.s32.totalorder %s53, 0
      %p116 = por %p114, %p115
      %p117 = scmp.ne.s32.totalorder %s103, %s104
      %p118 = scmp.eq.s32.totalorder %s54, 1
      %p119 = por %p117, %p118
      %p121 = scmp.ne.s32.totalorder %s104, %s120
      %p122 = scmp.eq.s32.totalorder %s54, 0
      %p123 = por %p121, %p122
      %s124 = sadd.s32 %s55, %s56
      %s125 = sadd.s32 %s67, %s63
      %s126 = ssub.s32 %s124, %s125
      %p127 = scmp.eq.s32.totalorder %s126, 0
      %s129 = sadd.s32 %s128, 1
      %s130 = scalar_select %p127, %s128, %s129
      %p133 = pneg %p127
      %p134 = scmp.eq.s32.totalorder %s48, 1
      %p135 = por %p133, %p134
      %p136 = scmp.ne.s32.totalorder %s128, %s131
      %p137 = scmp.eq.s32.totalorder %s48, 0
      %p138 = por %p136, %p137
      %p139 = scmp.ne.s32.totalorder %s128, %s131
      %p140 = scmp.eq.s32.totalorder %s53, 1
      %p141 = por %p139, %p140
      %p142 = scmp.ne.s32.totalorder %s131, %s132
      %p143 = scmp.eq.s32.totalorder %s53, 0
      %p144 = por %p142, %p143
      %p145 = scmp.ne.s32.totalorder %s131, %s132
      %p146 = scmp.eq.s32.totalorder %s54, 1
      %p147 = por %p145, %p146
      %p149 = scmp.ne.s32.totalorder %s132, %s148
      %p150 = scmp.eq.s32.totalorder %s54, 0
      %p151 = por %p149, %p150
      %s152 = sadd.s32 %s55, %s56
      %s153 = sadd.s32 %s67, %s63
      %s154 = ssub.s32 %s152, %s153
      %p155 = scmp.eq.s32.totalorder %s154, 0
      %s157 = sadd.s32 %s156, 1
      %s158 = scalar_select %p155, %s156, %s157
      %p161 = pneg %p155
      %p162 = scmp.eq.s32.totalorder %s48, 1
      %p163 = por %p161, %p162
      %p164 = scmp.ne.s32.totalorder %s156, %s159
      %p165 = scmp.eq.s32.totalorder %s48, 0
      %p166 = por %p164, %p165
      %p167 = scmp.ne.s32.totalorder %s156, %s159
      %p168 = scmp.eq.s32.totalorder %s53, 1
      %p169 = por %p167, %p168
      %p170 = scmp.ne.s32.totalorder %s159, %s160
      %p171 = scmp.eq.s32.totalorder %s53, 0
      %p172 = por %p170, %p171
      %p173 = scmp.ne.s32.totalorder %s159, %s160
      %p174 = scmp.eq.s32.totalorder %s54, 1
      %p175 = por %p173, %p174
      %p177 = scmp.ne.s32.totalorder %s160, %s176
      %p178 = scmp.eq.s32.totalorder %s54, 0
      %p179 = por %p177, %p178
      %s180 = sadd.s32 %s55, %s56
      %s181 = sadd.s32 %s67, %s63
      %s182 = ssub.s32 %s180, %s181
      %p183 = scmp.eq.s32.totalorder %s182, 0
      %s185 = sadd.s32 %s184, 1
      %s186 = scalar_select %p183, %s184, %s185
      %p189 = pneg %p183
      %p190 = scmp.eq.s32.totalorder %s48, 1
      %p191 = por %p189, %p190
      %p192 = scmp.ne.s32.totalorder %s184, %s187
      %p193 = scmp.eq.s32.totalorder %s48, 0
      %p194 = por %p192, %p193
      %p195 = scmp.ne.s32.totalorder %s184, %s187
      %p196 = scmp.eq.s32.totalorder %s53, 1
      %p197 = por %p195, %p196
      %p198 = scmp.ne.s32.totalorder %s187, %s188
      %p199 = scmp.eq.s32.totalorder %s53, 0
      %p200 = por %p198, %p199
      %p201 = scmp.ne.s32.totalorder %s187, %s188
      %p202 = scmp.eq.s32.totalorder %s54, 1
      %p203 = por %p201, %p202
      %p205 = scmp.ne.s32.totalorder %s188, %s204
      %p206 = scmp.eq.s32.totalorder %s54, 0
      %p207 = por %p205, %p206
      %s208 = sadd.s32 %s55, %s56
      %s209 = sadd.s32 %s67, %s63
      %s210 = ssub.s32 %s208, %s209
      %p211 = scmp.eq.s32.totalorder %s210, 0
      %s213 = sadd.s32 %s212, 1
      %s214 = scalar_select %p211, %s212, %s213
      %p217 = pneg %p211
      %p218 = scmp.eq.s32.totalorder %s48, 1
      %p219 = por %p217, %p218
      %p220 = scmp.ne.s32.totalorder %s212, %s215
      %p221 = scmp.eq.s32.totalorder %s48, 0
      %p222 = por %p220, %p221
      %p223 = scmp.ne.s32.totalorder %s212, %s215
      %p224 = scmp.eq.s32.totalorder %s53, 1
      %p225 = por %p223, %p224
      %p226 = scmp.ne.s32.totalorder %s215, %s216
      %p227 = scmp.eq.s32.totalorder %s53, 0
      %p228 = por %p226, %p227
      %p229 = scmp.ne.s32.totalorder %s215, %s216
      %p230 = scmp.eq.s32.totalorder %s54, 1
      %p231 = por %p229, %p230
      %p233 = scmp.ne.s32.totalorder %s216, %s232
      %p234 = scmp.eq.s32.totalorder %s54, 0
      %p235 = por %p233, %p234
      %s236 = sadd.s32 %s55, %s56
      %s237 = sadd.s32 %s67, %s63
      %s238 = ssub.s32 %s236, %s237
      %p239 = scmp.eq.s32.totalorder %s238, 0
      %s241 = sadd.s32 %s240, 1
      %s242 = scalar_select %p239, %s240, %s241
      %p245 = pneg %p239
      %p246 = scmp.eq.s32.totalorder %s48, 1
      %p247 = por %p245, %p246
      %p248 = scmp.ne.s32.totalorder %s240, %s243
      %p249 = scmp.eq.s32.totalorder %s48, 0
      %p250 = por %p248, %p249
      %p251 = scmp.ne.s32.totalorder %s240, %s243
      %p252 = scmp.eq.s32.totalorder %s53, 1
      %p253 = por %p251, %p252
      %p254 = scmp.ne.s32.totalorder %s243, %s244
      %p255 = scmp.eq.s32.totalorder %s53, 0
      %p256 = por %p254, %p255
      %p257 = scmp.ne.s32.totalorder %s243, %s244
      %p258 = scmp.eq.s32.totalorder %s54, 1
      %p259 = por %p257, %p258
      %p261 = scmp.ne.s32.totalorder %s244, %s260
      %p262 = scmp.eq.s32.totalorder %s54, 0
      %p263 = por %p261, %p262
      %s265 = sadd.s32 %s264, 1
      %p268 = scmp.eq.s32.totalorder %s48, 1
      %p269 = scmp.ne.s32.totalorder %s264, %s266
      %p270 = scmp.eq.s32.totalorder %s48, 0
      %p271 = por %p269, %p270
      %p272 = scmp.ne.s32.totalorder %s264, %s266
      %p273 = scmp.eq.s32.totalorder %s53, 1
      %p274 = por %p272, %p273
      %p275 = scmp.ne.s32.totalorder %s266, %s267
      %p276 = scmp.eq.s32.totalorder %s53, 0
      %p277 = por %p275, %p276
      %p278 = scmp.ne.s32.totalorder %s266, %s267
      %p279 = scmp.eq.s32.totalorder %s54, 1
      %p280 = por %p278, %p279
      %p282 = scmp.ne.s32.totalorder %s267, %s281
      %p283 = scmp.eq.s32.totalorder %s54, 0
      %p284 = por %p282, %p283
      %s286 = sadd.s32 %s285, 1
      %p289 = scmp.eq.s32.totalorder %s48, 1
      %p290 = scmp.ne.s32.totalorder %s285, %s287
      %p291 = scmp.eq.s32.totalorder %s48, 0
      %p292 = por %p290, %p291
      %p293 = scmp.ne.s32.totalorder %s285, %s287
      %p294 = scmp.eq.s32.totalorder %s53, 1
      %p295 = por %p293, %p294
      %p296 = scmp.ne.s32.totalorder %s287, %s288
      %p297 = scmp.eq.s32.totalorder %s53, 0
      %p298 = por %p296, %p297
      %p299 = scmp.ne.s32.totalorder %s287, %s288
      %p300 = scmp.eq.s32.totalorder %s54, 1
      %p301 = por %p299, %p300
      %p303 = scmp.ne.s32.totalorder %s288, %s302
      %p304 = scmp.eq.s32.totalorder %s54, 0
      %p305 = por %p303, %p304
      %s307 = sadd.s32 %s306, 1
      %p310 = scmp.eq.s32.totalorder %s48, 1
      %p311 = scmp.ne.s32.totalorder %s306, %s308
      %p312 = scmp.eq.s32.totalorder %s48, 0
      %p313 = por %p311, %p312
      %p314 = scmp.ne.s32.totalorder %s306, %s308
      %p315 = scmp.eq.s32.totalorder %s53, 1
      %p316 = por %p314, %p315
      %p317 = scmp.ne.s32.totalorder %s308, %s309
      %p318 = scmp.eq.s32.totalorder %s53, 0
      %p319 = por %p317, %p318
      %p320 = scmp.ne.s32.totalorder %s308, %s309
      %p321 = scmp.eq.s32.totalorder %s54, 1
      %p322 = por %p320, %p321
      %p324 = scmp.ne.s32.totalorder %s309, %s323
      %p325 = scmp.eq.s32.totalorder %s54, 0
      %p326 = por %p324, %p325
      %s328 = sadd.s32 %s327, 1
      %p331 = scmp.eq.s32.totalorder %s48, 1
      %p332 = scmp.ne.s32.totalorder %s327, %s329
      %p333 = scmp.eq.s32.totalorder %s48, 0
      %p334 = por %p332, %p333
      %p335 = scmp.ne.s32.totalorder %s327, %s329
      %p336 = scmp.eq.s32.totalorder %s53, 1
      %p337 = por %p335, %p336
      %p338 = scmp.ne.s32.totalorder %s329, %s330
      %p339 = scmp.eq.s32.totalorder %s53, 0
      %p340 = por %p338, %p339
      %p341 = scmp.ne.s32.totalorder %s329, %s330
      %p342 = scmp.eq.s32.totalorder %s54, 1
      %p343 = por %p341, %p342
      %p345 = scmp.ne.s32.totalorder %s330, %s344
      %p346 = scmp.eq.s32.totalorder %s54, 0
      %p347 = por %p345, %p346
      %s349 = sadd.s32 %s348, 1
      %p352 = scmp.eq.s32.totalorder %s48, 1
      %p353 = scmp.ne.s32.totalorder %s348, %s350
      %p354 = scmp.eq.s32.totalorder %s48, 0
      %p355 = por %p353, %p354
      %p356 = scmp.ne.s32.totalorder %s348, %s350
      %p357 = scmp.eq.s32.totalorder %s53, 1
      %p358 = por %p356, %p357
      %p359 = scmp.ne.s32.totalorder %s350, %s351
      %p360 = scmp.eq.s32.totalorder %s53, 0
      %p361 = por %p359, %p360
      %p362 = scmp.ne.s32.totalorder %s350, %s351
      %p363 = scmp.eq.s32.totalorder %s54, 1
      %p364 = por %p362, %p363
      %p366 = scmp.ne.s32.totalorder %s351, %s365
      %p367 = scmp.eq.s32.totalorder %s54, 0
      %p368 = por %p366, %p367
      %s370 = sadd.s32 %s369, 1
      %p373 = scmp.eq.s32.totalorder %s48, 1
      %p374 = scmp.ne.s32.totalorder %s369, %s371
      %p375 = scmp.eq.s32.totalorder %s48, 0
      %p376 = por %p374, %p375
      %p377 = scmp.ne.s32.totalorder %s369, %s371
      %p378 = scmp.eq.s32.totalorder %s53, 1
      %p379 = por %p377, %p378
      %p380 = scmp.ne.s32.totalorder %s371, %s372
      %p381 = scmp.eq.s32.totalorder %s53, 0
      %p382 = por %p380, %p381
      %p383 = scmp.ne.s32.totalorder %s371, %s372
      %p384 = scmp.eq.s32.totalorder %s54, 1
      %p385 = por %p383, %p384
      %p387 = scmp.ne.s32.totalorder %s372, %s386
      %p388 = scmp.eq.s32.totalorder %s54, 0
      %p389 = por %p387, %p388
      %s391 = sadd.s32 %s390, 1
      %p394 = scmp.eq.s32.totalorder %s48, 1
      %p395 = scmp.ne.s32.totalorder %s390, %s392
      %p396 = scmp.eq.s32.totalorder %s48, 0
      %p397 = por %p395, %p396
      %p398 = scmp.ne.s32.totalorder %s390, %s392
      %p399 = scmp.eq.s32.totalorder %s53, 1
      %p400 = por %p398, %p399
      %p401 = scmp.ne.s32.totalorder %s392, %s393
      %p402 = scmp.eq.s32.totalorder %s53, 0
      %p403 = por %p401, %p402
      %p404 = scmp.ne.s32.totalorder %s392, %s393
      %p405 = scmp.eq.s32.totalorder %s54, 1
      %p406 = por %p404, %p405
      %p408 = scmp.ne.s32.totalorder %s393, %s407
      %p409 = scmp.eq.s32.totalorder %s54, 0
      %p410 = por %p408, %p409
      %s412 = sadd.s32 %s411, 1
      %p415 = scmp.eq.s32.totalorder %s48, 1
      %p416 = scmp.ne.s32.totalorder %s411, %s413
      %p417 = scmp.eq.s32.totalorder %s48, 0
      %p418 = por %p416, %p417
      %p419 = scmp.ne.s32.totalorder %s411, %s413
      %p420 = scmp.eq.s32.totalorder %s53, 1
      %p421 = por %p419, %p420
      %p422 = scmp.ne.s32.totalorder %s413, %s414
      %p423 = scmp.eq.s32.totalorder %s53, 0
      %p424 = por %p422, %p423
      %p425 = scmp.ne.s32.totalorder %s413, %s414
      %p426 = scmp.eq.s32.totalorder %s54, 1
      %p427 = por %p425, %p426
      %p429 = scmp.ne.s32.totalorder %s414, %s428
      %p430 = scmp.eq.s32.totalorder %s54, 0
      %p431 = por %p429, %p430
      %s433 = sadd.s32 %s432, 1
      %p436 = scmp.eq.s32.totalorder %s48, 1
      %p437 = scmp.ne.s32.totalorder %s432, %s434
      %p438 = scmp.eq.s32.totalorder %s48, 0
      %p439 = por %p437, %p438
      %p440 = scmp.ne.s32.totalorder %s432, %s434
      %p441 = scmp.eq.s32.totalorder %s53, 1
      %p442 = por %p440, %p441
      %p443 = scmp.ne.s32.totalorder %s434, %s435
      %p444 = scmp.eq.s32.totalorder %s53, 0
      %p445 = por %p443, %p444
      %p446 = scmp.ne.s32.totalorder %s434, %s435
      %p447 = scmp.eq.s32.totalorder %s54, 1
      %p448 = por %p446, %p447
      %p450 = scmp.ne.s32.totalorder %s435, %s449
      %p451 = scmp.eq.s32.totalorder %s54, 0
      %p452 = por %p450, %p451
      %s454 = sadd.s32 %s453, 1
      %p457 = scmp.eq.s32.totalorder %s48, 1
      %p458 = scmp.ne.s32.totalorder %s453, %s455
      %p459 = scmp.eq.s32.totalorder %s48, 0
      %p460 = por %p458, %p459
      %p461 = scmp.ne.s32.totalorder %s453, %s455
      %p462 = scmp.eq.s32.totalorder %s53, 1
      %p463 = por %p461, %p462
      %p464 = scmp.ne.s32.totalorder %s455, %s456
      %p465 = scmp.eq.s32.totalorder %s53, 0
      %p466 = por %p464, %p465
      %p467 = scmp.ne.s32.totalorder %s455, %s456
      %p468 = scmp.eq.s32.totalorder %s54, 1
      %p469 = por %p467, %p468
      %p471 = scmp.ne.s32.totalorder %s456, %s470
      %p472 = scmp.eq.s32.totalorder %s54, 0
      %p473 = por %p471, %p472
      %s475 = sadd.s32 %s474, 1
      %p478 = scmp.eq.s32.totalorder %s48, 1
      %p479 = scmp.ne.s32.totalorder %s474, %s476
      %p480 = scmp.eq.s32.totalorder %s48, 0
      %p481 = por %p479, %p480
      %p482 = scmp.ne.s32.totalorder %s474, %s476
      %p483 = scmp.eq.s32.totalorder %s53, 1
      %p484 = por %p482, %p483
      %p485 = scmp.ne.s32.totalorder %s476, %s477
      %p486 = scmp.eq.s32.totalorder %s53, 0
      %p487 = por %p485, %p486
      %p488 = scmp.ne.s32.totalorder %s476, %s477
      %p489 = scmp.eq.s32.totalorder %s54, 1
      %p490 = por %p488, %p489
      %p492 = scmp.ne.s32.totalorder %s477, %s491
      %p493 = scmp.eq.s32.totalorder %s54, 0
      %p494 = por %p492, %p493
      %s496 = sadd.s32 %s495, 1
      %p499 = scmp.eq.s32.totalorder %s48, 1
      %p500 = scmp.ne.s32.totalorder %s495, %s497
      %p501 = scmp.eq.s32.totalorder %s48, 0
      %p502 = por %p500, %p501
      %p503 = scmp.ne.s32.totalorder %s495, %s497
      %p504 = scmp.eq.s32.totalorder %s53, 1
      %p505 = por %p503, %p504
      %p506 = scmp.ne.s32.totalorder %s497, %s498
      %p507 = scmp.eq.s32.totalorder %s53, 0
      %p508 = por %p506, %p507
      %p509 = scmp.ne.s32.totalorder %s497, %s498
      %p510 = scmp.eq.s32.totalorder %s54, 1
      %p511 = por %p509, %p510
      %p513 = scmp.ne.s32.totalorder %s498, %s512
      %p514 = scmp.eq.s32.totalorder %s54, 0
      %p515 = por %p513, %p514
      %s517 = sadd.s32 %s516, 1
      %p520 = scmp.eq.s32.totalorder %s48, 1
      %p521 = scmp.ne.s32.totalorder %s516, %s518
      %p522 = scmp.eq.s32.totalorder %s48, 0
      %p523 = por %p521, %p522
      %p524 = scmp.ne.s32.totalorder %s516, %s518
      %p525 = scmp.eq.s32.totalorder %s53, 1
      %p526 = por %p524, %p525
      %p527 = scmp.ne.s32.totalorder %s518, %s519
      %p528 = scmp.eq.s32.totalorder %s53, 0
      %p529 = por %p527, %p528
      %p530 = scmp.ne.s32.totalorder %s518, %s519
      %p531 = scmp.eq.s32.totalorder %s54, 1
      %p532 = por %p530, %p531
      %p534 = scmp.ne.s32.totalorder %s519, %s533
      %p535 = scmp.eq.s32.totalorder %s54, 0
      %p536 = por %p534, %p535
      %s538 = sadd.s32 %s537, 1
      %p541 = scmp.eq.s32.totalorder %s48, 1
      %p542 = scmp.ne.s32.totalorder %s537, %s539
      %p543 = scmp.eq.s32.totalorder %s48, 0
      %p544 = por %p542, %p543
      %p545 = scmp.ne.s32.totalorder %s537, %s539
      %p546 = scmp.eq.s32.totalorder %s53, 1
      %p547 = por %p545, %p546
      %p548 = scmp.ne.s32.totalorder %s539, %s540
      %p549 = scmp.eq.s32.totalorder %s53, 0
      %p550 = por %p548, %p549
      %p551 = scmp.ne.s32.totalorder %s539, %s540
      %p552 = scmp.eq.s32.totalorder %s54, 1
      %p553 = por %p551, %p552
      %p555 = scmp.ne.s32.totalorder %s540, %s554
      %p556 = scmp.eq.s32.totalorder %s54, 0
      %p557 = por %p555, %p556
      %s558 = ssub.s32 %s55, %s67
      %p559 = scmp.eq.s32.totalorder %s558, 0
      %s561 = sadd.s32 %s560, 1
      %s562 = scalar_select %p559, %s560, %s561
      %p565 = pneg %p559
      %p566 = scmp.eq.s32.totalorder %s48, 1
      %p567 = por %p565, %p566
      %p568 = scmp.ne.s32.totalorder %s560, %s563
      %p569 = scmp.eq.s32.totalorder %s48, 0
      %p570 = por %p568, %p569
      %p571 = scmp.ne.s32.totalorder %s560, %s563
      %p572 = scmp.eq.s32.totalorder %s53, 1
      %p573 = por %p571, %p572
      %p574 = scmp.ne.s32.totalorder %s563, %s564
      %p575 = scmp.eq.s32.totalorder %s53, 0
      %p576 = por %p574, %p575
      %p577 = scmp.ne.s32.totalorder %s563, %s564
      %p578 = scmp.eq.s32.totalorder %s54, 1
      %p579 = por %p577, %p578
      %p581 = scmp.ne.s32.totalorder %s564, %s580
      %p582 = scmp.eq.s32.totalorder %s54, 0
      %p583 = por %p581, %p582
      %s584 = ssub.s32 %s55, %s67
      %p585 = scmp.eq.s32.totalorder %s584, 0
      %s587 = sadd.s32 %s586, 1
      %s588 = scalar_select %p585, %s586, %s587
      %p591 = pneg %p585
      %p592 = scmp.eq.s32.totalorder %s48, 1
      %p593 = por %p591, %p592
      %p594 = scmp.ne.s32.totalorder %s586, %s589
      %p595 = scmp.eq.s32.totalorder %s48, 0
      %p596 = por %p594, %p595
      %p597 = scmp.ne.s32.totalorder %s586, %s589
      %p598 = scmp.eq.s32.totalorder %s53, 1
      %p599 = por %p597, %p598
      %p600 = scmp.ne.s32.totalorder %s589, %s590
      %p601 = scmp.eq.s32.totalorder %s53, 0
      %p602 = por %p600, %p601
      %p603 = scmp.ne.s32.totalorder %s589, %s590
      %p604 = scmp.eq.s32.totalorder %s54, 1
      %p605 = por %p603, %p604
      %p607 = scmp.ne.s32.totalorder %s590, %s606
      %p608 = scmp.eq.s32.totalorder %s54, 0
      %p609 = por %p607, %p608
      %s610 = ssub.s32 %s55, %s67
      %p611 = scmp.eq.s32.totalorder %s610, 0
      %s613 = sadd.s32 %s612, 1
      %s614 = scalar_select %p611, %s612, %s613
      %p617 = pneg %p611
      %p618 = scmp.eq.s32.totalorder %s48, 1
      %p619 = por %p617, %p618
      %p620 = scmp.ne.s32.totalorder %s612, %s615
      %p621 = scmp.eq.s32.totalorder %s48, 0
      %p622 = por %p620, %p621
      %p623 = scmp.ne.s32.totalorder %s612, %s615
      %p624 = scmp.eq.s32.totalorder %s53, 1
      %p625 = por %p623, %p624
      %p626 = scmp.ne.s32.totalorder %s615, %s616
      %p627 = scmp.eq.s32.totalorder %s53, 0
      %p628 = por %p626, %p627
      %p629 = scmp.ne.s32.totalorder %s615, %s616
      %p630 = scmp.eq.s32.totalorder %s54, 1
      %p631 = por %p629, %p630
      %p633 = scmp.ne.s32.totalorder %s616, %s632
      %p634 = scmp.eq.s32.totalorder %s54, 0
      %p635 = por %p633, %p634
      %s636 = ssub.s32 %s55, %s67
      %p637 = scmp.eq.s32.totalorder %s636, 0
      %s639 = sadd.s32 %s638, 1
      %s640 = scalar_select %p637, %s638, %s639
      %p643 = pneg %p637
      %p644 = scmp.eq.s32.totalorder %s48, 1
      %p645 = por %p643, %p644
      %p646 = scmp.ne.s32.totalorder %s638, %s641
      %p647 = scmp.eq.s32.totalorder %s48, 0
      %p648 = por %p646, %p647
      %p649 = scmp.ne.s32.totalorder %s638, %s641
      %p650 = scmp.eq.s32.totalorder %s53, 1
      %p651 = por %p649, %p650
      %p652 = scmp.ne.s32.totalorder %s641, %s642
      %p653 = scmp.eq.s32.totalorder %s53, 0
      %p654 = por %p652, %p653
      %p655 = scmp.ne.s32.totalorder %s641, %s642
      %p656 = scmp.eq.s32.totalorder %s54, 1
      %p657 = por %p655, %p656
      %p659 = scmp.ne.s32.totalorder %s642, %s658
      %p660 = scmp.eq.s32.totalorder %s54, 0
      %p661 = por %p659, %p660
      %s662 = ssub.s32 %s55, %s67
      %p663 = scmp.eq.s32.totalorder %s662, 0
      %s665 = sadd.s32 %s664, 1
      %s666 = scalar_select %p663, %s664, %s665
      %p669 = pneg %p663
      %p670 = scmp.eq.s32.totalorder %s48, 1
      %p671 = por %p669, %p670
      %p672 = scmp.ne.s32.totalorder %s664, %s667
      %p673 = scmp.eq.s32.totalorder %s48, 0
      %p674 = por %p672, %p673
      %p675 = scmp.ne.s32.totalorder %s664, %s667
      %p676 = scmp.eq.s32.totalorder %s53, 1
      %p677 = por %p675, %p676
      %p678 = scmp.ne.s32.totalorder %s667, %s668
      %p679 = scmp.eq.s32.totalorder %s53, 0
      %p680 = por %p678, %p679
      %p681 = scmp.ne.s32.totalorder %s667, %s668
      %p682 = scmp.eq.s32.totalorder %s54, 1
      %p683 = por %p681, %p682
      %p685 = scmp.ne.s32.totalorder %s668, %s684
      %p686 = scmp.eq.s32.totalorder %s54, 0
      %p687 = por %p685, %p686
      %p688 = scmp.le.s32.totalorder 1, %s48
      %p689 = scmp.lt.s32.totalorder %s48, 3
      %p690 = pnand %p688, %p689
      %p691 = pneg %p690
      // Predicated region
      $region9: #{tpu_custom_call.1} parent=5 // pred_check
        _
      $region10: #{tpu_custom_call.1} parent=5 // pred_check_branch
        %693 = sbr.rel (%p690) target = $region12
      $region11: #{tpu_custom_call.1} parent=5 // pred_region
        %s694 = ssub.s32 %s48, 1
        // Predicated region
        $region13: #{tpu_custom_call.1} parent=11 // pred_check
          %p695 = pneg %p277
        $region14: #{tpu_custom_call.1} parent=11 // pred_check_branch
          %697 = sbr.rel (%p695) target = $region16
        $region15: #{tpu_custom_call.1} parent=11 // pred_region
          %s699 = ssub.s32 64, 64
          %700 = vsyncadd [#allocation10], %s699
          %s702 = sshll.u32 [#allocation9], 4
          %s703 = int_to_ptr.vmem [resolvable:$true] %s702
          %705 = dma.hbm_to_vmem [thread:$0]  %s7, 64, %s703, [#allocation10]
        $region16: #{tpu_custom_call.1} parent=11 // pred_fallthru
          _
        // Predicated region
        $region17: #{tpu_custom_call.1} parent=11 // pred_check
          %p706 = pneg %p298
        $region18: #{tpu_custom_call.1} parent=11 // pred_check_branch
          %708 = sbr.rel (%p706) target = $region20
        $region19: #{tpu_custom_call.1} parent=11 // pred_region
          _
        $region20: #{tpu_custom_call.1} parent=11 // pred_fallthru
          _
        // Predicated region
        $region21: #{tpu_custom_call.1} parent=11 // pred_check
          %p709 = pneg %p319
        $region22: #{tpu_custom_call.1} parent=11 // pred_check_branch
          %711 = sbr.rel (%p709) target = $region24
        $region23: #{tpu_custom_call.1} parent=11 // pred_region
          _
        $region24: #{tpu_custom_call.1} parent=11 // pred_fallthru
          _
        // Predicated region
        $region25: #{tpu_custom_call.1} parent=11 // pred_check
          %p712 = pneg %p340
        $region26: #{tpu_custom_call.1} parent=11 // pred_check_branch
          %714 = sbr.rel (%p712) target = $region28
        $region27: #{tpu_custom_call.1} parent=11 // pred_region
          _
        $region28: #{tpu_custom_call.1} parent=11 // pred_fallthru
          _
        // Predicated region
        $region29: #{tpu_custom_call.1} parent=11 // pred_check
          %p715 = pneg %p361
        $region30: #{tpu_custom_call.1} parent=11 // pred_check_branch
          %717 = sbr.rel (%p715) target = $region32
        $region31: #{tpu_custom_call.1} parent=11 // pred_region
          _
        $region32: #{tpu_custom_call.1} parent=11 // pred_fallthru
          _
        // Predicated region
        $region33: #{tpu_custom_call.1} parent=11 // pred_check
          %p718 = pneg %p382
        $region34: #{tpu_custom_call.1} parent=11 // pred_check_branch
          %720 = sbr.rel (%p718) target = $region36
        $region35: #{tpu_custom_call.1} parent=11 // pred_region
          _
        $region36: #{tpu_custom_call.1} parent=11 // pred_fallthru
          _
        // Predicated region
        $region37: #{tpu_custom_call.1} parent=11 // pred_check
          %p721 = pneg %p403
        $region38: #{tpu_custom_call.1} parent=11 // pred_check_branch
          %723 = sbr.rel (%p721) target = $region40
        $region39: #{tpu_custom_call.1} parent=11 // pred_region
          _
        $region40: #{tpu_custom_call.1} parent=11 // pred_fallthru
          _
        // Predicated region
        $region41: #{tpu_custom_call.1} parent=11 // pred_check
          %p724 = pneg %p424
        $region42: #{tpu_custom_call.1} parent=11 // pred_check_branch
          %726 = sbr.rel (%p724) target = $region44
        $region43: #{tpu_custom_call.1} parent=11 // pred_region
          _
        $region44: #{tpu_custom_call.1} parent=11 // pred_fallthru
          _
        // Predicated region
        $region45: #{tpu_custom_call.1} parent=11 // pred_check
          %p727 = pneg %p445
        $region46: #{tpu_custom_call.1} parent=11 // pred_check_branch
          %729 = sbr.rel (%p727) target = $region48
        $region47: #{tpu_custom_call.1} parent=11 // pred_region
          _
        $region48: #{tpu_custom_call.1} parent=11 // pred_fallthru
          _
        // Predicated region
        $region49: #{tpu_custom_call.1} parent=11 // pred_check
          %p730 = pneg %p466
        $region50: #{tpu_custom_call.1} parent=11 // pred_check_branch
          %732 = sbr.rel (%p730) target = $region52
        $region51: #{tpu_custom_call.1} parent=11 // pred_region
          _
        $region52: #{tpu_custom_call.1} parent=11 // pred_fallthru
          _
        // Predicated region
        $region53: #{tpu_custom_call.1} parent=11 // pred_check
          %p733 = pneg %p487
        $region54: #{tpu_custom_call.1} parent=11 // pred_check_branch
          %735 = sbr.rel (%p733) target = $region56
        $region55: #{tpu_custom_call.1} parent=11 // pred_region
          _
        $region56: #{tpu_custom_call.1} parent=11 // pred_fallthru
          _
        // Predicated region
        $region57: #{tpu_custom_call.1} parent=11 // pred_check
          %p736 = pneg %p508
        $region58: #{tpu_custom_call.1} parent=11 // pred_check_branch
          %738 = sbr.rel (%p736) target = $region60
        $region59: #{tpu_custom_call.1} parent=11 // pred_region
          _
        $region60: #{tpu_custom_call.1} parent=11 // pred_fallthru
          _
        // Predicated region
        $region61: #{tpu_custom_call.1} parent=11 // pred_check
          %p739 = pneg %p529
        $region62: #{tpu_custom_call.1} parent=11 // pred_check_branch
          %741 = sbr.rel (%p739) target = $region64
        $region63: #{tpu_custom_call.1} parent=11 // pred_region
          _
        $region64: #{tpu_custom_call.1} parent=11 // pred_fallthru
          _
        // Predicated region
        $region65: #{tpu_custom_call.1} parent=11 // pred_check
          %p742 = pneg %p550
        $region66: #{tpu_custom_call.1} parent=11 // pred_check_branch
          %744 = sbr.rel (%p742) target = $region68
        $region67: #{tpu_custom_call.1} parent=11 // pred_region
          _
        $region68: #{tpu_custom_call.1} parent=11 // pred_fallthru
          _
      $region12: #{tpu_custom_call.1} parent=5 // pred_fallthru
        _
      %p745 = scmp.lt.s32.totalorder %s48, 2
      // Predicated region
      $region69: #{tpu_custom_call.1} parent=5 // pred_check
        %p746 = pneg %p745
      $region70: #{tpu_custom_call.1} parent=5 // pred_check_branch
        %748 = sbr.rel (%p746) target = $region72
      $region71: #{tpu_custom_call.1} parent=5 // pred_region
        // Predicated region
        $region73: #{tpu_custom_call.1} parent=71 // pred_check
          %p749 = pneg %p82
        $region74: #{tpu_custom_call.1} parent=71 // pred_check_branch
          %751 = sbr.rel (%p749) target = $region76
        $region75: #{tpu_custom_call.1} parent=71 // pred_region
          %s752 = sadd.s32 %s55, %s56
          %p753 = scmp.lt.s32.totalorder %s752, 1
          %s754 = scalar_select %p753, %s752, 1
          %s755 = smul.addr %s754, 2
          %s756 = smul.addr %s755, 8
          %s757 = scalar_lea.vmem %s0, %s756
          %s758 = sadd.s32 %s55, %s56
        $region76: #{tpu_custom_call.1} parent=71 // pred_fallthru
          _
        // Predicated region
        $region77: #{tpu_custom_call.1} parent=71 // pred_check
          %p759 = pneg %p110
        $region78: #{tpu_custom_call.1} parent=71 // pred_check_branch
          %761 = sbr.rel (%p759) target = $region80
        $region79: #{tpu_custom_call.1} parent=71 // pred_region
          %s762 = sand.u32 %s100, 1
          %s763 = scalar_lea.sflag [#allocation4], %s762
          %s764 = sand.u32 %s100, 1
          %s765 = smul.addr %s764, 16
          %s766 = scalar_lea.vmem [#allocation3], %s765
          %s767 = sadd.s32 %s55, %s56
          %s769 = ssub.s32 256, 256
          %770 = vsyncadd %s763, %s769
          %s771 = smul.addr %s767, 2
          %s772 = smul.addr %s771, 128
          %s773 = scalar_lea.hbm %s1, %s772
          %s774 = sshll.u32 %s766, 4
          %s775 = int_to_ptr.vmem [resolvable:$true] %s774
          %780 = dma.hbm_to_vmem [thread:$0]  %s773, 256, %s775, %s763, 128, 128, 8
        $region80: #{tpu_custom_call.1} parent=71 // pred_fallthru
          _
        // Predicated region
        $region81: #{tpu_custom_call.1} parent=71 // pred_check
          %p781 = pneg %p138
        $region82: #{tpu_custom_call.1} parent=71 // pred_check_branch
          %783 = sbr.rel (%p781) target = $region84
        $region83: #{tpu_custom_call.1} parent=71 // pred_region
          %s784 = sand.u32 %s48, 1
          %s785 = scalar_lea.sflag [#allocation7], %s784
          %s786 = sand.u32 %s128, 1
          %s787 = smul.addr %s786, 16
          %s788 = scalar_lea.vmem [#allocation6], %s787
          %s789 = sadd.s32 %s55, %s56
          %s791 = ssub.s32 256, 256
          %792 = vsyncadd %s785, %s791
          %s793 = smul.addr %s789, 2
          %s794 = smul.addr %s793, 128
          %s795 = scalar_lea.hbm %s2, %s794
          %s796 = sshll.u32 %s788, 4
          %s797 = int_to_ptr.vmem [resolvable:$true] %s796
          %802 = dma.hbm_to_vmem [thread:$0]  %s795, 256, %s797, %s785, 128, 128, 8
        $region84: #{tpu_custom_call.1} parent=71 // pred_fallthru
          _
        // Predicated region
        $region85: #{tpu_custom_call.1} parent=71 // pred_check
          %p803 = pneg %p166
        $region86: #{tpu_custom_call.1} parent=71 // pred_check_branch
          %805 = sbr.rel (%p803) target = $region88
        $region87: #{tpu_custom_call.1} parent=71 // pred_region
          %s806 = sadd.s32 %s55, %s56
          %p807 = scmp.lt.s32.totalorder %s806, 1
          %s808 = scalar_select %p807, %s806, 1
          %s809 = smul.addr %s808, 8
          %s810 = scalar_lea.vmem %s3, %s809
          %s811 = sadd.s32 %s55, %s56
        $region88: #{tpu_custom_call.1} parent=71 // pred_fallthru
          _
        // Predicated region
        $region89: #{tpu_custom_call.1} parent=71 // pred_check
          %p812 = pneg %p194
        $region90: #{tpu_custom_call.1} parent=71 // pred_check_branch
          %814 = sbr.rel (%p812) target = $region92
        $region91: #{tpu_custom_call.1} parent=71 // pred_region
          %s815 = sadd.s32 %s55, %s56
          %p816 = scmp.lt.s32.totalorder %s815, 1
          %s817 = scalar_select %p816, %s815, 1
          %s818 = smul.addr %s817, 8
          %s819 = scalar_lea.vmem %s4, %s818
          %s820 = sadd.s32 %s55, %s56
        $region92: #{tpu_custom_call.1} parent=71 // pred_fallthru
          _
        // Predicated region
        $region93: #{tpu_custom_call.1} parent=71 // pred_check
          %p821 = pneg %p222
        $region94: #{tpu_custom_call.1} parent=71 // pred_check_branch
          %823 = sbr.rel (%p821) target = $region96
        $region95: #{tpu_custom_call.1} parent=71 // pred_region
          %s824 = sadd.s32 %s55, %s56
          %p825 = scmp.lt.s32.totalorder %s824, 1
          %s826 = scalar_select %p825, %s824, 1
          %s827 = smul.addr %s826, 4
          %s828 = scalar_lea.vmem %s5, %s827
          %s829 = sadd.s32 %s55, %s56
        $region96: #{tpu_custom_call.1} parent=71 // pred_fallthru
          _
        // Predicated region
        $region97: #{tpu_custom_call.1} parent=71 // pred_check
          %p830 = pneg %p250
        $region98: #{tpu_custom_call.1} parent=71 // pred_check_branch
          %832 = sbr.rel (%p830) target = $region100
        $region99: #{tpu_custom_call.1} parent=71 // pred_region
          %s833 = sand.u32 %s48, 1
          %s834 = scalar_lea.sflag [#allocation7], %s833
          %s835 = sand.u32 %s240, 1
          %s836 = smul.addr %s835, 4
          %s837 = scalar_lea.vmem [#allocation8], %s836
          %s838 = sadd.s32 %s55, %s56
          %s840 = ssub.s32 64, 64
          %841 = vsyncadd %s834, %s840
          %s842 = smul.addr %s838, 64
          %s843 = scalar_lea.hbm %s6, %s842
          %s845 = sshll.u32 %s837, 4
          %s846 = int_to_ptr.vmem [resolvable:$true] %s845
          %848 = dma.hbm_to_vmem [thread:$0]  %s843, 64, %s846, %s834
        $region100: #{tpu_custom_call.1} parent=71 // pred_fallthru
          _
      $region72: #{tpu_custom_call.1} parent=5 // pred_fallthru
        _
      %p849 = scmp.le.s32.totalorder 1, %s48
      %p850 = scmp.lt.s32.totalorder %s48, 3
      %p851 = pnand %p849, %p850
      %p852 = pneg %p851
      // Predicated region
      $region101: #{tpu_custom_call.1} parent=5 // pred_check
        _
      $region102: #{tpu_custom_call.1} parent=5 // pred_check_branch
        %854 = sbr.rel (%p851) target = $region104
      $region103: #{tpu_custom_call.1} parent=5 // pred_region
        %s855 = ssub.s32 %s48, 1
        %s856 = sand.u32 %s103, 1
        %s857 = scalar_lea.sflag [#allocation4], %s856
        %s858 = sand.u32 %s103, 1
        %s859 = smul.addr %s858, 16
        %s860 = scalar_lea.vmem [#allocation3], %s859
        // Predicated region
        $region105: #{tpu_custom_call.1} parent=103 // pred_check
          %p861 = pneg %p116
        $region106: #{tpu_custom_call.1} parent=103 // pred_check_branch
          %863 = sbr.rel (%p861) target = $region108
        $region107: #{tpu_custom_call.1} parent=103 // pred_region
          %864 = dma.done %s857, 256
        $region108: #{tpu_custom_call.1} parent=103 // pred_fallthru
          _
        %s865 = sand.u32 %s53, 1
        %s866 = scalar_lea.sflag [#allocation7], %s865
        %s867 = sand.u32 %s131, 1
        %s868 = smul.addr %s867, 16
        %s869 = scalar_lea.vmem [#allocation6], %s868
        // Predicated region
        $region109: #{tpu_custom_call.1} parent=103 // pred_check
          %p870 = pneg %p144
        $region110: #{tpu_custom_call.1} parent=103 // pred_check_branch
          %872 = sbr.rel (%p870) target = $region112
        $region111: #{tpu_custom_call.1} parent=103 // pred_region
          %873 = dma.done %s866, 256
        $region112: #{tpu_custom_call.1} parent=103 // pred_fallthru
          _
        %s874 = sand.u32 %s53, 1
        %s875 = scalar_lea.sflag [#allocation7], %s874
        %s876 = sand.u32 %s243, 1
        %s877 = smul.addr %s876, 4
        %s878 = scalar_lea.vmem [#allocation8], %s877
        // Predicated region
        $region113: #{tpu_custom_call.1} parent=103 // pred_check
          %p879 = pneg %p256
        $region114: #{tpu_custom_call.1} parent=103 // pred_check_branch
          %881 = sbr.rel (%p879) target = $region116
        $region115: #{tpu_custom_call.1} parent=103 // pred_region
          %882 = dma.done %s875, 64
        $region116: #{tpu_custom_call.1} parent=103 // pred_fallthru
          _
        // Predicated region
        $region117: #{tpu_custom_call.1} parent=103 // pred_check
          %p883 = pneg %p277
        $region118: #{tpu_custom_call.1} parent=103 // pred_check_branch
          %885 = sbr.rel (%p883) target = $region120
        $region119: #{tpu_custom_call.1} parent=103 // pred_region
          %886 = dma.done [#allocation10], 64
        $region120: #{tpu_custom_call.1} parent=103 // pred_fallthru
          _
        %s887 = sadd.s32 %s57, %s58
        %p888 = scmp.lt.s32.totalorder %s887, 1
        %s889 = scalar_select %p888, %s887, 1
        %s890 = smul.addr %s889, 2
        %s891 = smul.addr %s890, 8
        %s892 = scalar_lea.vmem %s0, %s891
        %p893 = pneg %p88
        %p894 = pneg %p85
        %s895 = sand.u32 %s103, 1
        %s896 = scalar_lea.sflag [#allocation4], %s895
        %s897 = sand.u32 %s103, 1
        %s898 = smul.addr %s897, 16
        %s899 = scalar_lea.vmem [#allocation3], %s898
        %p900 = pneg %p116
        %p901 = pneg %p113
        %s902 = sand.u32 %s53, 1
        %s903 = scalar_lea.sflag [#allocation7], %s902
        %s904 = sand.u32 %s131, 1
        %s905 = smul.addr %s904, 16
        %s906 = scalar_lea.vmem [#allocation6], %s905
        %p907 = pneg %p144
        %p908 = pneg %p141
        %s909 = sadd.s32 %s57, %s58
        %p910 = scmp.lt.s32.totalorder %s909, 1
        %s911 = scalar_select %p910, %s909, 1
        %s912 = smul.addr %s911, 8
        %s913 = scalar_lea.vmem %s3, %s912
        %p914 = pneg %p172
        %p915 = pneg %p169
        %s916 = sadd.s32 %s57, %s58
        %p917 = scmp.lt.s32.totalorder %s916, 1
        %s918 = scalar_select %p917, %s916, 1
        %s919 = smul.addr %s918, 8
        %s920 = scalar_lea.vmem %s4, %s919
        %p921 = pneg %p200
        %p922 = pneg %p197
        %s923 = sadd.s32 %s57, %s58
        %p924 = scmp.lt.s32.totalorder %s923, 1
        %s925 = scalar_select %p924, %s923, 1
        %s926 = smul.addr %s925, 4
        %s927 = scalar_lea.vmem %s5, %s926
        %p928 = pneg %p228
        %p929 = pneg %p225
        %s930 = sand.u32 %s53, 1
        %s931 = scalar_lea.sflag [#allocation7], %s930
        %s932 = sand.u32 %s243, 1
        %s933 = smul.addr %s932, 4
        %s934 = scalar_lea.vmem [#allocation8], %s933
        %p935 = pneg %p256
        %p936 = pneg %p253
        %p937 = pneg %p277
        %p938 = pneg %p274
        %p939 = pneg %p298
        %p940 = pneg %p295
        %p941 = pneg %p319
        %p942 = pneg %p316
        %p943 = pneg %p340
        %p944 = pneg %p337
        %p945 = pneg %p361
        %p946 = pneg %p358
        %p947 = pneg %p382
        %p948 = pneg %p379
        %p949 = pneg %p403
        %p950 = pneg %p400
        %p951 = pneg %p424
        %p952 = pneg %p421
        %p953 = pneg %p445
        %p954 = pneg %p442
        %p955 = pneg %p466
        %p956 = pneg %p463
        %p957 = pneg %p487
        %p958 = pneg %p484
        %p959 = pneg %p508
        %p960 = pneg %p505
        %p961 = pneg %p529
        %p962 = pneg %p526
        %p963 = pneg %p550
        %p964 = pneg %p547
        %p965 = pneg %p576
        %p966 = pneg %p573
        %s967 = sand.u32 %s563, 1
        %s968 = scalar_lea.sflag [#allocation5], %s967
        %s969 = sand.u32 %s563, 1
        %s970 = smul.addr %s969, 8
        %s971 = scalar_lea.vmem [#allocation11], %s970
        %p972 = pneg %p602
        %p973 = pneg %p599
        %s974 = sand.u32 %s53, 1
        %s975 = scalar_lea.sflag [#allocation13], %s974
        %s976 = sand.u32 %s589, 1
        %s977 = smul.addr %s976, 4
        %s978 = scalar_lea.vmem [#allocation12], %s977
        %p979 = pneg %p628
        %p980 = pneg %p625
        %s981 = sand.u32 %s53, 1
        %s982 = scalar_lea.sflag [#allocation13], %s981
        %s983 = sand.u32 %s615, 1
        %s984 = smul.addr %s983, 8
        %s985 = scalar_lea.vmem [#allocation14], %s984
        %p986 = pneg %p654
        %p987 = pneg %p651
        %s988 = sand.u32 %s641, 1
        %s989 = scalar_lea.sflag [#allocation16], %s988
        %s990 = sand.u32 %s641, 1
        %s991 = smul.addr %s990, 4
        %s992 = scalar_lea.vmem [#allocation15], %s991
        %p993 = pneg %p680
        %p994 = pneg %p677
        %p995 = scmp.lt.s32.totalorder %s57, 1
        %s996 = scalar_select %p995, %s57, 1
        %s997 = scalar_lea.vmem %s25, %s996
        %s998 = sadd.s32 %s57, %s58
        %p999 = scmp.lt.s32.totalorder %s998, 1
        %s1000 = scalar_select %p999, %s998, 1
        %s1001 = smul.addr %s1000, 2
        %s1002 = smul.addr %s1001, 8
        %s1003 = scalar_lea.vmem %s0, %s1002
        %s1004 = sadd.s32 %s57, %s58
        %s1005 = sadd.s32 %s57, %s58
        %s1006 = sadd.s32 %s57, %s58
        %s1007 = sadd.s32 %s57, %s58
        %p1008 = scmp.lt.s32.totalorder %s1007, 1
        %s1009 = scalar_select %p1008, %s1007, 1
        %s1010 = smul.addr %s1009, 8
        %s1011 = scalar_lea.vmem %s3, %s1010
        %s1012 = sadd.s32 %s57, %s58
        %s1013 = sadd.s32 %s57, %s58
        %p1014 = scmp.lt.s32.totalorder %s1013, 1
        %s1015 = scalar_select %p1014, %s1013, 1
        %s1016 = smul.addr %s1015, 8
        %s1017 = scalar_lea.vmem %s4, %s1016
        %s1018 = sadd.s32 %s57, %s58
        %s1019 = sadd.s32 %s57, %s58
        %p1020 = scmp.lt.s32.totalorder %s1019, 1
        %s1021 = scalar_select %p1020, %s1019, 1
        %s1022 = smul.addr %s1021, 4
        %s1023 = scalar_lea.vmem %s5, %s1022
        %s1024 = sadd.s32 %s57, %s58
        %s1025 = sadd.s32 %s57, %s58
        %p1026 = scmp.lt.s32.totalorder %s57, 1
        %s1027 = scalar_select %p1026, %s57, 1
        %s1028 = scalar_lea.vmem %s25, %s1027
        %p1030 = scmp.eq.s32.totalorder %s58, 0
        // Predicated region
        $region121: #{tpu_custom_call.1} parent=103 // pred_check
          %p1031 = pneg %p1030
        $region122: #{tpu_custom_call.1} parent=103 // pred_check_branch
          %1033 = sbr.rel (%p1031) target = $region124
        $region123: #{tpu_custom_call.1} parent=103 // pred_region
          %vm1034 = vcmask 64512
          %1035 = vst.msk [vmem:[%s971] sm:$0xff] %vm1034, 0.0
          %1036 = vst.msk [vmem:[%s985] sm:$0xff] %vm1034, 0.0
          %vm1037 = vcmask 27648
          %1038 = vst.msk [vmem:[%s978] sm:$0xf] %vm1037, 0.0
          %1039 = vst.msk [vmem:[%s992] sm:$0xf] %vm1037, 0.0
          %s1040 = scalar_lea.smem [#allocation2], 0
          %1041 = sst [smem:[%s1040]] 0.0
        $region124: #{tpu_custom_call.1} parent=103 // pred_fallthru
          _
        %v1042 = vld [vmem:[%s1003] sm:$0xff]
        %v1043 = vld [vmem:[%s1003 + $0x8] sm:$0xff]
        %v1044 = vld [vmem:[%s860] sm:$0xff]
        %v1045 = vld [vmem:[%s860 + $0x8] sm:$0xff]
        %v1046 = vpack.c.bf16 %v1043, %v1042
        %v1047 = vpack.c.bf16 %v1045, %v1044
        %v1048 = vld [vmem:[%s869] sm:$0xff]
        %v1049 = vld [vmem:[%s869 + $0x8] sm:$0xff]
        %v1050 = vpack.c.bf16 %v1049, %v1048
        %v1051 = vld [vmem:[#allocation9] sm:$0xf]
        %v1052 = vld [vmem:[%s8] sm:$0xf]
        %v1053 = vld [vmem:[%s8 + $0x4] sm:$0xf]
        %v1054 = vld [vmem:[%s9] sm:$0xf]
        %v1055 = vld [vmem:[%s10] sm:$0xf]
        %v1056 = vld [vmem:[%s10 + $0x4] sm:$0xf]
        %vm1057 = vcmask 130048
        %v1059 = vsel %vm1057, %v1051, 0
        %1061 = vmatprep.subr.bf16.mxu0 0
        %1062 = vmatpush1.bf16.msra.mxu0 %v1046
        %1063 = vmatprep.subr.bf16.mxu0 0
        %1064 = vmatpush1.bf16.msra.mxu0 0
        %1065 = vmatprep.subr.bf16.mxu0 0
        %1066 = vmatpush1.bf16.msra.mxu0 0
        %1067 = vmatprep.subr.bf16.mxu0 0
        %1068 = vmatpush1.bf16.msra.mxu0 0
        %1069 = vmatprep.subr.bf16.mxu0 0
        %1070 = vmatpush1.bf16.msra.mxu0 0
        %1071 = vmatprep.subr.bf16.mxu0 0
        %1072 = vmatpush1.bf16.msra.mxu0 0
        %1073 = vmatprep.subr.bf16.mxu0 0
        %1074 = vmatpush1.bf16.msra.mxu0 0
        %1075 = vmatprep.subr.bf16.mxu0 0
        %1076 = vmatpush1.bf16.msra.mxu0 0
        %1077 = vmatprep.subr.bf16.mxu0 0
        %1078 = vmatpush1.bf16.msra.mxu0 0
        %1079 = vmatprep.subr.bf16.mxu0 0
        %1080 = vmatpush1.bf16.msra.mxu0 0
        %1081 = vmatprep.subr.bf16.mxu0 0
        %1082 = vmatpush1.bf16.msra.mxu0 0
        %1083 = vmatprep.subr.bf16.mxu0 0
        %1084 = vmatpush1.bf16.msra.mxu0 0
        %1085 = vmatprep.subr.bf16.mxu0 0
        %1086 = vmatpush1.bf16.msra.mxu0 0
        %1087 = vmatprep.subr.bf16.mxu0 0
        %1088 = vmatpush1.bf16.msra.mxu0 0
        %1089 = vmatprep.subr.bf16.mxu0 0
        %1090 = vmatpush1.bf16.msra.mxu0 0
        %1091 = vmatprep.subr.bf16.mxu0 0
        %1092 = vmatpush1.bf16.msra.mxu0 0
        %1093 = vmatprep.mubr.bf16.mxu0 0
        %1094 = vmatmul.mubr.bf16.gmra.mrb[0].mxu0 %v1059
        %v1095 = vpop.f32.mrb[0].mxu0
        %v1096 = vadd.f32 0.0, %v1095
        %v1097 = vpop.f32.mrb[0].mxu0
        %v1098 = vpop.f32.mrb[0].mxu0
        %v1099 = vpop.f32.mrb[0].mxu0
        %1100 = vdwg.mxu0
        %v1101 = vpack.c.bf16 %v1096, %v1096
        %v1104 = vunpack.c.l.b16 %v1052
        %v1105 = vunpack.c.l.b16 %v1053
        %v1106 = vpack.c.b16 %v1105, %v1104
        %v1109 = vsel %vm1057, %v1101, 0
        %1111 = vmatprep.subr.bf16.mxu0 0
        %1112 = vmatpush1.bf16.msra.mxu0 %v1106
        %1113 = vmatprep.subr.bf16.mxu0 0
        %1114 = vmatpush1.bf16.msra.mxu0 0
        %1115 = vmatprep.subr.bf16.mxu0 0
        %1116 = vmatpush1.bf16.msra.mxu0 0
        %1117 = vmatprep.subr.bf16.mxu0 0
        %1118 = vmatpush1.bf16.msra.mxu0 0
        %1119 = vmatprep.subr.bf16.mxu0 0
        %1120 = vmatpush1.bf16.msra.mxu0 0
        %1121 = vmatprep.subr.bf16.mxu0 0
        %1122 = vmatpush1.bf16.msra.mxu0 0
        %1123 = vmatprep.subr.bf16.mxu0 0
        %1124 = vmatpush1.bf16.msra.mxu0 0
        %1125 = vmatprep.subr.bf16.mxu0 0
        %1126 = vmatpush1.bf16.msra.mxu0 0
        %1127 = vmatprep.subr.bf16.mxu0 0
        %1128 = vmatpush1.bf16.msra.mxu0 0
        %1129 = vmatprep.subr.bf16.mxu0 0
        %1130 = vmatpush1.bf16.msra.mxu0 0
        %1131 = vmatprep.subr.bf16.mxu0 0
        %1132 = vmatpush1.bf16.msra.mxu0 0
        %1133 = vmatprep.subr.bf16.mxu0 0
        %1134 = vmatpush1.bf16.msra.mxu0 0
        %1135 = vmatprep.subr.bf16.mxu0 0
        %1136 = vmatpush1.bf16.msra.mxu0 0
        %1137 = vmatprep.subr.bf16.mxu0 0
        %1138 = vmatpush1.bf16.msra.mxu0 0
        %1139 = vmatprep.subr.bf16.mxu0 0
        %1140 = vmatpush1.bf16.msra.mxu0 0
        %1141 = vmatprep.subr.bf16.mxu0 0
        %1142 = vmatpush1.bf16.msra.mxu0 0
        %1143 = vmatprep.mubr.bf16.mxu0 0
        %1144 = vmatmul.mubr.bf16.gmra.mrb[0].mxu0 %v1109
        %v1145 = vpop.f32.mrb[0].mxu0
        %v1146 = vadd.f32 0.0, %v1145
        %v1147 = vpop.f32.mrb[0].mxu0
        %v1148 = vpop.f32.mrb[0].mxu0
        %v1149 = vpop.f32.mrb[0].mxu0
        %1150 = vdwg.mxu0
        %1151 = vmatprep.subr.bf16.mxu0 0
        %1152 = vmatpush1.bf16.msra.mxu0 %v1047
        %1153 = vmatprep.subr.bf16.mxu0 0
        %1154 = vmatpush1.bf16.msra.mxu0 0
        %1155 = vmatprep.subr.bf16.mxu0 0
        %1156 = vmatpush1.bf16.msra.mxu0 0
        %1157 = vmatprep.subr.bf16.mxu0 0
        %1158 = vmatpush1.bf16.msra.mxu0 0
        %1159 = vmatprep.subr.bf16.mxu0 0
        %1160 = vmatpush1.bf16.msra.mxu0 0
        %1161 = vmatprep.subr.bf16.mxu0 0
        %1162 = vmatpush1.bf16.msra.mxu0 0
        %1163 = vmatprep.subr.bf16.mxu0 0
        %1164 = vmatpush1.bf16.msra.mxu0 0
        %1165 = vmatprep.subr.bf16.mxu0 0
        %1166 = vmatpush1.bf16.msra.mxu0 0
        %1167 = vmatprep.subr.bf16.mxu0 0
        %1168 = vmatpush1.bf16.msra.mxu0 0
        %1169 = vmatprep.subr.bf16.mxu0 0
        %1170 = vmatpush1.bf16.msra.mxu0 0
        %1171 = vmatprep.subr.bf16.mxu0 0
        %1172 = vmatpush1.bf16.msra.mxu0 0
        %1173 = vmatprep.subr.bf16.mxu0 0
        %1174 = vmatpush1.bf16.msra.mxu0 0
        %1175 = vmatprep.subr.bf16.mxu0 0
        %1176 = vmatpush1.bf16.msra.mxu0 0
        %1177 = vmatprep.subr.bf16.mxu0 0
        %1178 = vmatpush1.bf16.msra.mxu0 0
        %1179 = vmatprep.subr.bf16.mxu0 0
        %1180 = vmatpush1.bf16.msra.mxu0 0
        %1181 = vmatprep.subr.bf16.mxu0 0
        %1182 = vmatpush1.bf16.msra.mxu0 0
        %1183 = vmatprep.mubr.bf16.mxu0 0
        %1184 = vmatmul.mubr.bf16.gmra.mrb[0].mxu0 %v1059
        %v1185 = vpop.f32.mrb[0].mxu0
        %v1186 = vadd.f32 0.0, %v1185
        %v1187 = vpop.f32.mrb[0].mxu0
        %v1188 = vpop.f32.mrb[0].mxu0
        %v1189 = vpop.f32.mrb[0].mxu0
        %1190 = vdwg.mxu0
        %v1191 = vpack.c.bf16 %v1186, %v1186
        %v1193 = vsel %vm1057, %v1191, 0
        %1195 = vmatprep.subr.bf16.mxu0 0
        %1196 = vmatpush1.bf16.msra.mxu0 %v1106
        %1197 = vmatprep.subr.bf16.mxu0 0
        %1198 = vmatpush1.bf16.msra.mxu0 0
        %1199 = vmatprep.subr.bf16.mxu0 0
        %1200 = vmatpush1.bf16.msra.mxu0 0
        %1201 = vmatprep.subr.bf16.mxu0 0
        %1202 = vmatpush1.bf16.msra.mxu0 0
        %1203 = vmatprep.subr.bf16.mxu0 0
        %1204 = vmatpush1.bf16.msra.mxu0 0
        %1205 = vmatprep.subr.bf16.mxu0 0
        %1206 = vmatpush1.bf16.msra.mxu0 0
        %1207 = vmatprep.subr.bf16.mxu0 0
        %1208 = vmatpush1.bf16.msra.mxu0 0
        %1209 = vmatprep.subr.bf16.mxu0 0
        %1210 = vmatpush1.bf16.msra.mxu0 0
        %1211 = vmatprep.subr.bf16.mxu0 0
        %1212 = vmatpush1.bf16.msra.mxu0 0
        %1213 = vmatprep.subr.bf16.mxu0 0
        %1214 = vmatpush1.bf16.msra.mxu0 0
        %1215 = vmatprep.subr.bf16.mxu0 0
        %1216 = vmatpush1.bf16.msra.mxu0 0
        %1217 = vmatprep.subr.bf16.mxu0 0
        %1218 = vmatpush1.bf16.msra.mxu0 0
        %1219 = vmatprep.subr.bf16.mxu0 0
        %1220 = vmatpush1.bf16.msra.mxu0 0
        %1221 = vmatprep.subr.bf16.mxu0 0
        %1222 = vmatpush1.bf16.msra.mxu0 0
        %1223 = vmatprep.subr.bf16.mxu0 0
        %1224 = vmatpush1.bf16.msra.mxu0 0
        %1225 = vmatprep.subr.bf16.mxu0 0
        %1226 = vmatpush1.bf16.msra.mxu0 0
        %1227 = vmatprep.mubr.bf16.mxu0 0
        %1228 = vmatmul.mubr.bf16.gmra.mrb[0].mxu0 %v1193
        %v1229 = vpop.f32.mrb[0].mxu0
        %v1230 = vadd.f32 0.0, %v1229
        %v1231 = vpop.f32.mrb[0].mxu0
        %v1232 = vpop.f32.mrb[0].mxu0
        %v1233 = vpop.f32.mrb[0].mxu0
        %1234 = vdwg.mxu0
        %v1235 = vld [vmem:[%s1011] sm:$0xff]
        %v1236 = vsub.f32 %v1146, %v1235
        %v1237 = vld [vmem:[%s1017] sm:$0xff]
        %v1238 = vsub.f32 %v1230, %v1237
        %v1239 = vld [vmem:[%s985] sm:$0xff]
        %v1240 = vand.u32 2147483647, %v1236
        %v1241 = vand.u32 2147483647, %v1238
        %v1242 = vadd.f32 %v1240, %v1241
        %v1243 = vadd.f32 %v1242, 0.01
        %v1244 = vlog2.pop %v1243
        %v1245 = vmul.f32 %v1244, 0.6931472
        %v1246 = vmul.f32 %v1245, 0.4
        %v1247 = vmul.f32 %v1246, 1.442695
        %v1248 = vpow.pop %v1247
        %v1249 = vadd.f32 %v1239, %v1248
        %vm1250 = vcmask 64512
        %1251 = vst.msk [vmem:[%s985] sm:$0xff] %vm1250, %v1249
        %v1253 = vsel %vm1057, %v1054, 0
        %1255 = vmatprep.subr.bf16.mxu0 0
        %1256 = vmatpush1.bf16.msra.mxu0 %v1050
        %1257 = vmatprep.subr.bf16.mxu0 0
        %1258 = vmatpush1.bf16.msra.mxu0 0
        %1259 = vmatprep.subr.bf16.mxu0 0
        %1260 = vmatpush1.bf16.msra.mxu0 0
        %1261 = vmatprep.subr.bf16.mxu0 0
        %1262 = vmatpush1.bf16.msra.mxu0 0
        %1263 = vmatprep.subr.bf16.mxu0 0
        %1264 = vmatpush1.bf16.msra.mxu0 0
        %1265 = vmatprep.subr.bf16.mxu0 0
        %1266 = vmatpush1.bf16.msra.mxu0 0
        %1267 = vmatprep.subr.bf16.mxu0 0
        %1268 = vmatpush1.bf16.msra.mxu0 0
        %1269 = vmatprep.subr.bf16.mxu0 0
        %1270 = vmatpush1.bf16.msra.mxu0 0
        %1271 = vmatprep.subr.bf16.mxu0 0
        %1272 = vmatpush1.bf16.msra.mxu0 0
        %1273 = vmatprep.subr.bf16.mxu0 0
        %1274 = vmatpush1.bf16.msra.mxu0 0
        %1275 = vmatprep.subr.bf16.mxu0 0
        %1276 = vmatpush1.bf16.msra.mxu0 0
        %1277 = vmatprep.subr.bf16.mxu0 0
        %1278 = vmatpush1.bf16.msra.mxu0 0
        %1279 = vmatprep.subr.bf16.mxu0 0
        %1280 = vmatpush1.bf16.msra.mxu0 0
        %1281 = vmatprep.subr.bf16.mxu0 0
        %1282 = vmatpush1.bf16.msra.mxu0 0
        %1283 = vmatprep.subr.bf16.mxu0 0
        %1284 = vmatpush1.bf16.msra.mxu0 0
        %1285 = vmatprep.subr.bf16.mxu0 0
        %1286 = vmatpush1.bf16.msra.mxu0 0
        %1287 = vmatprep.mubr.bf16.mxu0 0
        %1288 = vmatmul.mubr.bf16.gmra.mrb[0].mxu0 %v1253
        %v1289 = vpop.f32.mrb[0].mxu0
        %v1290 = vadd.f32 0.0, %v1289
        %v1291 = vpop.f32.mrb[0].mxu0
        %v1292 = vpop.f32.mrb[0].mxu0
        %v1293 = vpop.f32.mrb[0].mxu0
        %1294 = vdwg.mxu0
        %v1295 = vpack.c.bf16 %v1290, %v1290
        %v1298 = vunpack.c.l.b16 %v1055
        %v1299 = vunpack.c.l.b16 %v1056
        %v1300 = vpack.c.b16 %v1299, %v1298
        %v1303 = vsel %vm1057, %v1295, 0
        %1305 = vmatprep.subr.bf16.mxu0 0
        %1306 = vmatpush1.bf16.msra.mxu0 %v1300
        %1307 = vmatprep.subr.bf16.mxu0 0
        %1308 = vmatpush1.bf16.msra.mxu0 0
        %1309 = vmatprep.subr.bf16.mxu0 0
        %1310 = vmatpush1.bf16.msra.mxu0 0
        %1311 = vmatprep.subr.bf16.mxu0 0
        %1312 = vmatpush1.bf16.msra.mxu0 0
        %1313 = vmatprep.subr.bf16.mxu0 0
        %1314 = vmatpush1.bf16.msra.mxu0 0
        %1315 = vmatprep.subr.bf16.mxu0 0
        %1316 = vmatpush1.bf16.msra.mxu0 0
        %1317 = vmatprep.subr.bf16.mxu0 0
        %1318 = vmatpush1.bf16.msra.mxu0 0
        %1319 = vmatprep.subr.bf16.mxu0 0
        %1320 = vmatpush1.bf16.msra.mxu0 0
        %1321 = vmatprep.subr.bf16.mxu0 0
        %1322 = vmatpush1.bf16.msra.mxu0 0
        %1323 = vmatprep.subr.bf16.mxu0 0
        %1324 = vmatpush1.bf16.msra.mxu0 0
        %1325 = vmatprep.subr.bf16.mxu0 0
        %1326 = vmatpush1.bf16.msra.mxu0 0
        %1327 = vmatprep.subr.bf16.mxu0 0
        %1328 = vmatpush1.bf16.msra.mxu0 0
        %1329 = vmatprep.subr.bf16.mxu0 0
        %1330 = vmatpush1.bf16.msra.mxu0 0
        %1331 = vmatprep.subr.bf16.mxu0 0
        %1332 = vmatpush1.bf16.msra.mxu0 0
        %1333 = vmatprep.subr.bf16.mxu0 0
        %1334 = vmatpush1.bf16.msra.mxu0 0
        %1335 = vmatprep.subr.bf16.mxu0 0
        %1336 = vmatpush1.bf16.msra.mxu0 0
        %1337 = vmatprep.mubr.bf16.mxu0 0
        %1338 = vmatmul.mubr.bf16.gmra.mrb[0].mxu0 %v1303
        %v1339 = vpop.f32.mrb[0].mxu0
        %v1340 = vadd.f32 0.0, %v1339
        %v1341 = vpop.f32.mrb[0].mxu0
        %v1342 = vpop.f32.mrb[0].mxu0
        %v1343 = vpop.f32.mrb[0].mxu0
        %1344 = vdwg.mxu0
        %v1345 = vld [vmem:[%s971] sm:$0xff]
        %vm1346 = vcmp.gt.f32.partialorder %v1340, 0.0
        %v1347 = vsel %vm1346, 1, 0
        %v1348 = vcvt.s32.f32 %v1347
        %v1349 = vadd.f32 %v1345, %v1348
        %1350 = vst.msk [vmem:[%s971] sm:$0xff] %vm1250, %v1349
        %v1351 = vld [vmem:[%s13] sm:$0x3]
        %v1352 = vld [vmem:[%s14] sm:$0xf]
        %v1353 = vld [vmem:[%s14 + $0x4] sm:$0xf]
        %v1354 = vld [vmem:[%s15] sm:$0x3]
        %v1355 = vld [vmem:[%s16] sm:$0xf]
        %v1356 = vld [vmem:[%s16 + $0x4] sm:$0xf]
        %v1358 = vsel %vm1057, %v1351, 0
        %1360 = vmatprep.subr.bf16.mxu0 0
        %1361 = vmatpush1.bf16.msra.mxu0 %v1046
        %1362 = vmatprep.subr.bf16.mxu0 0
        %1363 = vmatpush1.bf16.msra.mxu0 0
        %1364 = vmatprep.subr.bf16.mxu0 0
        %1365 = vmatpush1.bf16.msra.mxu0 0
        %1366 = vmatprep.subr.bf16.mxu0 0
        %1367 = vmatpush1.bf16.msra.mxu0 0
        %1368 = vmatprep.subr.bf16.mxu0 0
        %1369 = vmatpush1.bf16.msra.mxu0 0
        %1370 = vmatprep.subr.bf16.mxu0 0
        %1371 = vmatpush1.bf16.msra.mxu0 0
        %1372 = vmatprep.subr.bf16.mxu0 0
        %1373 = vmatpush1.bf16.msra.mxu0 0
        %1374 = vmatprep.subr.bf16.mxu0 0
        %1375 = vmatpush1.bf16.msra.mxu0 0
        %1376 = vmatprep.subr.bf16.mxu0 0
        %1377 = vmatpush1.bf16.msra.mxu0 0
        %1378 = vmatprep.subr.bf16.mxu0 0
        %1379 = vmatpush1.bf16.msra.mxu0 0
        %1380 = vmatprep.subr.bf16.mxu0 0
        %1381 = vmatpush1.bf16.msra.mxu0 0
        %1382 = vmatprep.subr.bf16.mxu0 0
        %1383 = vmatpush1.bf16.msra.mxu0 0
        %1384 = vmatprep.subr.bf16.mxu0 0
        %1385 = vmatpush1.bf16.msra.mxu0 0
        %1386 = vmatprep.subr.bf16.mxu0 0
        %1387 = vmatpush1.bf16.msra.mxu0 0
        %1388 = vmatprep.subr.bf16.mxu0 0
        %1389 = vmatpush1.bf16.msra.mxu0 0
        %1390 = vmatprep.subr.bf16.mxu0 0
        %1391 = vmatpush1.bf16.msra.mxu0 0
        %1392 = vmatprep.mubr.bf16.mxu0 0
        %1393 = vmatmul.mubr.bf16.gmra.mrb[0].mxu0 %v1358
        %v1394 = vpop.f32.mrb[0].mxu0
        %v1395 = vadd.f32 0.0, %v1394
        %v1396 = vpop.f32.mrb[0].mxu0
        %v1397 = vpop.f32.mrb[0].mxu0
        %v1398 = vpop.f32.mrb[0].mxu0
        %1399 = vdwg.mxu0
        %v1400 = vpack.c.bf16 %v1395, %v1395
        %v1403 = vunpack.c.l.b16 %v1352
        %v1404 = vunpack.c.l.b16 %v1353
        %v1405 = vpack.c.b16 %v1404, %v1403
        %v1408 = vsel %vm1057, %v1400, 0
        %1410 = vmatprep.subr.bf16.mxu0 0
        %1411 = vmatpush1.bf16.msra.mxu0 %v1405
        %1412 = vmatprep.subr.bf16.mxu0 0
        %1413 = vmatpush1.bf16.msra.mxu0 0
        %1414 = vmatprep.subr.bf16.mxu0 0
        %1415 = vmatpush1.bf16.msra.mxu0 0
        %1416 = vmatprep.subr.bf16.mxu0 0
        %1417 = vmatpush1.bf16.msra.mxu0 0
        %1418 = vmatprep.subr.bf16.mxu0 0
        %1419 = vmatpush1.bf16.msra.mxu0 0
        %1420 = vmatprep.subr.bf16.mxu0 0
        %1421 = vmatpush1.bf16.msra.mxu0 0
        %1422 = vmatprep.subr.bf16.mxu0 0
        %1423 = vmatpush1.bf16.msra.mxu0 0
        %1424 = vmatprep.subr.bf16.mxu0 0
        %1425 = vmatpush1.bf16.msra.mxu0 0
        %1426 = vmatprep.subr.bf16.mxu0 0
        %1427 = vmatpush1.bf16.msra.mxu0 0
        %1428 = vmatprep.subr.bf16.mxu0 0
        %1429 = vmatpush1.bf16.msra.mxu0 0
        %1430 = vmatprep.subr.bf16.mxu0 0
        %1431 = vmatpush1.bf16.msra.mxu0 0
        %1432 = vmatprep.subr.bf16.mxu0 0
        %1433 = vmatpush1.bf16.msra.mxu0 0
        %1434 = vmatprep.subr.bf16.mxu0 0
        %1435 = vmatpush1.bf16.msra.mxu0 0
        %1436 = vmatprep.subr.bf16.mxu0 0
        %1437 = vmatpush1.bf16.msra.mxu0 0
        %1438 = vmatprep.subr.bf16.mxu0 0
        %1439 = vmatpush1.bf16.msra.mxu0 0
        %1440 = vmatprep.subr.bf16.mxu0 0
        %1441 = vmatpush1.bf16.msra.mxu0 0
        %1442 = vmatprep.mubr.bf16.mxu0 0
        %1443 = vmatmul.mubr.bf16.gmra.mrb[0].mxu0 %v1408
        %v1444 = vpop.f32.mrb[0].mxu0
        %v1445 = vadd.f32 0.0, %v1444
        %v1446 = vpop.f32.mrb[0].mxu0
        %v1447 = vpop.f32.mrb[0].mxu0
        %v1448 = vpop.f32.mrb[0].mxu0
        %1449 = vdwg.mxu0
        %1450 = vmatprep.subr.bf16.mxu0 0
        %1451 = vmatpush1.bf16.msra.mxu0 %v1047
        %1452 = vmatprep.subr.bf16.mxu0 0
        %1453 = vmatpush1.bf16.msra.mxu0 0
        %1454 = vmatprep.subr.bf16.mxu0 0
        %1455 = vmatpush1.bf16.msra.mxu0 0
        %1456 = vmatprep.subr.bf16.mxu0 0
        %1457 = vmatpush1.bf16.msra.mxu0 0
        %1458 = vmatprep.subr.bf16.mxu0 0
        %1459 = vmatpush1.bf16.msra.mxu0 0
        %1460 = vmatprep.subr.bf16.mxu0 0
        %1461 = vmatpush1.bf16.msra.mxu0 0
        %1462 = vmatprep.subr.bf16.mxu0 0
        %1463 = vmatpush1.bf16.msra.mxu0 0
        %1464 = vmatprep.subr.bf16.mxu0 0
        %1465 = vmatpush1.bf16.msra.mxu0 0
        %1466 = vmatprep.subr.bf16.mxu0 0
        %1467 = vmatpush1.bf16.msra.mxu0 0
        %1468 = vmatprep.subr.bf16.mxu0 0
        %1469 = vmatpush1.bf16.msra.mxu0 0
        %1470 = vmatprep.subr.bf16.mxu0 0
        %1471 = vmatpush1.bf16.msra.mxu0 0
        %1472 = vmatprep.subr.bf16.mxu0 0
        %1473 = vmatpush1.bf16.msra.mxu0 0
        %1474 = vmatprep.subr.bf16.mxu0 0
        %1475 = vmatpush1.bf16.msra.mxu0 0
        %1476 = vmatprep.subr.bf16.mxu0 0
        %1477 = vmatpush1.bf16.msra.mxu0 0
        %1478 = vmatprep.subr.bf16.mxu0 0
        %1479 = vmatpush1.bf16.msra.mxu0 0
        %1480 = vmatprep.subr.bf16.mxu0 0
        %1481 = vmatpush1.bf16.msra.mxu0 0
        %1482 = vmatprep.mubr.bf16.mxu0 0
        %1483 = vmatmul.mubr.bf16.gmra.mrb[0].mxu0 %v1358
        %v1484 = vpop.f32.mrb[0].mxu0
        %v1485 = vadd.f32 0.0, %v1484
        %v1486 = vpop.f32.mrb[0].mxu0
        %v1487 = vpop.f32.mrb[0].mxu0
        %v1488 = vpop.f32.mrb[0].mxu0
        %1489 = vdwg.mxu0
        %v1490 = vpack.c.bf16 %v1485, %v1485
        %v1492 = vsel %vm1057, %v1490, 0
        %1494 = vmatprep.subr.bf16.mxu0 0
        %1495 = vmatpush1.bf16.msra.mxu0 %v1405
        %1496 = vmatprep.subr.bf16.mxu0 0
        %1497 = vmatpush1.bf16.msra.mxu0 0
        %1498 = vmatprep.subr.bf16.mxu0 0
        %1499 = vmatpush1.bf16.msra.mxu0 0
        %1500 = vmatprep.subr.bf16.mxu0 0
        %1501 = vmatpush1.bf16.msra.mxu0 0
        %1502 = vmatprep.subr.bf16.mxu0 0
        %1503 = vmatpush1.bf16.msra.mxu0 0
        %1504 = vmatprep.subr.bf16.mxu0 0
        %1505 = vmatpush1.bf16.msra.mxu0 0
        %1506 = vmatprep.subr.bf16.mxu0 0
        %1507 = vmatpush1.bf16.msra.mxu0 0
        %1508 = vmatprep.subr.bf16.mxu0 0
        %1509 = vmatpush1.bf16.msra.mxu0 0
        %1510 = vmatprep.subr.bf16.mxu0 0
        %1511 = vmatpush1.bf16.msra.mxu0 0
        %1512 = vmatprep.subr.bf16.mxu0 0
        %1513 = vmatpush1.bf16.msra.mxu0 0
        %1514 = vmatprep.subr.bf16.mxu0 0
        %1515 = vmatpush1.bf16.msra.mxu0 0
        %1516 = vmatprep.subr.bf16.mxu0 0
        %1517 = vmatpush1.bf16.msra.mxu0 0
        %1518 = vmatprep.subr.bf16.mxu0 0
        %1519 = vmatpush1.bf16.msra.mxu0 0
        %1520 = vmatprep.subr.bf16.mxu0 0
        %1521 = vmatpush1.bf16.msra.mxu0 0
        %1522 = vmatprep.subr.bf16.mxu0 0
        %1523 = vmatpush1.bf16.msra.mxu0 0
        %1524 = vmatprep.subr.bf16.mxu0 0
        %1525 = vmatpush1.bf16.msra.mxu0 0
        %1526 = vmatprep.mubr.bf16.mxu0 0
        %1527 = vmatmul.mubr.bf16.gmra.mrb[0].mxu0 %v1492
        %v1528 = vpop.f32.mrb[0].mxu0
        %v1529 = vadd.f32 0.0, %v1528
        %v1530 = vpop.f32.mrb[0].mxu0
        %v1531 = vpop.f32.mrb[0].mxu0
        %v1532 = vpop.f32.mrb[0].mxu0
        %1533 = vdwg.mxu0
        %v1534 = vld [vmem:[%s1023] sm:$0xf]
        %v1535 = vsub.f32 %v1445, %v1534
        %v1536 = vld [vmem:[%s878] sm:$0xf]
        %v1537 = vsub.f32 %v1529, %v1536
        %v1538 = vld [vmem:[%s992] sm:$0xf]
        %v1539 = vand.u32 2147483647, %v1535
        %v1540 = vand.u32 2147483647, %v1537
        %v1541 = vadd.f32 %v1539, %v1540
        %v1542 = vadd.f32 %v1541, 0.01
        %v1543 = vlog2.pop %v1542
        %v1544 = vmul.f32 %v1543, 0.6931472
        %v1545 = vmul.f32 %v1544, 0.4
        %v1546 = vmul.f32 %v1545, 1.442695
        %v1547 = vpow.pop %v1546
        %v1548 = vadd.f32 %v1538, %v1547
        %vm1549 = vcmask 27648
        %1550 = vst.msk [vmem:[%s992] sm:$0xf] %vm1549, %v1548
        %v1552 = vsel %vm1057, %v1354, 0
        %1554 = vmatprep.subr.bf16.mxu0 0
        %1555 = vmatpush1.bf16.msra.mxu0 %v1050
        %1556 = vmatprep.subr.bf16.mxu0 0
        %1557 = vmatpush1.bf16.msra.mxu0 0
        %1558 = vmatprep.subr.bf16.mxu0 0
        %1559 = vmatpush1.bf16.msra.mxu0 0
        %1560 = vmatprep.subr.bf16.mxu0 0
        %1561 = vmatpush1.bf16.msra.mxu0 0
        %1562 = vmatprep.subr.bf16.mxu0 0
        %1563 = vmatpush1.bf16.msra.mxu0 0
        %1564 = vmatprep.subr.bf16.mxu0 0
        %1565 = vmatpush1.bf16.msra.mxu0 0
        %1566 = vmatprep.subr.bf16.mxu0 0
        %1567 = vmatpush1.bf16.msra.mxu0 0
        %1568 = vmatprep.subr.bf16.mxu0 0
        %1569 = vmatpush1.bf16.msra.mxu0 0
        %1570 = vmatprep.subr.bf16.mxu0 0
        %1571 = vmatpush1.bf16.msra.mxu0 0
        %1572 = vmatprep.subr.bf16.mxu0 0
        %1573 = vmatpush1.bf16.msra.mxu0 0
        %1574 = vmatprep.subr.bf16.mxu0 0
        %1575 = vmatpush1.bf16.msra.mxu0 0
        %1576 = vmatprep.subr.bf16.mxu0 0
        %1577 = vmatpush1.bf16.msra.mxu0 0
        %1578 = vmatprep.subr.bf16.mxu0 0
        %1579 = vmatpush1.bf16.msra.mxu0 0
        %1580 = vmatprep.subr.bf16.mxu0 0
        %1581 = vmatpush1.bf16.msra.mxu0 0
        %1582 = vmatprep.subr.bf16.mxu0 0
        %1583 = vmatpush1.bf16.msra.mxu0 0
        %1584 = vmatprep.subr.bf16.mxu0 0
        %1585 = vmatpush1.bf16.msra.mxu0 0
        %1586 = vmatprep.mubr.bf16.mxu0 0
        %1587 = vmatmul.mubr.bf16.gmra.mrb[0].mxu0 %v1552
        %v1588 = vpop.f32.mrb[0].mxu0
        %v1589 = vadd.f32 0.0, %v1588
        %v1590 = vpop.f32.mrb[0].mxu0
        %v1591 = vpop.f32.mrb[0].mxu0
        %v1592 = vpop.f32.mrb[0].mxu0
        %1593 = vdwg.mxu0
        %v1594 = vpack.c.bf16 %v1589, %v1589
        %v1597 = vunpack.c.l.b16 %v1355
        %v1598 = vunpack.c.l.b16 %v1356
        %v1599 = vpack.c.b16 %v1598, %v1597
        %v1602 = vsel %vm1057, %v1594, 0
        %1604 = vmatprep.subr.bf16.mxu0 0
        %1605 = vmatpush1.bf16.msra.mxu0 %v1599
        %1606 = vmatprep.subr.bf16.mxu0 0
        %1607 = vmatpush1.bf16.msra.mxu0 0
        %1608 = vmatprep.subr.bf16.mxu0 0
        %1609 = vmatpush1.bf16.msra.mxu0 0
        %1610 = vmatprep.subr.bf16.mxu0 0
        %1611 = vmatpush1.bf16.msra.mxu0 0
        %1612 = vmatprep.subr.bf16.mxu0 0
        %1613 = vmatpush1.bf16.msra.mxu0 0
        %1614 = vmatprep.subr.bf16.mxu0 0
        %1615 = vmatpush1.bf16.msra.mxu0 0
        %1616 = vmatprep.subr.bf16.mxu0 0
        %1617 = vmatpush1.bf16.msra.mxu0 0
        %1618 = vmatprep.subr.bf16.mxu0 0
        %1619 = vmatpush1.bf16.msra.mxu0 0
        %1620 = vmatprep.subr.bf16.mxu0 0
        %1621 = vmatpush1.bf16.msra.mxu0 0
        %1622 = vmatprep.subr.bf16.mxu0 0
        %1623 = vmatpush1.bf16.msra.mxu0 0
        %1624 = vmatprep.subr.bf16.mxu0 0
        %1625 = vmatpush1.bf16.msra.mxu0 0
        %1626 = vmatprep.subr.bf16.mxu0 0
        %1627 = vmatpush1.bf16.msra.mxu0 0
        %1628 = vmatprep.subr.bf16.mxu0 0
        %1629 = vmatpush1.bf16.msra.mxu0 0
        %1630 = vmatprep.subr.bf16.mxu0 0
        %1631 = vmatpush1.bf16.msra.mxu0 0
        %1632 = vmatprep.subr.bf16.mxu0 0
        %1633 = vmatpush1.bf16.msra.mxu0 0
        %1634 = vmatprep.subr.bf16.mxu0 0
        %1635 = vmatpush1.bf16.msra.mxu0 0
        %1636 = vmatprep.mubr.bf16.mxu0 0
        %1637 = vmatmul.mubr.bf16.gmra.mrb[0].mxu0 %v1602
        %v1638 = vpop.f32.mrb[0].mxu0
        %v1639 = vadd.f32 0.0, %v1638
        %v1640 = vpop.f32.mrb[0].mxu0
        %v1641 = vpop.f32.mrb[0].mxu0
        %v1642 = vpop.f32.mrb[0].mxu0
        %1643 = vdwg.mxu0
        %v1644 = vld [vmem:[%s978] sm:$0xf]
        %vm1645 = vcmp.gt.f32.partialorder %v1639, 0.0
        %v1646 = vsel %vm1645, 1, 0
        %v1647 = vcvt.s32.f32 %v1646
        %v1648 = vadd.f32 %v1644, %v1647
        %1649 = vst.msk [vmem:[%s978] sm:$0xf] %vm1549, %v1648
        %v1650 = vld [vmem:[%s19] sm:$0xf]
        %v1651 = vld [vmem:[%s19 + $0x4] sm:$0xf]
        %v1652 = vld [vmem:[%s20] sm:$0xf]
        %v1653 = vld [vmem:[%s1011] sm:$0xff]
        %v1654 = vpack.c.bf16 %v1653, %v1653
        %v1657 = vunpack.c.l.b16 %v1650
        %v1658 = vunpack.c.l.b16 %v1651
        %v1659 = vpack.c.b16 %v1658, %v1657
        %v1661 = vsel %vm1250, %v1659, 0
        %vm1663 = vcmask 1043456
        %v1665 = vsel %vm1663, %v1654, 0
        %1667 = vmatprep.subr.bf16.mxu0 0
        %1668 = vmatpush1.bf16.msra.mxu0 %v1665
        %1669 = vmatprep.subr.bf16.mxu0 0
        %1670 = vmatpush1.bf16.msra.mxu0 0
        %1671 = vmatprep.subr.bf16.mxu0 0
        %1672 = vmatpush1.bf16.msra.mxu0 0
        %1673 = vmatprep.subr.bf16.mxu0 0
        %1674 = vmatpush1.bf16.msra.mxu0 0
        %1675 = vmatprep.subr.bf16.mxu0 0
        %1676 = vmatpush1.bf16.msra.mxu0 0
        %1677 = vmatprep.subr.bf16.mxu0 0
        %1678 = vmatpush1.bf16.msra.mxu0 0
        %1679 = vmatprep.subr.bf16.mxu0 0
        %1680 = vmatpush1.bf16.msra.mxu0 0
        %1681 = vmatprep.subr.bf16.mxu0 0
        %1682 = vmatpush1.bf16.msra.mxu0 0
        %1683 = vmatprep.subr.bf16.mxu0 0
        %1684 = vmatpush1.bf16.msra.mxu0 0
        %1685 = vmatprep.subr.bf16.mxu0 0
        %1686 = vmatpush1.bf16.msra.mxu0 0
        %1687 = vmatprep.subr.bf16.mxu0 0
        %1688 = vmatpush1.bf16.msra.mxu0 0
        %1689 = vmatprep.subr.bf16.mxu0 0
        %1690 = vmatpush1.bf16.msra.mxu0 0
        %1691 = vmatprep.subr.bf16.mxu0 0
        %1692 = vmatpush1.bf16.msra.mxu0 0
        %1693 = vmatprep.subr.bf16.mxu0 0
        %1694 = vmatpush1.bf16.msra.mxu0 0
        %1695 = vmatprep.subr.bf16.mxu0 0
        %1696 = vmatpush1.bf16.msra.mxu0 0
        %1697 = vmatprep.subr.bf16.mxu0 0
        %1698 = vmatpush1.bf16.msra.mxu0 0
        %1699 = vmatprep.mubr.bf16.mxu0 0
        %1700 = vmatmul.mubr.bf16.gmra.mrb[0].mxu0 %v1661
        %v1701 = vpop.f32.mrb[0].mxu0
        %v1702 = vadd.f32 0.0, %v1701
        %v1703 = vpop.f32.mrb[0].mxu0
        %v1704 = vpop.f32.mrb[0].mxu0
        %v1705 = vadd.f32 0.0, %v1704
        %v1706 = vpop.f32.mrb[0].mxu0
        %1707 = vdwg.mxu0
        %v1708 = vpack.c.bf16 %v1705, %v1702
        %v1710 = vsel %vm1250, %v1708, 0
        %v1713 = vsel %vm1663, %v1652, 0
        %1715 = vmatprep.subr.bf16.mxu0 0
        %1716 = vmatpush1.bf16.msra.mxu0 %v1713
        %1717 = vmatprep.subr.bf16.mxu0 0
        %1718 = vmatpush1.bf16.msra.mxu0 0
        %1719 = vmatprep.subr.bf16.mxu0 0
        %1720 = vmatpush1.bf16.msra.mxu0 0
        %1721 = vmatprep.subr.bf16.mxu0 0
        %1722 = vmatpush1.bf16.msra.mxu0 0
        %1723 = vmatprep.subr.bf16.mxu0 0
        %1724 = vmatpush1.bf16.msra.mxu0 0
        %1725 = vmatprep.subr.bf16.mxu0 0
        %1726 = vmatpush1.bf16.msra.mxu0 0
        %1727 = vmatprep.subr.bf16.mxu0 0
        %1728 = vmatpush1.bf16.msra.mxu0 0
        %1729 = vmatprep.subr.bf16.mxu0 0
        %1730 = vmatpush1.bf16.msra.mxu0 0
        %1731 = vmatprep.subr.bf16.mxu0 0
        %1732 = vmatpush1.bf16.msra.mxu0 0
        %1733 = vmatprep.subr.bf16.mxu0 0
        %1734 = vmatpush1.bf16.msra.mxu0 0
        %1735 = vmatprep.subr.bf16.mxu0 0
        %1736 = vmatpush1.bf16.msra.mxu0 0
        %1737 = vmatprep.subr.bf16.mxu0 0
        %1738 = vmatpush1.bf16.msra.mxu0 0
        %1739 = vmatprep.subr.bf16.mxu0 0
        %1740 = vmatpush1.bf16.msra.mxu0 0
        %1741 = vmatprep.subr.bf16.mxu0 0
        %1742 = vmatpush1.bf16.msra.mxu0 0
        %1743 = vmatprep.subr.bf16.mxu0 0
        %1744 = vmatpush1.bf16.msra.mxu0 0
        %1745 = vmatprep.subr.bf16.mxu0 0
        %1746 = vmatpush1.bf16.msra.mxu0 0
        %1747 = vmatprep.mubr.bf16.mxu0 0
        %1748 = vmatmul.mubr.bf16.gmra.mrb[0].mxu0 %v1710
        %v1749 = vpop.f32.mrb[0].mxu0
        %v1750 = vadd.f32 0.0, %v1749
        %v1751 = vpop.f32.mrb[0].mxu0
        %v1752 = vpop.f32.mrb[0].mxu0
        %v1753 = vadd.f32 0.0, %v1752
        %v1754 = vpop.f32.mrb[0].mxu0
        %1755 = vdwg.mxu0
        %v1756 = vld [vmem:[%s1017] sm:$0xff]
        %v1757 = vpack.c.bf16 %v1756, %v1756
        %v1759 = vsel %vm1663, %v1757, 0
        %1761 = vmatprep.subr.bf16.mxu0 0
        %1762 = vmatpush1.bf16.msra.mxu0 %v1759
        %1763 = vmatprep.subr.bf16.mxu0 0
        %1764 = vmatpush1.bf16.msra.mxu0 0
        %1765 = vmatprep.subr.bf16.mxu0 0
        %1766 = vmatpush1.bf16.msra.mxu0 0
        %1767 = vmatprep.subr.bf16.mxu0 0
        %1768 = vmatpush1.bf16.msra.mxu0 0
        %1769 = vmatprep.subr.bf16.mxu0 0
        %1770 = vmatpush1.bf16.msra.mxu0 0
        %1771 = vmatprep.subr.bf16.mxu0 0
        %1772 = vmatpush1.bf16.msra.mxu0 0
        %1773 = vmatprep.subr.bf16.mxu0 0
        %1774 = vmatpush1.bf16.msra.mxu0 0
        %1775 = vmatprep.subr.bf16.mxu0 0
        %1776 = vmatpush1.bf16.msra.mxu0 0
        %1777 = vmatprep.subr.bf16.mxu0 0
        %1778 = vmatpush1.bf16.msra.mxu0 0
        %1779 = vmatprep.subr.bf16.mxu0 0
        %1780 = vmatpush1.bf16.msra.mxu0 0
        %1781 = vmatprep.subr.bf16.mxu0 0
        %1782 = vmatpush1.bf16.msra.mxu0 0
        %1783 = vmatprep.subr.bf16.mxu0 0
        %1784 = vmatpush1.bf16.msra.mxu0 0
        %1785 = vmatprep.subr.bf16.mxu0 0
        %1786 = vmatpush1.bf16.msra.mxu0 0
        %1787 = vmatprep.subr.bf16.mxu0 0
        %1788 = vmatpush1.bf16.msra.mxu0 0
        %1789 = vmatprep.subr.bf16.mxu0 0
        %1790 = vmatpush1.bf16.msra.mxu0 0
        %1791 = vmatprep.subr.bf16.mxu0 0
        %1792 = vmatpush1.bf16.msra.mxu0 0
        %1793 = vmatprep.mubr.bf16.mxu0 0
        %1794 = vmatmul.mubr.bf16.gmra.mrb[0].mxu0 %v1661
        %v1795 = vpop.f32.mrb[0].mxu0
        %v1796 = vadd.f32 0.0, %v1795
        %v1797 = vpop.f32.mrb[0].mxu0
        %v1798 = vpop.f32.mrb[0].mxu0
        %v1799 = vadd.f32 0.0, %v1798
        %v1800 = vpop.f32.mrb[0].mxu0
        %1801 = vdwg.mxu0
        %v1802 = vpack.c.bf16 %v1799, %v1796
        %v1804 = vsel %vm1250, %v1802, 0
        %1806 = vmatprep.subr.bf16.mxu0 0
        %1807 = vmatpush1.bf16.msra.mxu0 %v1713
        %1808 = vmatprep.subr.bf16.mxu0 0
        %1809 = vmatpush1.bf16.msra.mxu0 0
        %1810 = vmatprep.subr.bf16.mxu0 0
        %1811 = vmatpush1.bf16.msra.mxu0 0
        %1812 = vmatprep.subr.bf16.mxu0 0
        %1813 = vmatpush1.bf16.msra.mxu0 0
        %1814 = vmatprep.subr.bf16.mxu0 0
        %1815 = vmatpush1.bf16.msra.mxu0 0
        %1816 = vmatprep.subr.bf16.mxu0 0
        %1817 = vmatpush1.bf16.msra.mxu0 0
        %1818 = vmatprep.subr.bf16.mxu0 0
        %1819 = vmatpush1.bf16.msra.mxu0 0
        %1820 = vmatprep.subr.bf16.mxu0 0
        %1821 = vmatpush1.bf16.msra.mxu0 0
        %1822 = vmatprep.subr.bf16.mxu0 0
        %1823 = vmatpush1.bf16.msra.mxu0 0
        %1824 = vmatprep.subr.bf16.mxu0 0
        %1825 = vmatpush1.bf16.msra.mxu0 0
        %1826 = vmatprep.subr.bf16.mxu0 0
        %1827 = vmatpush1.bf16.msra.mxu0 0
        %1828 = vmatprep.subr.bf16.mxu0 0
        %1829 = vmatpush1.bf16.msra.mxu0 0
        %1830 = vmatprep.subr.bf16.mxu0 0
        %1831 = vmatpush1.bf16.msra.mxu0 0
        %1832 = vmatprep.subr.bf16.mxu0 0
        %1833 = vmatpush1.bf16.msra.mxu0 0
        %1834 = vmatprep.subr.bf16.mxu0 0
        %1835 = vmatpush1.bf16.msra.mxu0 0
        %1836 = vmatprep.subr.bf16.mxu0 0
        %1837 = vmatpush1.bf16.msra.mxu0 0
        %1838 = vmatprep.mubr.bf16.mxu0 0
        %1839 = vmatmul.mubr.bf16.gmra.mrb[0].mxu0 %v1804
        %v1840 = vpop.f32.mrb[0].mxu0
        %v1841 = vadd.f32 0.0, %v1840
        %v1842 = vpop.f32.mrb[0].mxu0
        %v1843 = vpop.f32.mrb[0].mxu0
        %v1844 = vadd.f32 0.0, %v1843
        %v1845 = vpop.f32.mrb[0].mxu0
        %1846 = vdwg.mxu0
        %v1847 = vsub.f32 %v1042, %v1750
        %v1848 = vsub.f32 %v1043, %v1753
        %v1849 = vsub.f32 %v1044, %v1841
        %v1850 = vsub.f32 %v1045, %v1844
        %v1851 = vand.u32 2147483647, %v1847
        %v1852 = vand.u32 2147483647, %v1848
        %v1853 = vand.u32 2147483647, %v1849
        %v1854 = vand.u32 2147483647, %v1850
        %v1855 = vadd.f32 %v1851, %v1853
        %v1856 = vadd.f32 %v1852, %v1854
        %v1857 = vadd.f32 %v1855, 0.01
        %v1858 = vadd.f32 %v1856, 0.01
        %v1859 = vlog2.pop %v1857
        %v1860 = vmul.f32 %v1859, 0.6931472
        %v1861 = vlog2.pop %v1858
        %v1862 = vmul.f32 %v1861, 0.6931472
        %v1863 = vmul.f32 %v1860, 0.4
        %v1864 = vmul.f32 %v1862, 0.4
        %v1865 = vmul.f32 %v1863, 1.442695
        %v1866 = vpow.pop %v1865
        %v1867 = vmul.f32 %v1864, 1.442695
        %v1868 = vpow.pop %v1867
        %s1869 = sld [smem:[#allocation2]]
        %v1870 = vsel %vm1057, %v1866, 0.0
        %v1871 = vsel %vm1057, %v1868, 0.0
        %v1872 = vadd.f32 %v1870, %v1871
        %1873 = vadd.xlane.f32.xlu0 %v1872
        %v1874 = vpop.xlane.xlu0 %1873
        %v1875 = vrot.slane %v1874, 4
        %v1876 = vadd.f32 %v1874, %v1875
        %v1877 = vrot.slane %v1876, 2
        %v1878 = vadd.f32 %v1876, %v1877
        %v1879 = vrot.slane %v1878, 1
        %v1880 = vadd.f32 %v1878, %v1879
        %s1881 = vtos %v1880
        %s1882 = sadd.f32 %s1869, %s1881
        %s1883 = scalar_lea.smem [#allocation2], 0
        %1884 = sst [smem:[%s1883]] %s1882
        // Predicated region
        $region125: #{tpu_custom_call.1} parent=103 // pred_check
          %p1885 = pneg %p1030
        $region126: #{tpu_custom_call.1} parent=103 // pred_check_branch
          %1887 = sbr.rel (%p1885) target = $region128
        $region127: #{tpu_custom_call.1} parent=103 // pred_region
          %v1888 = vld [vmem:[%s11] sm:$0xf]
          %v1889 = vld [vmem:[%s12] sm:$0xf]
          %v1890 = vld [vmem:[%s971] sm:$0xff]
          %v1891 = vpack.c.bf16 %v1890, %v1890
          %v1893 = vsel %vm1250, %v1888, 0
          %v1896 = vsel %vm1663, %v1891, 0
          %1898 = vmatprep.subr.bf16.mxu0 0
          %1899 = vmatpush1.bf16.msra.mxu0 %v1896
          %1900 = vmatprep.subr.bf16.mxu0 0
          %1901 = vmatpush1.bf16.msra.mxu0 0
          %1902 = vmatprep.subr.bf16.mxu0 0
          %1903 = vmatpush1.bf16.msra.mxu0 0
          %1904 = vmatprep.subr.bf16.mxu0 0
          %1905 = vmatpush1.bf16.msra.mxu0 0
          %1906 = vmatprep.subr.bf16.mxu0 0
          %1907 = vmatpush1.bf16.msra.mxu0 0
          %1908 = vmatprep.subr.bf16.mxu0 0
          %1909 = vmatpush1.bf16.msra.mxu0 0
          %1910 = vmatprep.subr.bf16.mxu0 0
          %1911 = vmatpush1.bf16.msra.mxu0 0
          %1912 = vmatprep.subr.bf16.mxu0 0
          %1913 = vmatpush1.bf16.msra.mxu0 0
          %1914 = vmatprep.subr.bf16.mxu0 0
          %1915 = vmatpush1.bf16.msra.mxu0 0
          %1916 = vmatprep.subr.bf16.mxu0 0
          %1917 = vmatpush1.bf16.msra.mxu0 0
          %1918 = vmatprep.subr.bf16.mxu0 0
          %1919 = vmatpush1.bf16.msra.mxu0 0
          %1920 = vmatprep.subr.bf16.mxu0 0
          %1921 = vmatpush1.bf16.msra.mxu0 0
          %1922 = vmatprep.subr.bf16.mxu0 0
          %1923 = vmatpush1.bf16.msra.mxu0 0
          %1924 = vmatprep.subr.bf16.mxu0 0
          %1925 = vmatpush1.bf16.msra.mxu0 0
          %1926 = vmatprep.subr.bf16.mxu0 0
          %1927 = vmatpush1.bf16.msra.mxu0 0
          %1928 = vmatprep.subr.bf16.mxu0 0
          %1929 = vmatpush1.bf16.msra.mxu0 0
          %1930 = vmatprep.mubr.bf16.mxu0 0
          %1931 = vmatmul.mubr.bf16.gmra.mrb[0].mxu0 %v1893
          %v1932 = vpop.f32.mrb[0].mxu0
          %v1933 = vadd.f32 0.0, %v1932
          %v1934 = vpop.f32.mrb[0].mxu0
          %v1935 = vpop.f32.mrb[0].mxu0
          %v1936 = vpop.f32.mrb[0].mxu0
          %1937 = vdwg.mxu0
          %v1938 = vpack.c.bf16 %v1933, %v1933
          %v1940 = vsel %vm1250, %v1938, 0
          %v1943 = vsel %vm1663, %v1889, 0
          %1945 = vmatprep.subr.bf16.mxu0 0
          %1946 = vmatpush1.bf16.msra.mxu0 %v1943
          %1947 = vmatprep.subr.bf16.mxu0 0
          %1948 = vmatpush1.bf16.msra.mxu0 0
          %1949 = vmatprep.subr.bf16.mxu0 0
          %1950 = vmatpush1.bf16.msra.mxu0 0
          %1951 = vmatprep.subr.bf16.mxu0 0
          %1952 = vmatpush1.bf16.msra.mxu0 0
          %1953 = vmatprep.subr.bf16.mxu0 0
          %1954 = vmatpush1.bf16.msra.mxu0 0
          %1955 = vmatprep.subr.bf16.mxu0 0
          %1956 = vmatpush1.bf16.msra.mxu0 0
          %1957 = vmatprep.subr.bf16.mxu0 0
          %1958 = vmatpush1.bf16.msra.mxu0 0
          %1959 = vmatprep.subr.bf16.mxu0 0
          %1960 = vmatpush1.bf16.msra.mxu0 0
          %1961 = vmatprep.subr.bf16.mxu0 0
          %1962 = vmatpush1.bf16.msra.mxu0 0
          %1963 = vmatprep.subr.bf16.mxu0 0
          %1964 = vmatpush1.bf16.msra.mxu0 0
          %1965 = vmatprep.subr.bf16.mxu0 0
          %1966 = vmatpush1.bf16.msra.mxu0 0
          %1967 = vmatprep.subr.bf16.mxu0 0
          %1968 = vmatpush1.bf16.msra.mxu0 0
          %1969 = vmatprep.subr.bf16.mxu0 0
          %1970 = vmatpush1.bf16.msra.mxu0 0
          %1971 = vmatprep.subr.bf16.mxu0 0
          %1972 = vmatpush1.bf16.msra.mxu0 0
          %1973 = vmatprep.subr.bf16.mxu0 0
          %1974 = vmatpush1.bf16.msra.mxu0 0
          %1975 = vmatprep.subr.bf16.mxu0 0
          %1976 = vmatpush1.bf16.msra.mxu0 0
          %1977 = vmatprep.mubr.bf16.mxu0 0
          %1978 = vmatmul.mubr.bf16.gmra.mrb[0].mxu0 %v1940
          %v1979 = vpop.f32.mrb[0].mxu0
          %v1980 = vadd.f32 0.0, %v1979
          %v1981 = vpop.f32.mrb[0].mxu0
          %v1982 = vpop.f32.mrb[0].mxu0
          %v1983 = vpop.f32.mrb[0].mxu0
          %1984 = vdwg.mxu0
          %1985 = vst.msk [vmem:[%s971] sm:$0xff] %vm1250, %v1980
          %v1986 = vld [vmem:[%s17] sm:$0x3]
          %v1987 = vld [vmem:[%s18] sm:$0x3]
          %v1988 = vld [vmem:[%s978] sm:$0xf]
          %v1989 = vpack.c.bf16 %v1988, %v1988
          %vm1990 = vcmask 31744
          %v1992 = vsel %vm1990, %v1986, 0
          %vm1994 = vcmask 1041408
          %v1996 = vsel %vm1994, %v1989, 0
          %1998 = vmatprep.subr.bf16.mxu0 0
          %1999 = vmatpush1.bf16.msra.mxu0 %v1996
          %2000 = vmatprep.subr.bf16.mxu0 0
          %2001 = vmatpush1.bf16.msra.mxu0 0
          %2002 = vmatprep.subr.bf16.mxu0 0
          %2003 = vmatpush1.bf16.msra.mxu0 0
          %2004 = vmatprep.subr.bf16.mxu0 0
          %2005 = vmatpush1.bf16.msra.mxu0 0
          %2006 = vmatprep.subr.bf16.mxu0 0
          %2007 = vmatpush1.bf16.msra.mxu0 0
          %2008 = vmatprep.subr.bf16.mxu0 0
          %2009 = vmatpush1.bf16.msra.mxu0 0
          %2010 = vmatprep.subr.bf16.mxu0 0
          %2011 = vmatpush1.bf16.msra.mxu0 0
          %2012 = vmatprep.subr.bf16.mxu0 0
          %2013 = vmatpush1.bf16.msra.mxu0 0
          %2014 = vmatprep.subr.bf16.mxu0 0
          %2015 = vmatpush1.bf16.msra.mxu0 0
          %2016 = vmatprep.subr.bf16.mxu0 0
          %2017 = vmatpush1.bf16.msra.mxu0 0
          %2018 = vmatprep.subr.bf16.mxu0 0
          %2019 = vmatpush1.bf16.msra.mxu0 0
          %2020 = vmatprep.subr.bf16.mxu0 0
          %2021 = vmatpush1.bf16.msra.mxu0 0
          %2022 = vmatprep.subr.bf16.mxu0 0
          %2023 = vmatpush1.bf16.msra.mxu0 0
          %2024 = vmatprep.subr.bf16.mxu0 0
          %2025 = vmatpush1.bf16.msra.mxu0 0
          %2026 = vmatprep.subr.bf16.mxu0 0
          %2027 = vmatpush1.bf16.msra.mxu0 0
          %2028 = vmatprep.subr.bf16.mxu0 0
          %2029 = vmatpush1.bf16.msra.mxu0 0
          %2030 = vmatprep.mubr.bf16.mxu0 0
          %2031 = vmatmul.mubr.bf16.gmra.mrb[0].mxu0 %v1992
          %v2032 = vpop.f32.mrb[0].mxu0
          %v2033 = vadd.f32 0.0, %v2032
          %v2034 = vpop.f32.mrb[0].mxu0
          %v2035 = vpop.f32.mrb[0].mxu0
          %v2036 = vpop.f32.mrb[0].mxu0
          %2037 = vdwg.mxu0
          %v2038 = vpack.c.bf16 %v2033, %v2033
          %v2040 = vsel %vm1990, %v2038, 0
          %v2043 = vsel %vm1994, %v1987, 0
          %2045 = vmatprep.subr.bf16.mxu0 0
          %2046 = vmatpush1.bf16.msra.mxu0 %v2043
          %2047 = vmatprep.subr.bf16.mxu0 0
          %2048 = vmatpush1.bf16.msra.mxu0 0
          %2049 = vmatprep.subr.bf16.mxu0 0
          %2050 = vmatpush1.bf16.msra.mxu0 0
          %2051 = vmatprep.subr.bf16.mxu0 0
          %2052 = vmatpush1.bf16.msra.mxu0 0
          %2053 = vmatprep.subr.bf16.mxu0 0
          %2054 = vmatpush1.bf16.msra.mxu0 0
          %2055 = vmatprep.subr.bf16.mxu0 0
          %2056 = vmatpush1.bf16.msra.mxu0 0
          %2057 = vmatprep.subr.bf16.mxu0 0
          %2058 = vmatpush1.bf16.msra.mxu0 0
          %2059 = vmatprep.subr.bf16.mxu0 0
          %2060 = vmatpush1.bf16.msra.mxu0 0
          %2061 = vmatprep.subr.bf16.mxu0 0
          %2062 = vmatpush1.bf16.msra.mxu0 0
          %2063 = vmatprep.subr.bf16.mxu0 0
          %2064 = vmatpush1.bf16.msra.mxu0 0
          %2065 = vmatprep.subr.bf16.mxu0 0
          %2066 = vmatpush1.bf16.msra.mxu0 0
          %2067 = vmatprep.subr.bf16.mxu0 0
          %2068 = vmatpush1.bf16.msra.mxu0 0
          %2069 = vmatprep.subr.bf16.mxu0 0
          %2070 = vmatpush1.bf16.msra.mxu0 0
          %2071 = vmatprep.subr.bf16.mxu0 0
          %2072 = vmatpush1.bf16.msra.mxu0 0
          %2073 = vmatprep.subr.bf16.mxu0 0
          %2074 = vmatpush1.bf16.msra.mxu0 0
          %2075 = vmatprep.subr.bf16.mxu0 0
          %2076 = vmatpush1.bf16.msra.mxu0 0
          %2077 = vmatprep.mubr.bf16.mxu0 0
          %2078 = vmatmul.mubr.bf16.gmra.mrb[0].mxu0 %v2040
          %v2079 = vpop.f32.mrb[0].mxu0
          %v2080 = vadd.f32 0.0, %v2079
          %v2081 = vpop.f32.mrb[0].mxu0
          %v2082 = vpop.f32.mrb[0].mxu0
          %v2083 = vpop.f32.mrb[0].mxu0
          %2084 = vdwg.mxu0
          %2085 = vst.msk [vmem:[%s978] sm:$0xf] %vm1549, %v2080
          %s2086 = sld [smem:[#allocation2]]
          %v2087 = vstv %s2086
          %vm2088 = vcmask 0
          %2089 = vst.msk [vmem:[%s1028] sm:$0x1] %vm2088, %v2087
        $region128: #{tpu_custom_call.1} parent=103 // pred_fallthru
          _
        %s2090 = sand.u32 %s563, 1
        %s2091 = scalar_lea.sflag [#allocation5], %s2090
        %s2092 = sand.u32 %s563, 1
        %s2093 = smul.addr %s2092, 8
        %s2094 = scalar_lea.vmem [#allocation11], %s2093
        %s2095 = sand.u32 %s53, 1
        %s2096 = scalar_lea.sflag [#allocation13], %s2095
        %s2097 = sand.u32 %s589, 1
        %s2098 = smul.addr %s2097, 4
        %s2099 = scalar_lea.vmem [#allocation12], %s2098
        %s2100 = sand.u32 %s53, 1
        %s2101 = scalar_lea.sflag [#allocation13], %s2100
        %s2102 = sand.u32 %s615, 1
        %s2103 = smul.addr %s2102, 8
        %s2104 = scalar_lea.vmem [#allocation14], %s2103
        %s2105 = sand.u32 %s641, 1
        %s2106 = scalar_lea.sflag [#allocation16], %s2105
        %s2107 = sand.u32 %s641, 1
        %s2108 = smul.addr %s2107, 4
        %s2109 = scalar_lea.vmem [#allocation15], %s2108
        %p2110 = scmp.lt.s32.totalorder %s57, 1
        %s2111 = scalar_select %p2110, %s57, 1
        %s2112 = scalar_lea.vmem %s25, %s2111
        // Predicated region
        $region129: #{tpu_custom_call.1} parent=103 // pred_check
          %p2113 = pneg %p573
        $region130: #{tpu_custom_call.1} parent=103 // pred_check_branch
          %2115 = sbr.rel (%p2113) target = $region132
        $region131: #{tpu_custom_call.1} parent=103 // pred_region
          %s2117 = ssub.s32 128, 128
          %2118 = vsyncadd %s2091, %s2117
          %s2119 = smul.addr %s57, 128
          %s2120 = scalar_lea.hbm %s21, %s2119
          %s2122 = sshll.u32 %s2094, 4
          %s2123 = int_to_ptr.vmem [resolvable:$true] %s2122
          %2125 = dma.vmem_to_hbm [thread:$0]  %s2123, 128, %s2120, %s2091
        $region132: #{tpu_custom_call.1} parent=103 // pred_fallthru
          _
        // Predicated region
        $region133: #{tpu_custom_call.1} parent=103 // pred_check
          %p2126 = pneg %p599
        $region134: #{tpu_custom_call.1} parent=103 // pred_check_branch
          %2128 = sbr.rel (%p2126) target = $region136
        $region135: #{tpu_custom_call.1} parent=103 // pred_region
          %s2130 = ssub.s32 64, 64
          %2131 = vsyncadd %s2096, %s2130
          %s2132 = smul.addr %s57, 64
          %s2133 = scalar_lea.hbm %s22, %s2132
          %s2135 = sshll.u32 %s2099, 4
          %s2136 = int_to_ptr.vmem [resolvable:$true] %s2135
          %2138 = dma.vmem_to_hbm [thread:$0]  %s2136, 64, %s2133, %s2096
        $region136: #{tpu_custom_call.1} parent=103 // pred_fallthru
          _
        // Predicated region
        $region137: #{tpu_custom_call.1} parent=103 // pred_check
          %p2139 = pneg %p625
        $region138: #{tpu_custom_call.1} parent=103 // pred_check_branch
          %2141 = sbr.rel (%p2139) target = $region140
        $region139: #{tpu_custom_call.1} parent=103 // pred_region
          %s2143 = ssub.s32 128, 128
          %2144 = vsyncadd %s2101, %s2143
          %s2145 = smul.addr %s57, 128
          %s2146 = scalar_lea.hbm %s23, %s2145
          %s2148 = sshll.u32 %s2104, 4
          %s2149 = int_to_ptr.vmem [resolvable:$true] %s2148
          %2151 = dma.vmem_to_hbm [thread:$0]  %s2149, 128, %s2146, %s2101
        $region140: #{tpu_custom_call.1} parent=103 // pred_fallthru
          _
        // Predicated region
        $region141: #{tpu_custom_call.1} parent=103 // pred_check
          %p2152 = pneg %p651
        $region142: #{tpu_custom_call.1} parent=103 // pred_check_branch
          %2154 = sbr.rel (%p2152) target = $region144
        $region143: #{tpu_custom_call.1} parent=103 // pred_region
          %s2156 = ssub.s32 64, 64
          %2157 = vsyncadd %s2106, %s2156
          %s2158 = smul.addr %s57, 64
          %s2159 = scalar_lea.hbm %s24, %s2158
          %s2161 = sshll.u32 %s2109, 4
          %s2162 = int_to_ptr.vmem [resolvable:$true] %s2161
          %2164 = dma.vmem_to_hbm [thread:$0]  %s2162, 64, %s2159, %s2106
        $region144: #{tpu_custom_call.1} parent=103 // pred_fallthru
          _
        // Predicated region
        $region145: #{tpu_custom_call.1} parent=103 // pred_check
          %p2165 = pneg %p677
        $region146: #{tpu_custom_call.1} parent=103 // pred_check_branch
          %2167 = sbr.rel (%p2165) target = $region148
        $region147: #{tpu_custom_call.1} parent=103 // pred_region
          _
        $region148: #{tpu_custom_call.1} parent=103 // pred_fallthru
          _
      $region104: #{tpu_custom_call.1} parent=5 // pred_fallthru
        _
      %p2168 = scmp.le.s32.totalorder 2, %s48
      // Predicated region
      $region149: #{tpu_custom_call.1} parent=5 // pred_check
        %p2169 = pneg %p2168
      $region150: #{tpu_custom_call.1} parent=5 // pred_check_branch
        %2171 = sbr.rel (%p2169) target = $region152
      $region151: #{tpu_custom_call.1} parent=5 // pred_region
        %s2172 = ssub.s32 %s48, 2
        // Predicated region
        $region153: #{tpu_custom_call.1} parent=151 // pred_check
          %p2173 = pneg %p579
        $region154: #{tpu_custom_call.1} parent=151 // pred_check_branch
          %2175 = sbr.rel (%p2173) target = $region156
        $region155: #{tpu_custom_call.1} parent=151 // pred_region
          %s2176 = sand.u32 %s564, 1
          %s2177 = scalar_lea.sflag [#allocation5], %s2176
          %s2178 = sand.u32 %s564, 1
          %s2179 = smul.addr %s2178, 8
          %s2180 = scalar_lea.vmem [#allocation11], %s2179
          %2181 = dma.done %s2177, 128
        $region156: #{tpu_custom_call.1} parent=151 // pred_fallthru
          _
        // Predicated region
        $region157: #{tpu_custom_call.1} parent=151 // pred_check
          %p2182 = pneg %p605
        $region158: #{tpu_custom_call.1} parent=151 // pred_check_branch
          %2184 = sbr.rel (%p2182) target = $region160
        $region159: #{tpu_custom_call.1} parent=151 // pred_region
          %s2185 = sand.u32 %s54, 1
          %s2186 = scalar_lea.sflag [#allocation13], %s2185
          %s2187 = sand.u32 %s590, 1
          %s2188 = smul.addr %s2187, 4
          %s2189 = scalar_lea.vmem [#allocation12], %s2188
          %2190 = dma.done %s2186, 64
        $region160: #{tpu_custom_call.1} parent=151 // pred_fallthru
          _
        // Predicated region
        $region161: #{tpu_custom_call.1} parent=151 // pred_check
          %p2191 = pneg %p631
        $region162: #{tpu_custom_call.1} parent=151 // pred_check_branch
          %2193 = sbr.rel (%p2191) target = $region164
        $region163: #{tpu_custom_call.1} parent=151 // pred_region
          %s2194 = sand.u32 %s54, 1
          %s2195 = scalar_lea.sflag [#allocation13], %s2194
          %s2196 = sand.u32 %s616, 1
          %s2197 = smul.addr %s2196, 8
          %s2198 = scalar_lea.vmem [#allocation14], %s2197
          %2199 = dma.done %s2195, 128
        $region164: #{tpu_custom_call.1} parent=151 // pred_fallthru
          _
        // Predicated region
        $region165: #{tpu_custom_call.1} parent=151 // pred_check
          %p2200 = pneg %p657
        $region166: #{tpu_custom_call.1} parent=151 // pred_check_branch
          %2202 = sbr.rel (%p2200) target = $region168
        $region167: #{tpu_custom_call.1} parent=151 // pred_region
          %s2203 = sand.u32 %s642, 1
          %s2204 = scalar_lea.sflag [#allocation16], %s2203
          %s2205 = sand.u32 %s642, 1
          %s2206 = smul.addr %s2205, 4
          %s2207 = scalar_lea.vmem [#allocation15], %s2206
          %2208 = dma.done %s2204, 64
        $region168: #{tpu_custom_call.1} parent=151 // pred_fallthru
          _
        // Predicated region
        $region169: #{tpu_custom_call.1} parent=151 // pred_check
          %p2209 = pneg %p683
        $region170: #{tpu_custom_call.1} parent=151 // pred_check_branch
          %2211 = sbr.rel (%p2209) target = $region172
        $region171: #{tpu_custom_call.1} parent=151 // pred_region
          %p2212 = scmp.lt.s32.totalorder %s59, 1
          %s2213 = scalar_select %p2212, %s59, 1
          %s2214 = scalar_lea.vmem %s25, %s2213
        $region172: #{tpu_custom_call.1} parent=151 // pred_fallthru
          _
      $region152: #{tpu_custom_call.1} parent=5 // pred_fallthru
        _
    $region6: #{tpu_custom_call.1} parent=1 // loop_footer
      %s52 = sadd.s32 1, %s48
    $region7: #{tpu_custom_call.1} parent=1 // loop_footer_branch
      %47 = sbr.rel target = $region3
    $region8: #{tpu_custom_call.1} parent=1 // loop_exit
      _
    %2215 = vsyncpa [#allocation4], 1
    %s2216 = scalar_lea.sflag [#allocation4], 1
    %2217 = vsyncpa %s2216, 1
    %2218 = vsyncpa [#allocation7], 1
    %s2219 = scalar_lea.sflag [#allocation7], 1
    %2220 = vsyncpa %s2219, 1
    %2221 = vsyncpa [#allocation10], 1
    %2222 = vsyncpa [#allocation5], 1
    %s2223 = scalar_lea.sflag [#allocation5], 1
    %2224 = vsyncpa %s2223, 1
    %2225 = vsyncpa [#allocation13], 1
    %s2226 = scalar_lea.sflag [#allocation13], 1
    %2227 = vsyncpa %s2226, 1
    %2228 = vsyncpa [#allocation16], 1
    %s2229 = scalar_lea.sflag [#allocation16], 1
    %2230 = vsyncpa %s2229, 1

</llo_original>
